<compile_context>
chip_gen: v7x
topology: tpu7x:2x2x1
jax: 0.10.0
libtpu: 0.0.40
codegen_flags: <defaults>
</compile_context>

<pallas_src>
import jax
import jax.numpy as jnp
from jax.experimental import pallas as pl
from jax.experimental.pallas import tpu as pltpu


def _resblock_kernel(xh_ref, w_ref, b_ref, o_ref, s_ref, acc_ref):
    # xh_ref : (1, TILE_H+2, Wp, C)  zero-padded, halo'd NHWC input window
    # w_ref  : (3, 3, C, C)          conv weights, HWIO
    # b_ref  : (1, C)                conv bias
    # o_ref  : (1, TILE_H, W, C)     output tile
    # s_ref  : (3, TILE_H, Wp, C)    per-kw full-width matmul accumulators (f32)
    # acc_ref: (TILE_H, W, C)        conv accumulator over valid columns (f32)
    _, th2, Wp, C = xh_ref.shape
    TILE_H = th2 - 2
    W = acc_ref.shape[1]

    # 3x3 conv as 9 (TILE_H*Wp, C) x (C, C) matmuls.  The LHS for a given kh is
    # an outer-dim slice (no sublane shift) and the reshape is layout-preserving
    # because Wp % 8 == 0, so no shifted-window input copies are materialized.
    for kh in range(3):
        lhs = xh_ref[0, kh:kh + TILE_H].reshape(TILE_H * Wp, C)
        for kw in range(3):
            d = jnp.dot(lhs, w_ref[kh, kw], preferred_element_type=jnp.float32)
            d = d.reshape(TILE_H, Wp, C)
            if kh == 0:
                s_ref[kw] = d
            else:
                s_ref[kw] += d

    # Apply the kw shift on the matmul results by slicing the scratch ref
    # (3 shifted reads total instead of 9 shifted-input relayout copies).
    for kw in range(3):
        win = s_ref[kw, :, kw:kw + W, :]
        if kw == 0:
            acc_ref[...] = win
        else:
            acc_ref[...] += win

    # Epilogue: bias + ReLU + residual.  The residual is the interior of the
    # halo window, so no second HBM input stream is needed.
    y = jnp.maximum(acc_ref[...] + b_ref[0], 0.0)
    res = xh_ref[0, 1:TILE_H + 1, 1:W + 1, :]
    o_ref[0] = (res.astype(jnp.float32) + y).astype(o_ref.dtype)


def _choose_tile_h(H, Wp, W, C, budget_bytes=12 << 20):
    """Largest H tile (H itself, or a multiple of 8 dividing H) fitting the budget."""
    cands = {H}
    for t in range(8, H, 8):
        if H % t == 0:
            cands.add(t)

    cp = -(-C // 128) * 128          # lane padding
    w8 = -(-W // 8) * 8              # sublane padding of the valid-width arrays

    def vmem_bytes(t):
        in_blk = (t + 2) * Wp * cp * 4 * 2     # double-buffered input window
        out_blk = t * w8 * cp * 4 * 2          # double-buffered output tile
        s_scr = 3 * t * Wp * cp * 4            # s_ref
        acc_scr = t * w8 * cp * 4              # acc_ref
        return in_blk + out_blk + s_scr + acc_scr

    fitting = [t for t in cands if vmem_bytes(t) <= budget_bytes]
    pool = fitting if fitting else [min(cands)]
    multi = [t for t in pool if H // t >= 2]   # prefer >=2 pipeline steps per image
    return max(multi) if multi else max(pool)


def resblock_forward(x_nchw, w_oihw, bias):
    """x_nchw: (N, C, H, W) f32; w_oihw: (C, C, 3, 3); bias: (C,)."""
    N, C, H, W = x_nchw.shape

    # NCHW -> NHWC (glue; fusing these transposes into the kernel layout is a
    # possible further step).
    x = jnp.transpose(x_nchw, (0, 2, 3, 1))

    # Pad 1 row top/bottom and 1 column left; pad right up to Wp (multiple of 8)
    # so in-kernel (TILE_H, Wp, C) <-> (TILE_H*Wp, C) reshapes are layout-free.
    Wp = ((W + 2 + 7) // 8) * 8
    TILE_H = _choose_tile_h(H, Wp, W, C)
    nt = H // TILE_H
    x_pad = jnp.pad(x, ((0, 0), (1, 1), (1, Wp - W - 1), (0, 0)))

    # Overlapping H-halo windows (halo = 2 rows), gathered once so the kernel
    # only needs plain blocked BlockSpecs; the residual is read from the window
    # interior instead of a second input stream.
    row_idx = jnp.arange(nt)[:, None] * TILE_H + jnp.arange(TILE_H + 2)[None, :]
    x_halo = x_pad[:, row_idx].reshape(N * nt, TILE_H + 2, Wp, C)

    w_hwio = jnp.transpose(w_oihw, (2, 3, 1, 0))   # OIHW -> HWIO
    b2d = bias.reshape(1, C)

    cost = pl.CostEstimate(
        flops=2 * 9 * N * H * W * C * C,
        transcendentals=0,
        bytes_accessed=int((x_halo.size + w_hwio.size + b2d.size + N * H * W * C) * 4),
    )

    out_nhwc = pl.pallas_call(
        _resblock_kernel,
        out_shape=jax.ShapeDtypeStruct((N, H, W, C), x.dtype),
        grid_spec=pltpu.PrefetchScalarGridSpec(
            num_scalar_prefetch=0,
            grid=(N, nt),
            in_specs=[
                pl.BlockSpec((1, TILE_H + 2, Wp, C),
                             lambda n, h: (n * nt + h, 0, 0, 0)),
                pl.BlockSpec((3, 3, C, C), lambda n, h: (0, 0, 0, 0)),
                pl.BlockSpec((1, C), lambda n, h: (0, 0)),
            ],
            out_specs=pl.BlockSpec((1, TILE_H, W, C),
                                   lambda n, h: (n, h, 0, 0)),
            scratch_shapes=[
                pltpu.VMEM((3, TILE_H, Wp, C), jnp.float32),
                pltpu.VMEM((TILE_H, W, C), jnp.float32),
            ],
        ),
        compiler_params=pltpu.CompilerParams(
            dimension_semantics=("parallel", "parallel"),
            vmem_limit_bytes=64 * 1024 * 1024,
        ),
        cost_estimate=cost,
    )(x_halo, w_hwio, b2d)

    # NHWC -> NCHW
    return jnp.transpose(out_nhwc, (0, 3, 1, 2))


def _reference(x_nchw, w_oihw, bias):
    conv = jax.lax.conv_general_dilated(
        x_nchw, w_oihw, window_strides=(1, 1), padding=((1, 1), (1, 1)),
        dimension_numbers=("NCHW", "OIHW", "NCHW"),
    ) + bias[None, :, None, None]
    return x_nchw + jnp.maximum(conv, 0.0)


if __name__ == "__main__":
    N, C, H, W = 2, 4, 16, 16
    key = jax.random.PRNGKey(0)
    kx, kwt, kb = jax.random.split(key, 3)

    x = jax.random.normal(kx, (N, C, H, W), dtype=jnp.float32)
    # Parameter shapes match nn.Conv2d(n_chan, n_chan, 3, 1, 1)
    fan_in = C * 3 * 3
    bound = 1.0 / (fan_in ** 0.5)
    w = jax.random.uniform(kwt, (C, C, 3, 3), jnp.float32, -bound, bound)
    b = jax.random.uniform(kb, (C,), jnp.float32, -bound, bound)

    fwd = jax.jit(resblock_forward)
    out = jax.block_until_ready(fwd(x, w, b))
    ref = jax.block_until_ready(_reference(x, w, b))

    assert out.shape == (N, C, H, W)
    assert jnp.allclose(out, ref, atol=1e-5, rtol=1e-5), float(
        jnp.max(jnp.abs(out - ref)))

    print("KERNEL_OK")
</pallas_src>

<mosaic_0001>
module attributes {stable_mosaic.version = 11 : i64} {
  func.func @_resblock_kernel(%arg0: i32, %arg1: i32, %arg2: memref<1x10x24x4xf32, #tpu.memory_space<vmem>>, %arg3: memref<3x3x4x4xf32, #tpu.memory_space<vmem>>, %arg4: memref<1x4xf32, #tpu.memory_space<vmem>>, %arg5: memref<1x8x16x4xf32, #tpu.memory_space<vmem>>, %arg6: memref<3x8x24x4xf32, #tpu.memory_space<vmem>>, %arg7: memref<8x16x4xf32, #tpu.memory_space<vmem>>) attributes {dimension_semantics = [#tpu.dimension_semantics<parallel>, #tpu.dimension_semantics<parallel>], iteration_bounds = array<i64: 2, 2>, scalar_prefetch = 0 : i64, scratch_operands = 2 : i64, tpu.core_type = #tpu.core_type<tc>, window_params = [{transform_indices = @transform_0, window_bounds = array<i64: 1, 10, 24, 4>}, {pipeline_mode = #tpu.pipeline_mode<synchronous>, transform_indices = @transform_1, window_bounds = array<i64: 3, 3, 4, 4>}, {pipeline_mode = #tpu.pipeline_mode<synchronous>, transform_indices = @transform_2, window_bounds = array<i64: 1, 4>}, {transform_indices = @transform_3, window_bounds = array<i64: 1, 8, 16, 4>}]} {
    %c0 = arith.constant 0 : index
    %c0_0 = arith.constant 0 : index
    %c0_1 = arith.constant 0 : index
    %c0_2 = arith.constant 0 : index
    %0 = vector.load %arg2[%c0, %c0_0, %c0_1, %c0_2] : memref<1x10x24x4xf32, #tpu.memory_space<vmem>>, vector<1x8x24x4xf32>
    %1 = vector.shape_cast %0 : vector<1x8x24x4xf32> to vector<8x24x4xf32>
    %2 = vector.shape_cast %1 : vector<8x24x4xf32> to vector<192x4xf32>
    %c0_3 = arith.constant 0 : index
    %c0_4 = arith.constant 0 : index
    %c0_5 = arith.constant 0 : index
    %c0_6 = arith.constant 0 : index
    %3 = vector.load %arg3[%c0_3, %c0_4, %c0_5, %c0_6] : memref<3x3x4x4xf32, #tpu.memory_space<vmem>>, vector<1x1x4x4xf32>
    %4 = vector.shape_cast %3 : vector<1x1x4x4xf32> to vector<4x4xf32>
    %cst = arith.constant dense<0.000000e+00> : vector<192x4xf32>
    %5 = tpu.matmul %2, %4, %cst {dimension_numbers = #tpu.dot_dimension_numbers<[1], [0], [0], [1], [0, 0, 1, 1], [], []>} : vector<192x4xf32>, vector<4x4xf32>, vector<192x4xf32> -> vector<192x4xf32>
    %6 = vector.shape_cast %5 : vector<192x4xf32> to vector<8x24x4xf32>
    %c0_7 = arith.constant 0 : index
    %c0_8 = arith.constant 0 : index
    %c0_9 = arith.constant 0 : index
    %c0_10 = arith.constant 0 : index
    %7 = vector.load %arg6[%c0_7, %c0_8, %c0_9, %c0_10] : memref<3x8x24x4xf32, #tpu.memory_space<vmem>>, vector<1x8x24x4xf32>
    %8 = vector.shape_cast %7 : vector<1x8x24x4xf32> to vector<8x24x4xf32>
    %9 = vector.shape_cast %6 : vector<8x24x4xf32> to vector<1x8x24x4xf32>
    tpu.vector_store %arg6[%c0_7, %c0_8, %c0_9, %c0_10], %9 {strides = array<i32>} : memref<3x8x24x4xf32, #tpu.memory_space<vmem>>, vector<1x8x24x4xf32>,
    %c0_11 = arith.constant 0 : index
    %c1 = arith.constant 1 : index
    %c0_12 = arith.constant 0 : index
    %c0_13 = arith.constant 0 : index
    %10 = vector.load %arg3[%c0_11, %c1, %c0_12, %c0_13] : memref<3x3x4x4xf32, #tpu.memory_space<vmem>>, vector<1x1x4x4xf32>
    %11 = vector.shape_cast %10 : vector<1x1x4x4xf32> to vector<4x4xf32>
    %cst_14 = arith.constant dense<0.000000e+00> : vector<192x4xf32>
    %12 = tpu.matmul %2, %11, %cst_14 {dimension_numbers = #tpu.dot_dimension_numbers<[1], [0], [0], [1], [0, 0, 1, 1], [], []>} : vector<192x4xf32>, vector<4x4xf32>, vector<192x4xf32> -> vector<192x4xf32>
    %13 = vector.shape_cast %12 : vector<192x4xf32> to vector<8x24x4xf32>
    %c1_15 = arith.constant 1 : index
    %c0_16 = arith.constant 0 : index
    %c0_17 = arith.constant 0 : index
    %c0_18 = arith.constant 0 : index
    %14 = vector.load %arg6[%c1_15, %c0_16, %c0_17, %c0_18] : memref<3x8x24x4xf32, #tpu.memory_space<vmem>>, vector<1x8x24x4xf32>
    %15 = vector.shape_cast %14 : vector<1x8x24x4xf32> to vector<8x24x4xf32>
    %16 = vector.shape_cast %13 : vector<8x24x4xf32> to vector<1x8x24x4xf32>
    tpu.vector_store %arg6[%c1_15, %c0_16, %c0_17, %c0_18], %16 {strides = array<i32>} : memref<3x8x24x4xf32, #tpu.memory_space<vmem>>, vector<1x8x24x4xf32>,
    %c0_19 = arith.constant 0 : index
    %c2 = arith.constant 2 : index
    %c0_20 = arith.constant 0 : index
    %c0_21 = arith.constant 0 : index
    %17 = vector.load %arg3[%c0_19, %c2, %c0_20, %c0_21] : memref<3x3x4x4xf32, #tpu.memory_space<vmem>>, vector<1x1x4x4xf32>
    %18 = vector.shape_cast %17 : vector<1x1x4x4xf32> to vector<4x4xf32>
    %cst_22 = arith.constant dense<0.000000e+00> : vector<192x4xf32>
    %19 = tpu.matmul %2, %18, %cst_22 {dimension_numbers = #tpu.dot_dimension_numbers<[1], [0], [0], [1], [0, 0, 1, 1], [], []>} : vector<192x4xf32>, vector<4x4xf32>, vector<192x4xf32> -> vector<192x4xf32>
    %20 = vector.shape_cast %19 : vector<192x4xf32> to vector<8x24x4xf32>
    %c2_23 = arith.constant 2 : index
    %c0_24 = arith.constant 0 : index
    %c0_25 = arith.constant 0 : index
    %c0_26 = arith.constant 0 : index
    %21 = vector.load %arg6[%c2_23, %c0_24, %c0_25, %c0_26] : memref<3x8x24x4xf32, #tpu.memory_space<vmem>>, vector<1x8x24x4xf32>
    %22 = vector.shape_cast %21 : vector<1x8x24x4xf32> to vector<8x24x4xf32>
    %23 = vector.shape_cast %20 : vector<8x24x4xf32> to vector<1x8x24x4xf32>
    tpu.vector_store %arg6[%c2_23, %c0_24, %c0_25, %c0_26], %23 {strides = array<i32>} : memref<3x8x24x4xf32, #tpu.memory_space<vmem>>, vector<1x8x24x4xf32>,
    %c0_27 = arith.constant 0 : index
    %c1_28 = arith.constant 1 : index
    %c0_29 = arith.constant 0 : index
    %c0_30 = arith.constant 0 : index
    %24 = vector.load %arg2[%c0_27, %c1_28, %c0_29, %c0_30] : memref<1x10x24x4xf32, #tpu.memory_space<vmem>>, vector<1x8x24x4xf32>
    %25 = vector.shape_cast %24 : vector<1x8x24x4xf32> to vector<8x24x4xf32>
    %26 = vector.shape_cast %25 : vector<8x24x4xf32> to vector<192x4xf32>
    %c1_31 = arith.constant 1 : index
    %c0_32 = arith.constant 0 : index
    %c0_33 = arith.constant 0 : index
    %c0_34 = arith.constant 0 : index
    %27 = vector.load %arg3[%c1_31, %c0_32, %c0_33, %c0_34] : memref<3x3x4x4xf32, #tpu.memory_space<vmem>>, vector<1x1x4x4xf32>
    %28 = vector.shape_cast %27 : vector<1x1x4x4xf32> to vector<4x4xf32>
    %cst_35 = arith.constant dense<0.000000e+00> : vector<192x4xf32>
    %29 = tpu.matmul %26, %28, %cst_35 {dimension_numbers = #tpu.dot_dimension_numbers<[1], [0], [0], [1], [0, 0, 1, 1], [], []>} : vector<192x4xf32>, vector<4x4xf32>, vector<192x4xf32> -> vector<192x4xf32>
    %30 = vector.shape_cast %29 : vector<192x4xf32> to vector<8x24x4xf32>
    %c0_36 = arith.constant 0 : index
    %c0_37 = arith.constant 0 : index
    %c0_38 = arith.constant 0 : index
    %c0_39 = arith.constant 0 : index
    %31 = vector.load %arg6[%c0_36, %c0_37, %c0_38, %c0_39] : memref<3x8x24x4xf32, #tpu.memory_space<vmem>>, vector<1x8x24x4xf32>
    %32 = vector.shape_cast %31 : vector<1x8x24x4xf32> to vector<8x24x4xf32>
    %33 = arith.addf %32, %30 : vector<8x24x4xf32>
    %c0_40 = arith.constant 0 : index
    %c0_41 = arith.constant 0 : index
    %c0_42 = arith.constant 0 : index
    %c0_43 = arith.constant 0 : index
    %34 = vector.load %arg6[%c0_40, %c0_41, %c0_42, %c0_43] : memref<3x8x24x4xf32, #tpu.memory_space<vmem>>, vector<1x8x24x4xf32>
    %35 = vector.shape_cast %34 : vector<1x8x24x4xf32> to vector<8x24x4xf32>
    %36 = vector.shape_cast %33 : vector<8x24x4xf32> to vector<1x8x24x4xf32>
    tpu.vector_store %arg6[%c0_40, %c0_41, %c0_42, %c0_43], %36 {strides = array<i32>} : memref<3x8x24x4xf32, #tpu.memory_space<vmem>>, vector<1x8x24x4xf32>,
    %c1_44 = arith.constant 1 : index
    %c1_45 = arith.constant 1 : index
    %c0_46 = arith.constant 0 : index
    %c0_47 = arith.constant 0 : index
    %37 = vector.load %arg3[%c1_44, %c1_45, %c0_46, %c0_47] : memref<3x3x4x4xf32, #tpu.memory_space<vmem>>, vector<1x1x4x4xf32>
    %38 = vector.shape_cast %37 : vector<1x1x4x4xf32> to vector<4x4xf32>
    %cst_48 = arith.constant dense<0.000000e+00> : vector<192x4xf32>
    %39 = tpu.matmul %26, %38, %cst_48 {dimension_numbers = #tpu.dot_dimension_numbers<[1], [0], [0], [1], [0, 0, 1, 1], [], []>} : vector<192x4xf32>, vector<4x4xf32>, vector<192x4xf32> -> vector<192x4xf32>
    %40 = vector.shape_cast %39 : vector<192x4xf32> to vector<8x24x4xf32>
    %c1_49 = arith.constant 1 : index
    %c0_50 = arith.constant 0 : index
    %c0_51 = arith.constant 0 : index
    %c0_52 = arith.constant 0 : index
    %41 = vector.load %arg6[%c1_49, %c0_50, %c0_51, %c0_52] : memref<3x8x24x4xf32, #tpu.memory_space<vmem>>, vector<1x8x24x4xf32>
    %42 = vector.shape_cast %41 : vector<1x8x24x4xf32> to vector<8x24x4xf32>
    %43 = arith.addf %42, %40 : vector<8x24x4xf32>
    %c1_53 = arith.constant 1 : index
    %c0_54 = arith.constant 0 : index
    %c0_55 = arith.constant 0 : index
    %c0_56 = arith.constant 0 : index
    %44 = vector.load %arg6[%c1_53, %c0_54, %c0_55, %c0_56] : memref<3x8x24x4xf32, #tpu.memory_space<vmem>>, vector<1x8x24x4xf32>
    %45 = vector.shape_cast %44 : vector<1x8x24x4xf32> to vector<8x24x4xf32>
    %46 = vector.shape_cast %43 : vector<8x24x4xf32> to vector<1x8x24x4xf32>
    tpu.vector_store %arg6[%c1_53, %c0_54, %c0_55, %c0_56], %46 {strides = array<i32>} : memref<3x8x24x4xf32, #tpu.memory_space<vmem>>, vector<1x8x24x4xf32>,
    %c1_57 = arith.constant 1 : index
    %c2_58 = arith.constant 2 : index
    %c0_59 = arith.constant 0 : index
    %c0_60 = arith.constant 0 : index
    %47 = vector.load %arg3[%c1_57, %c2_58, %c0_59, %c0_60] : memref<3x3x4x4xf32, #tpu.memory_space<vmem>>, vector<1x1x4x4xf32>
    %48 = vector.shape_cast %47 : vector<1x1x4x4xf32> to vector<4x4xf32>
    %cst_61 = arith.constant dense<0.000000e+00> : vector<192x4xf32>
    %49 = tpu.matmul %26, %48, %cst_61 {dimension_numbers = #tpu.dot_dimension_numbers<[1], [0], [0], [1], [0, 0, 1, 1], [], []>} : vector<192x4xf32>, vector<4x4xf32>, vector<192x4xf32> -> vector<192x4xf32>
    %50 = vector.shape_cast %49 : vector<192x4xf32> to vector<8x24x4xf32>
    %c2_62 = arith.constant 2 : index
    %c0_63 = arith.constant 0 : index
    %c0_64 = arith.constant 0 : index
    %c0_65 = arith.constant 0 : index
    %51 = vector.load %arg6[%c2_62, %c0_63, %c0_64, %c0_65] : memref<3x8x24x4xf32, #tpu.memory_space<vmem>>, vector<1x8x24x4xf32>
    %52 = vector.shape_cast %51 : vector<1x8x24x4xf32> to vector<8x24x4xf32>
    %53 = arith.addf %52, %50 : vector<8x24x4xf32>
    %c2_66 = arith.constant 2 : index
    %c0_67 = arith.constant 0 : index
    %c0_68 = arith.constant 0 : index
    %c0_69 = arith.constant 0 : index
    %54 = vector.load %arg6[%c2_66, %c0_67, %c0_68, %c0_69] : memref<3x8x24x4xf32, #tpu.memory_space<vmem>>, vector<1x8x24x4xf32>
    %55 = vector.shape_cast %54 : vector<1x8x24x4xf32> to vector<8x24x4xf32>
    %56 = vector.shape_cast %53 : vector<8x24x4xf32> to vector<1x8x24x4xf32>
    tpu.vector_store %arg6[%c2_66, %c0_67, %c0_68, %c0_69], %56 {strides = array<i32>} : memref<3x8x24x4xf32, #tpu.memory_space<vmem>>, vector<1x8x24x4xf32>,
    %c0_70 = arith.constant 0 : index
    %c2_71 = arith.constant 2 : index
    %c0_72 = arith.constant 0 : index
    %c0_73 = arith.constant 0 : index
    %57 = vector.load %arg2[%c0_70, %c2_71, %c0_72, %c0_73] : memref<1x10x24x4xf32, #tpu.memory_space<vmem>>, vector<1x8x24x4xf32>
    %58 = vector.shape_cast %57 : vector<1x8x24x4xf32> to vector<8x24x4xf32>
    %59 = vector.shape_cast %58 : vector<8x24x4xf32> to vector<192x4xf32>
    %c2_74 = arith.constant 2 : index
    %c0_75 = arith.constant 0 : index
    %c0_76 = arith.constant 0 : index
    %c0_77 = arith.constant 0 : index
    %60 = vector.load %arg3[%c2_74, %c0_75, %c0_76, %c0_77] : memref<3x3x4x4xf32, #tpu.memory_space<vmem>>, vector<1x1x4x4xf32>
    %61 = vector.shape_cast %60 : vector<1x1x4x4xf32> to vector<4x4xf32>
    %cst_78 = arith.constant dense<0.000000e+00> : vector<192x4xf32>
    %62 = tpu.matmul %59, %61, %cst_78 {dimension_numbers = #tpu.dot_dimension_numbers<[1], [0], [0], [1], [0, 0, 1, 1], [], []>} : vector<192x4xf32>, vector<4x4xf32>, vector<192x4xf32> -> vector<192x4xf32>
    %63 = vector.shape_cast %62 : vector<192x4xf32> to vector<8x24x4xf32>
    %c0_79 = arith.constant 0 : index
    %c0_80 = arith.constant 0 : index
    %c0_81 = arith.constant 0 : index
    %c0_82 = arith.constant 0 : index
    %64 = vector.load %arg6[%c0_79, %c0_80, %c0_81, %c0_82] : memref<3x8x24x4xf32, #tpu.memory_space<vmem>>, vector<1x8x24x4xf32>
    %65 = vector.shape_cast %64 : vector<1x8x24x4xf32> to vector<8x24x4xf32>
    %66 = arith.addf %65, %63 : vector<8x24x4xf32>
    %c0_83 = arith.constant 0 : index
    %c0_84 = arith.constant 0 : index
    %c0_85 = arith.constant 0 : index
    %c0_86 = arith.constant 0 : index
    %67 = vector.load %arg6[%c0_83, %c0_84, %c0_85, %c0_86] : memref<3x8x24x4xf32, #tpu.memory_space<vmem>>, vector<1x8x24x4xf32>
    %68 = vector.shape_cast %67 : vector<1x8x24x4xf32> to vector<8x24x4xf32>
    %69 = vector.shape_cast %66 : vector<8x24x4xf32> to vector<1x8x24x4xf32>
    tpu.vector_store %arg6[%c0_83, %c0_84, %c0_85, %c0_86], %69 {strides = array<i32>} : memref<3x8x24x4xf32, #tpu.memory_space<vmem>>, vector<1x8x24x4xf32>,
    %c2_87 = arith.constant 2 : index
    %c1_88 = arith.constant 1 : index
    %c0_89 = arith.constant 0 : index
    %c0_90 = arith.constant 0 : index
    %70 = vector.load %arg3[%c2_87, %c1_88, %c0_89, %c0_90] : memref<3x3x4x4xf32, #tpu.memory_space<vmem>>, vector<1x1x4x4xf32>
    %71 = vector.shape_cast %70 : vector<1x1x4x4xf32> to vector<4x4xf32>
    %cst_91 = arith.constant dense<0.000000e+00> : vector<192x4xf32>
    %72 = tpu.matmul %59, %71, %cst_91 {dimension_numbers = #tpu.dot_dimension_numbers<[1], [0], [0], [1], [0, 0, 1, 1], [], []>} : vector<192x4xf32>, vector<4x4xf32>, vector<192x4xf32> -> vector<192x4xf32>
    %73 = vector.shape_cast %72 : vector<192x4xf32> to vector<8x24x4xf32>
    %c1_92 = arith.constant 1 : index
    %c0_93 = arith.constant 0 : index
    %c0_94 = arith.constant 0 : index
    %c0_95 = arith.constant 0 : index
    %74 = vector.load %arg6[%c1_92, %c0_93, %c0_94, %c0_95] : memref<3x8x24x4xf32, #tpu.memory_space<vmem>>, vector<1x8x24x4xf32>
    %75 = vector.shape_cast %74 : vector<1x8x24x4xf32> to vector<8x24x4xf32>
    %76 = arith.addf %75, %73 : vector<8x24x4xf32>
    %c1_96 = arith.constant 1 : index
    %c0_97 = arith.constant 0 : index
    %c0_98 = arith.constant 0 : index
    %c0_99 = arith.constant 0 : index
    %77 = vector.load %arg6[%c1_96, %c0_97, %c0_98, %c0_99] : memref<3x8x24x4xf32, #tpu.memory_space<vmem>>, vector<1x8x24x4xf32>
    %78 = vector.shape_cast %77 : vector<1x8x24x4xf32> to vector<8x24x4xf32>
    %79 = vector.shape_cast %76 : vector<8x24x4xf32> to vector<1x8x24x4xf32>
    tpu.vector_store %arg6[%c1_96, %c0_97, %c0_98, %c0_99], %79 {strides = array<i32>} : memref<3x8x24x4xf32, #tpu.memory_space<vmem>>, vector<1x8x24x4xf32>,
    %c2_100 = arith.constant 2 : index
    %c2_101 = arith.constant 2 : index
    %c0_102 = arith.constant 0 : index
    %c0_103 = arith.constant 0 : index
    %80 = vector.load %arg3[%c2_100, %c2_101, %c0_102, %c0_103] : memref<3x3x4x4xf32, #tpu.memory_space<vmem>>, vector<1x1x4x4xf32>
    %81 = vector.shape_cast %80 : vector<1x1x4x4xf32> to vector<4x4xf32>
    %cst_104 = arith.constant dense<0.000000e+00> : vector<192x4xf32>
    %82 = tpu.matmul %59, %81, %cst_104 {dimension_numbers = #tpu.dot_dimension_numbers<[1], [0], [0], [1], [0, 0, 1, 1], [], []>} : vector<192x4xf32>, vector<4x4xf32>, vector<192x4xf32> -> vector<192x4xf32>
    %83 = vector.shape_cast %82 : vector<192x4xf32> to vector<8x24x4xf32>
    %c2_105 = arith.constant 2 : index
    %c0_106 = arith.constant 0 : index
    %c0_107 = arith.constant 0 : index
    %c0_108 = arith.constant 0 : index
    %84 = vector.load %arg6[%c2_105, %c0_106, %c0_107, %c0_108] : memref<3x8x24x4xf32, #tpu.memory_space<vmem>>, vector<1x8x24x4xf32>
    %85 = vector.shape_cast %84 : vector<1x8x24x4xf32> to vector<8x24x4xf32>
    %86 = arith.addf %85, %83 : vector<8x24x4xf32>
    %c2_109 = arith.constant 2 : index
    %c0_110 = arith.constant 0 : index
    %c0_111 = arith.constant 0 : index
    %c0_112 = arith.constant 0 : index
    %87 = vector.load %arg6[%c2_109, %c0_110, %c0_111, %c0_112] : memref<3x8x24x4xf32, #tpu.memory_space<vmem>>, vector<1x8x24x4xf32>
    %88 = vector.shape_cast %87 : vector<1x8x24x4xf32> to vector<8x24x4xf32>
    %89 = vector.shape_cast %86 : vector<8x24x4xf32> to vector<1x8x24x4xf32>
    tpu.vector_store %arg6[%c2_109, %c0_110, %c0_111, %c0_112], %89 {strides = array<i32>} : memref<3x8x24x4xf32, #tpu.memory_space<vmem>>, vector<1x8x24x4xf32>,
    %c0_113 = arith.constant 0 : index
    %c0_114 = arith.constant 0 : index
    %c0_115 = arith.constant 0 : index
    %c0_116 = arith.constant 0 : index
    %90 = vector.load %arg6[%c0_113, %c0_114, %c0_115, %c0_116] : memref<3x8x24x4xf32, #tpu.memory_space<vmem>>, vector<1x8x16x4xf32>
    %91 = vector.shape_cast %90 : vector<1x8x16x4xf32> to vector<8x16x4xf32>
    %c0_117 = arith.constant 0 : index
    %c0_118 = arith.constant 0 : index
    %c0_119 = arith.constant 0 : index
    %92 = vector.load %arg7[%c0_117, %c0_118, %c0_119] : memref<8x16x4xf32, #tpu.memory_space<vmem>>, vector<8x16x4xf32>
    tpu.vector_store %arg7[%c0_117, %c0_118, %c0_119], %91 {strides = array<i32>} : memref<8x16x4xf32, #tpu.memory_space<vmem>>, vector<8x16x4xf32>,
    %c1_120 = arith.constant 1 : index
    %c0_121 = arith.constant 0 : index
    %c1_122 = arith.constant 1 : index
    %c0_123 = arith.constant 0 : index
    %93 = vector.load %arg6[%c1_120, %c0_121, %c1_122, %c0_123] : memref<3x8x24x4xf32, #tpu.memory_space<vmem>>, vector<1x8x16x4xf32>
    %94 = vector.shape_cast %93 : vector<1x8x16x4xf32> to vector<8x16x4xf32>
    %c0_124 = arith.constant 0 : index
    %c0_125 = arith.constant 0 : index
    %c0_126 = arith.constant 0 : index
    %95 = vector.load %arg7[%c0_124, %c0_125, %c0_126] : memref<8x16x4xf32, #tpu.memory_space<vmem>>, vector<8x16x4xf32>
    %96 = arith.addf %95, %94 : vector<8x16x4xf32>
    %c0_127 = arith.constant 0 : index
    %c0_128 = arith.constant 0 : index
    %c0_129 = arith.constant 0 : index
    %97 = vector.load %arg7[%c0_127, %c0_128, %c0_129] : memref<8x16x4xf32, #tpu.memory_space<vmem>>, vector<8x16x4xf32>
    tpu.vector_store %arg7[%c0_127, %c0_128, %c0_129], %96 {strides = array<i32>} : memref<8x16x4xf32, #tpu.memory_space<vmem>>, vector<8x16x4xf32>,
    %c2_130 = arith.constant 2 : index
    %c0_131 = arith.constant 0 : index
    %c2_132 = arith.constant 2 : index
    %c0_133 = arith.constant 0 : index
    %98 = vector.load %arg6[%c2_130, %c0_131, %c2_132, %c0_133] : memref<3x8x24x4xf32, #tpu.memory_space<vmem>>, vector<1x8x16x4xf32>
    %99 = vector.shape_cast %98 : vector<1x8x16x4xf32> to vector<8x16x4xf32>
    %c0_134 = arith.constant 0 : index
    %c0_135 = arith.constant 0 : index
    %c0_136 = arith.constant 0 : index
    %100 = vector.load %arg7[%c0_134, %c0_135, %c0_136] : memref<8x16x4xf32, #tpu.memory_space<vmem>>, vector<8x16x4xf32>
    %101 = arith.addf %100, %99 : vector<8x16x4xf32>
    %c0_137 = arith.constant 0 : index
    %c0_138 = arith.constant 0 : index
    %c0_139 = arith.constant 0 : index
    %102 = vector.load %arg7[%c0_137, %c0_138, %c0_139] : memref<8x16x4xf32, #tpu.memory_space<vmem>>, vector<8x16x4xf32>
    tpu.vector_store %arg7[%c0_137, %c0_138, %c0_139], %101 {strides = array<i32>} : memref<8x16x4xf32, #tpu.memory_space<vmem>>, vector<8x16x4xf32>,
    %c0_140 = arith.constant 0 : index
    %c0_141 = arith.constant 0 : index
    %c0_142 = arith.constant 0 : index
    %103 = vector.load %arg7[%c0_140, %c0_141, %c0_142] : memref<8x16x4xf32, #tpu.memory_space<vmem>>, vector<8x16x4xf32>
    %c0_143 = arith.constant 0 : index
    %c0_144 = arith.constant 0 : index
    %104 = vector.load %arg4[%c0_143, %c0_144] : memref<1x4xf32, #tpu.memory_space<vmem>>, vector<1x4xf32>
    %105 = vector.shape_cast %104 : vector<1x4xf32> to vector<4xf32>
    %106 = vector.shape_cast %105 : vector<4xf32> to vector<1x1x4xf32>
    %107 = vector.broadcast %106 : vector<1x1x4xf32> to vector<8x16x4xf32>
    %108 = arith.addf %103, %107 : vector<8x16x4xf32>
    %cst_145 = arith.constant 0.000000e+00 : f32
    %109 = vector.broadcast %cst_145 : f32 to vector<8x16x4xf32>
    %110 = arith.maximumf %108, %109 : vector<8x16x4xf32>
    %c0_146 = arith.constant 0 : index
    %c1_147 = arith.constant 1 : index
    %c1_148 = arith.constant 1 : index
    %c0_149 = arith.constant 0 : index
    %111 = vector.load %arg2[%c0_146, %c1_147, %c1_148, %c0_149] : memref<1x10x24x4xf32, #tpu.memory_space<vmem>>, vector<1x8x16x4xf32>
    %112 = vector.shape_cast %111 : vector<1x8x16x4xf32> to vector<8x16x4xf32>
    %113 = arith.addf %112, %110 : vector<8x16x4xf32>
    %c0_150 = arith.constant 0 : index
    %c0_151 = arith.constant 0 : index
    %c0_152 = arith.constant 0 : index
    %c0_153 = arith.constant 0 : index
    %114 = vector.load %arg5[%c0_150, %c0_151, %c0_152, %c0_153] : memref<1x8x16x4xf32, #tpu.memory_space<vmem>>, vector<1x8x16x4xf32>
    %115 = vector.shape_cast %114 : vector<1x8x16x4xf32> to vector<8x16x4xf32>
    %116 = vector.shape_cast %113 : vector<8x16x4xf32> to vector<1x8x16x4xf32>
    tpu.vector_store %arg5[%c0_150, %c0_151, %c0_152, %c0_153], %116 {strides = array<i32>} : memref<1x8x16x4xf32, #tpu.memory_space<vmem>>, vector<1x8x16x4xf32>,
    return
  }
  func.func @transform_0(%arg0: i32, %arg1: i32) -> (i32, i32, i32, i32) {
    %c2_i32 = arith.constant 2 : i32
    %0 = arith.muli %arg0, %c2_i32 : i32
    %1 = arith.addi %0, %arg1 : i32
    %c0_i32 = arith.constant 0 : i32
    %c0_i32_0 = arith.constant 0 : i32
    %c0_i32_1 = arith.constant 0 : i32
    %c0_i32_2 = arith.constant 0 : i32
    return %1, %c0_i32, %c0_i32_0, %c0_i32_1 : i32, i32, i32, i32
  }
  func.func @transform_1(%arg0: i32, %arg1: i32) -> (i32, i32, i32, i32) {
    %c0_i32 = arith.constant 0 : i32
    %c0_i32_0 = arith.constant 0 : i32
    %c0_i32_1 = arith.constant 0 : i32
    %c0_i32_2 = arith.constant 0 : i32
    %c0_i32_3 = arith.constant 0 : i32
    return %c0_i32, %c0_i32_0, %c0_i32_1, %c0_i32_2 : i32, i32, i32, i32
  }
  func.func @transform_2(%arg0: i32, %arg1: i32) -> (i32, i32) {
    %c0_i32 = arith.constant 0 : i32
    %c0_i32_0 = arith.constant 0 : i32
    %c0_i32_1 = arith.constant 0 : i32
    return %c0_i32, %c0_i32_0 : i32, i32
  }
  func.func @transform_3(%arg0: i32, %arg1: i32) -> (i32, i32, i32, i32) {
    %c0_i32 = arith.constant 0 : i32
    %c0_i32_0 = arith.constant 0 : i32
    %c0_i32_1 = arith.constant 0 : i32
    return %arg0, %arg1, %c0_i32, %c0_i32_0 : i32, i32, i32, i32
  }
}

</mosaic_0001>

<llo_original>
// kernel: resblock_forward.1
$region0: #{resblock_forward.1}
  #allocation0 [shape = 'u32[]', space=smem, size = 0x4, offset = 0x4, fixed_abs, tag = 'smem constant byte address 0x4 - core index']
  #allocation1 [shape = 'u32[144,128]{1,0:T(1,128)}', space=vmem, size = 0x12000, scoped, tag = 'internal scratch']
  #allocation2 [shape = 'f32[3,8,24,4]{3,2,1,0:T(8,128)}', space=vmem, size = 0x48000, scoped, tag = 'scratch operand']
  #allocation3 [shape = 'f32[8,16,4]{2,1,0:T(8,128)}', space=vmem, size = 0x10000, scoped, tag = 'scratch operand']
  %s0 = inlined_call_operand.hbm [shape: f32[4,10,24,4], index: 0, kind: input, shape index: {}]
  %s1 = inlined_call_operand.hbm [shape: f32[3,3,4,4], index: 1, kind: input, shape index: {}]
  %s2 = inlined_call_operand.hbm [shape: f32[1,4], index: 2, kind: input, shape index: {}]
  %s3 = inlined_call_operand.hbm [shape: f32[2,16,16,4], index: 3, kind: output, shape index: {}]
  %s4 = sld [smem:[#allocation0]]
  $region57: #{resblock_forward.1} parent=0
    _
  %s6 = ssub.s32 1, %s4
  %s7 = scalar_select 0, %s6, %s4
  $region1: #{resblock_forward.1} parent=0
    #allocation4 [shape = 'u8[245760]{0}', space=vmem, size = 0x3c000, scoped, tag = 'input window, operand 0']
    #allocation5 [shape = 's32[2]{0}', space=sflag, size = 0x8, scoped, tag = 'scoped memory for resblock_forward.1']
    #allocation6 [shape = 's32[2]{0}', space=sflag, size = 0x8, scoped, tag = 'scoped memory for resblock_forward.1']
    #allocation7 [shape = 'u8[18432]{0}', space=vmem, size = 0x4800, scoped, tag = 'input window, operand 1, single buffered']
    #allocation8 [shape = 's32[1]{0}', space=sflag, size = 0x4, scoped, tag = 'scoped memory for resblock_forward.1']
    #allocation9 [shape = 'u8[512]{0}', space=vmem, size = 0x400, scoped, tag = 'input window, operand 2, single buffered']
    #allocation10 [shape = 'u8[131072]{0}', space=vmem, size = 0x20000, scoped, tag = 'output window, operand 0']
    %8 = vsyncpa [#allocation5], 0
    %s9 = scalar_lea.sflag [#allocation5], 1
    %10 = vsyncpa %s9, 0
    %11 = vsyncpa [#allocation8], 0
    %12 = vsyncpa [#allocation6], 0
    %s13 = scalar_lea.sflag [#allocation6], 1
    %14 = vsyncpa %s13, 0
    loop: start=0, step=1, limit=6
    $region2: #{resblock_forward.1} parent=1 // loop_pre_header
      _
    $region3: #{resblock_forward.1} parent=1 // loop_header
      %s16 = sphi 0, %s20
      %p17 = scmp.ge.s32.totalorder %s16, 6
      %s23 = sphi 0, %s35
      %s24 = sphi 0, %s31
      %s25 = sphi 0, %s23
      %s26 = sphi 0, %s24
      %s27 = sphi 0, %s25
      %s28 = sphi 0, %s26
      %s42 = sphi 0, %s44
      %s45 = sphi 0, %s42
      %s46 = sphi 0, %s45
      %s62 = sphi 0, %s46
      %s66 = sphi 0, %s66
      %s68 = sphi 0, %s66
      %s69 = sphi 0, %s68
      %s83 = sphi 0, %s69
      %s87 = sphi 0, %s87
      %s89 = sphi 0, %s87
      %s90 = sphi 0, %s89
      %s104 = sphi 0, %s90
      %s112 = sphi 0, %s114
      %s115 = sphi 0, %s112
      %s116 = sphi 0, %s115
      %s132 = sphi 0, %s116
    $region4: #{resblock_forward.1} parent=1 // loop_header_branch
      %19 = sbr.rel (%p17) target = $region8
    $region5: #{resblock_forward.1} parent=1 // loop_body
      %s21 = ssub.s32 %s16, 1
      %s22 = ssub.s32 %s16, 2
      %s29 = sadd.s32 1, %s24
      %p30 = scmp.ge.s32.totalorder %s29, 2
      %s31 = scalar_select %p30, 0, %s29
      %s32 = sadd.s32 1, %s23
      %s33 = scalar_select %p30, %s32, %s23
      %p34 = scmp.ge.s32.totalorder %s33, 2
      %s35 = scalar_select %p34, 0, %s33
      %s36 = smul.u32 %s23, 2
      %s37 = sadd.s32 %s36, %s24
      %s38 = smul.u32 %s35, 2
      %s39 = sadd.s32 %s38, %s31
      %s40 = ssub.s32 %s37, %s39
      %p41 = scmp.eq.s32.totalorder %s40, 0
      %s43 = sadd.s32 %s42, 1
      %s44 = scalar_select %p41, %s42, %s43
      %p47 = pneg %p41
      %p48 = scmp.eq.s32.totalorder %s16, 3
      %p49 = por %p47, %p48
      %p50 = scmp.ne.s32.totalorder %s42, %s45
      %p51 = scmp.eq.s32.totalorder %s16, 0
      %p52 = por %p50, %p51
      %p53 = scmp.ne.s32.totalorder %s42, %s45
      %p54 = scmp.eq.s32.totalorder %s21, 3
      %p55 = por %p53, %p54
      %p56 = scmp.ne.s32.totalorder %s45, %s46
      %p57 = scmp.eq.s32.totalorder %s21, 0
      %p58 = por %p56, %p57
      %p59 = scmp.ne.s32.totalorder %s45, %s46
      %p60 = scmp.eq.s32.totalorder %s22, 3
      %p61 = por %p59, %p60
      %p63 = scmp.ne.s32.totalorder %s46, %s62
      %p64 = scmp.eq.s32.totalorder %s22, 0
      %p65 = por %p63, %p64
      %s67 = sadd.s32 %s66, 1
      %p70 = scmp.eq.s32.totalorder %s16, 3
      %p71 = scmp.ne.s32.totalorder %s66, %s68
      %p72 = scmp.eq.s32.totalorder %s16, 0
      %p73 = por %p71, %p72
      %p74 = scmp.ne.s32.totalorder %s66, %s68
      %p75 = scmp.eq.s32.totalorder %s21, 3
      %p76 = por %p74, %p75
      %p77 = scmp.ne.s32.totalorder %s68, %s69
      %p78 = scmp.eq.s32.totalorder %s21, 0
      %p79 = por %p77, %p78
      %p80 = scmp.ne.s32.totalorder %s68, %s69
      %p81 = scmp.eq.s32.totalorder %s22, 3
      %p82 = por %p80, %p81
      %p84 = scmp.ne.s32.totalorder %s69, %s83
      %p85 = scmp.eq.s32.totalorder %s22, 0
      %p86 = por %p84, %p85
      %s88 = sadd.s32 %s87, 1
      %p91 = scmp.eq.s32.totalorder %s16, 3
      %p92 = scmp.ne.s32.totalorder %s87, %s89
      %p93 = scmp.eq.s32.totalorder %s16, 0
      %p94 = por %p92, %p93
      %p95 = scmp.ne.s32.totalorder %s87, %s89
      %p96 = scmp.eq.s32.totalorder %s21, 3
      %p97 = por %p95, %p96
      %p98 = scmp.ne.s32.totalorder %s89, %s90
      %p99 = scmp.eq.s32.totalorder %s21, 0
      %p100 = por %p98, %p99
      %p101 = scmp.ne.s32.totalorder %s89, %s90
      %p102 = scmp.eq.s32.totalorder %s22, 3
      %p103 = por %p101, %p102
      %p105 = scmp.ne.s32.totalorder %s90, %s104
      %p106 = scmp.eq.s32.totalorder %s22, 0
      %p107 = por %p105, %p106
      %s108 = ssub.s32 %s23, %s35
      %s109 = ssub.s32 %s24, %s31
      %s110 = sor.u32 %s108, %s109
      %p111 = scmp.eq.s32.totalorder %s110, 0
      %s113 = sadd.s32 %s112, 1
      %s114 = scalar_select %p111, %s112, %s113
      %p117 = pneg %p111
      %p118 = scmp.eq.s32.totalorder %s16, 3
      %p119 = por %p117, %p118
      %p120 = scmp.ne.s32.totalorder %s112, %s115
      %p121 = scmp.eq.s32.totalorder %s16, 0
      %p122 = por %p120, %p121
      %p123 = scmp.ne.s32.totalorder %s112, %s115
      %p124 = scmp.eq.s32.totalorder %s21, 3
      %p125 = por %p123, %p124
      %p126 = scmp.ne.s32.totalorder %s115, %s116
      %p127 = scmp.eq.s32.totalorder %s21, 0
      %p128 = por %p126, %p127
      %p129 = scmp.ne.s32.totalorder %s115, %s116
      %p130 = scmp.eq.s32.totalorder %s22, 3
      %p131 = por %p129, %p130
      %p133 = scmp.ne.s32.totalorder %s116, %s132
      %p134 = scmp.eq.s32.totalorder %s22, 0
      %p135 = por %p133, %p134
      %p136 = scmp.le.s32.totalorder 1, %s16
      %p137 = scmp.lt.s32.totalorder %s16, 5
      %p138 = pnand %p136, %p137
      %p139 = pneg %p138
      // Predicated region
      $region9: #{resblock_forward.1} parent=5 // pred_check
        _
      $region10: #{resblock_forward.1} parent=5 // pred_check_branch
        %141 = sbr.rel (%p138) target = $region12
      $region11: #{resblock_forward.1} parent=5 // pred_region
        %s142 = ssub.s32 %s16, 1
        // Predicated region
        $region13: #{resblock_forward.1} parent=11 // pred_check
          %p143 = pneg %p79
        $region14: #{resblock_forward.1} parent=11 // pred_check_branch
          %145 = sbr.rel (%p143) target = $region16
        $region15: #{resblock_forward.1} parent=11 // pred_region
          %s147 = ssub.s32 576, 576
          %148 = vsyncadd [#allocation8], %s147
          %s149 = sshll.u32 [#allocation7], 4
          %s150 = int_to_ptr.vmem [resolvable:$true] %s149
          %155 = dma.hbm_to_vmem [thread:$0]  %s1, 576, %s150, [#allocation8], 64, 64, 4
        $region16: #{resblock_forward.1} parent=11 // pred_fallthru
          _
        // Predicated region
        $region17: #{resblock_forward.1} parent=11 // pred_check
          %p156 = pneg %p100
        $region18: #{resblock_forward.1} parent=11 // pred_check_branch
          %158 = sbr.rel (%p156) target = $region20
        $region19: #{resblock_forward.1} parent=11 // pred_region
          %s160 = ssub.s32 16, 16
          %161 = vsyncadd [#allocation8], %s160
          %s163 = sshll.u32 [#allocation9], 4
          %s164 = int_to_ptr.vmem [resolvable:$true] %s163
          %166 = dma.hbm_to_vmem [thread:$0]  %s2, 16, %s164, [#allocation8]
        $region20: #{resblock_forward.1} parent=11 // pred_fallthru
          _
      $region12: #{resblock_forward.1} parent=5 // pred_fallthru
        _
      %p167 = scmp.lt.s32.totalorder %s16, 4
      // Predicated region
      $region21: #{resblock_forward.1} parent=5 // pred_check
        %p168 = pneg %p167
      $region22: #{resblock_forward.1} parent=5 // pred_check_branch
        %170 = sbr.rel (%p168) target = $region24
      $region23: #{resblock_forward.1} parent=5 // pred_region
        // Predicated region
        $region25: #{resblock_forward.1} parent=23 // pred_check
          %p171 = pneg %p52
        $region26: #{resblock_forward.1} parent=23 // pred_check_branch
          %173 = sbr.rel (%p171) target = $region28
        $region27: #{resblock_forward.1} parent=23 // pred_region
          %s174 = sand.u32 %s42, 1
          %s175 = scalar_lea.sflag [#allocation5], %s174
          %s176 = sand.u32 %s42, 1
          %s177 = smul.addr %s176, 240
          %s178 = scalar_lea.vmem [#allocation4], %s177
          %s179 = smul.u32 %s23, 2
          %s180 = sadd.s32 %s179, %s24
          %s182 = ssub.s32 3840, 3840
          %183 = vsyncadd %s175, %s182
          %s184 = smul.addr %s180, 30
          %s185 = smul.addr %s184, 128
          %s186 = scalar_lea.hbm %s0, %s185
          %s187 = sshll.u32 %s178, 4
          %s188 = int_to_ptr.vmem [resolvable:$true] %s187
          %193 = dma.hbm_to_vmem [thread:$0]  %s186, 3840, %s188, %s175, 128, 128, 8
        $region28: #{resblock_forward.1} parent=23 // pred_fallthru
          _
      $region24: #{resblock_forward.1} parent=5 // pred_fallthru
        _
      %p194 = scmp.le.s32.totalorder 1, %s16
      %p195 = scmp.lt.s32.totalorder %s16, 5
      %p196 = pnand %p194, %p195
      %p197 = pneg %p196
      // Predicated region
      $region29: #{resblock_forward.1} parent=5 // pred_check
        _
      $region30: #{resblock_forward.1} parent=5 // pred_check_branch
        %199 = sbr.rel (%p196) target = $region32
      $region31: #{resblock_forward.1} parent=5 // pred_region
        %s200 = ssub.s32 %s16, 1
        %s201 = sand.u32 %s45, 1
        %s202 = scalar_lea.sflag [#allocation5], %s201
        %s203 = sand.u32 %s45, 1
        %s204 = smul.addr %s203, 240
        %s205 = scalar_lea.vmem [#allocation4], %s204
        // Predicated region
        $region33: #{resblock_forward.1} parent=31 // pred_check
          %p206 = pneg %p58
        $region34: #{resblock_forward.1} parent=31 // pred_check_branch
          %208 = sbr.rel (%p206) target = $region36
        $region35: #{resblock_forward.1} parent=31 // pred_region
          %209 = dma.done %s202, 3840
        $region36: #{resblock_forward.1} parent=31 // pred_fallthru
          _
        // Predicated region
        $region37: #{resblock_forward.1} parent=31 // pred_check
          %p210 = pneg %p79
        $region38: #{resblock_forward.1} parent=31 // pred_check_branch
          %212 = sbr.rel (%p210) target = $region40
        $region39: #{resblock_forward.1} parent=31 // pred_region
          %213 = dma.done [#allocation8], 576
        $region40: #{resblock_forward.1} parent=31 // pred_fallthru
          _
        // Predicated region
        $region41: #{resblock_forward.1} parent=31 // pred_check
          %p214 = pneg %p100
        $region42: #{resblock_forward.1} parent=31 // pred_check_branch
          %216 = sbr.rel (%p214) target = $region44
        $region43: #{resblock_forward.1} parent=31 // pred_region
          %217 = dma.done [#allocation8], 16
        $region44: #{resblock_forward.1} parent=31 // pred_fallthru
          _
        %s218 = sand.u32 %s45, 1
        %s219 = scalar_lea.sflag [#allocation5], %s218
        %s220 = sand.u32 %s45, 1
        %s221 = smul.addr %s220, 240
        %s222 = scalar_lea.vmem [#allocation4], %s221
        %p223 = pneg %p58
        %p224 = pneg %p55
        %p225 = pneg %p79
        %p226 = pneg %p76
        %p227 = pneg %p100
        %p228 = pneg %p97
        %p229 = pneg %p128
        %p230 = pneg %p125
        %s231 = sand.u32 %s115, 1
        %s232 = scalar_lea.sflag [#allocation6], %s231
        %s233 = sand.u32 %s115, 1
        %s234 = smul.addr %s233, 128
        %s235 = scalar_lea.vmem [#allocation10], %s234
        %s236 = smul.u32 %s25, 2
        %s237 = sadd.s32 %s236, %s26
        %s238 = smul.u32 8, %s26
        %v239 = vld [vmem:[%s205] sm:$0xff]
        %v240 = vld [vmem:[%s205 + $0x8] sm:$0xff]
        %v241 = vld [vmem:[%s205 + $0x10] sm:$0xff]
        %v242 = vld [vmem:[%s205 + $0x18] sm:$0xff]
        %v243 = vld [vmem:[%s205 + $0x20] sm:$0xff]
        %v244 = vld [vmem:[%s205 + $0x28] sm:$0xff]
        %v245 = vld [vmem:[%s205 + $0x30] sm:$0xff]
        %v246 = vld [vmem:[%s205 + $0x38] sm:$0xff]
        %v247 = vld [vmem:[%s205 + $0x40] sm:$0xff]
        %v248 = vld [vmem:[%s205 + $0x48] sm:$0xff]
        %v249 = vld [vmem:[%s205 + $0x50] sm:$0xff]
        %v250 = vld [vmem:[%s205 + $0x58] sm:$0xff]
        %v251 = vld [vmem:[%s205 + $0x60] sm:$0xff]
        %v252 = vld [vmem:[%s205 + $0x68] sm:$0xff]
        %v253 = vld [vmem:[%s205 + $0x70] sm:$0xff]
        %v254 = vld [vmem:[%s205 + $0x78] sm:$0xff]
        %v255 = vld [vmem:[%s205 + $0x80] sm:$0xff]
        %v256 = vld [vmem:[%s205 + $0x88] sm:$0xff]
        %v257 = vld [vmem:[%s205 + $0x90] sm:$0xff]
        %v258 = vld [vmem:[%s205 + $0x98] sm:$0xff]
        %v259 = vld [vmem:[%s205 + $0xa0] sm:$0xff]
        %v260 = vld [vmem:[%s205 + $0xa8] sm:$0xff]
        %v261 = vld [vmem:[%s205 + $0xb0] sm:$0xff]
        %v262 = vld [vmem:[%s205 + $0xb8] sm:$0xff]
        %v263 = vld [vmem:[#allocation7] sm:$0xf]
        %vm264 = vcmask 31744
        %v266 = vsel %vm264, %v239, 0
        %v269 = vsel %vm264, %v240, 0
        %v272 = vsel %vm264, %v241, 0
        %v275 = vsel %vm264, %v242, 0
        %v278 = vsel %vm264, %v243, 0
        %v281 = vsel %vm264, %v244, 0
        %v284 = vsel %vm264, %v245, 0
        %v287 = vsel %vm264, %v246, 0
        %v290 = vsel %vm264, %v247, 0
        %v293 = vsel %vm264, %v248, 0
        %v296 = vsel %vm264, %v249, 0
        %v299 = vsel %vm264, %v250, 0
        %v302 = vsel %vm264, %v251, 0
        %v305 = vsel %vm264, %v252, 0
        %v308 = vsel %vm264, %v253, 0
        %v311 = vsel %vm264, %v254, 0
        %v314 = vsel %vm264, %v255, 0
        %v317 = vsel %vm264, %v256, 0
        %v320 = vsel %vm264, %v257, 0
        %v323 = vsel %vm264, %v258, 0
        %v326 = vsel %vm264, %v259, 0
        %v329 = vsel %vm264, %v260, 0
        %v332 = vsel %vm264, %v261, 0
        %v335 = vsel %vm264, %v262, 0
        %vm337 = vcmask 1043456
        %v339 = vsel %vm337, %v263, 0
        %341 = vmatprep.subr.mxu0 0.0
        %342 = vmatpush1.msra.mxu0 %v339
        %343 = vmatprep.subr.mxu0 0.0
        %344 = vmatpush1.msra.mxu0 0.0
        %345 = vmatprep.subr.mxu0 0.0
        %346 = vmatpush1.msra.mxu0 0.0
        %347 = vmatprep.subr.mxu0 0.0
        %348 = vmatpush1.msra.mxu0 0.0
        %349 = vmatprep.subr.mxu0 0.0
        %350 = vmatpush1.msra.mxu0 0.0
        %351 = vmatprep.subr.mxu0 0.0
        %352 = vmatpush1.msra.mxu0 0.0
        %353 = vmatprep.subr.mxu0 0.0
        %354 = vmatpush1.msra.mxu0 0.0
        %355 = vmatprep.subr.mxu0 0.0
        %356 = vmatpush1.msra.mxu0 0.0
        %357 = vmatprep.subr.mxu0 0.0
        %358 = vmatpush1.msra.mxu0 0.0
        %359 = vmatprep.subr.mxu0 0.0
        %360 = vmatpush1.msra.mxu0 0.0
        %361 = vmatprep.subr.mxu0 0.0
        %362 = vmatpush1.msra.mxu0 0.0
        %363 = vmatprep.subr.mxu0 0.0
        %364 = vmatpush1.msra.mxu0 0.0
        %365 = vmatprep.subr.mxu0 0.0
        %366 = vmatpush1.msra.mxu0 0.0
        %367 = vmatprep.subr.mxu0 0.0
        %368 = vmatpush1.msra.mxu0 0.0
        %369 = vmatprep.subr.mxu0 0.0
        %370 = vmatpush1.msra.mxu0 0.0
        %371 = vmatprep.subr.mxu0 0.0
        %372 = vmatpush1.msra.mxu0 0.0
        %373 = vmatprep.subr.mxu0 0.0
        %374 = vmatpush1.msra.mxu0 0.0
        %375 = vmatprep.subr.mxu0 0.0
        %376 = vmatpush1.msra.mxu0 0.0
        %377 = vmatprep.subr.mxu0 0.0
        %378 = vmatpush1.msra.mxu0 0.0
        %379 = vmatprep.subr.mxu0 0.0
        %380 = vmatpush1.msra.mxu0 0.0
        %381 = vmatprep.subr.mxu0 0.0
        %382 = vmatpush1.msra.mxu0 0.0
        %383 = vmatprep.subr.mxu0 0.0
        %384 = vmatpush1.msra.mxu0 0.0
        %385 = vmatprep.subr.mxu0 0.0
        %386 = vmatpush1.msra.mxu0 0.0
        %387 = vmatprep.subr.mxu0 0.0
        %388 = vmatpush1.msra.mxu0 0.0
        %389 = vmatprep.subr.mxu0 0.0
        %390 = vmatpush1.msra.mxu0 0.0
        %391 = vmatprep.subr.mxu0 0.0
        %392 = vmatpush1.msra.mxu0 0.0
        %393 = vmatprep.subr.mxu0 0.0
        %394 = vmatpush1.msra.mxu0 0.0
        %395 = vmatprep.subr.mxu0 0.0
        %396 = vmatpush1.msra.mxu0 0.0
        %397 = vmatprep.subr.mxu0 0.0
        %398 = vmatpush1.msra.mxu0 0.0
        %399 = vmatprep.subr.mxu0 0.0
        %400 = vmatpush1.msra.mxu0 0.0
        %401 = vmatprep.subr.mxu0 0.0
        %402 = vmatpush1.msra.mxu0 0.0
        %403 = vmatprep.subr.mxu0 0.0
        %404 = vmatpush1.msra.mxu0 0.0
        %405 = vmatprep.mubr.f32.mxu0 0.0
        %406 = vmatmul.mubr.f32.gmra.mrb[0].mxu0 %v266
        %v407 = vpop.f32.mrb[0].mxu0
        %v408 = vadd.f32 0.0, %v407
        %v409 = vpop.f32.mrb[0].mxu0
        %410 = vmatprep.mubr.f32.mxu0 0.0
        %411 = vmatmul.mubr.f32.gmra.mrb[0].mxu0 %v269
        %v412 = vpop.f32.mrb[0].mxu0
        %v413 = vadd.f32 0.0, %v412
        %v414 = vpop.f32.mrb[0].mxu0
        %415 = vmatprep.mubr.f32.mxu0 0.0
        %416 = vmatmul.mubr.f32.gmra.mrb[0].mxu0 %v272
        %v417 = vpop.f32.mrb[0].mxu0
        %v418 = vadd.f32 0.0, %v417
        %v419 = vpop.f32.mrb[0].mxu0
        %420 = vmatprep.mubr.f32.mxu0 0.0
        %421 = vmatmul.mubr.f32.gmra.mrb[0].mxu0 %v275
        %v422 = vpop.f32.mrb[0].mxu0
        %v423 = vadd.f32 0.0, %v422
        %v424 = vpop.f32.mrb[0].mxu0
        %425 = vmatprep.mubr.f32.mxu0 0.0
        %426 = vmatmul.mubr.f32.gmra.mrb[0].mxu0 %v278
        %v427 = vpop.f32.mrb[0].mxu0
        %v428 = vadd.f32 0.0, %v427
        %v429 = vpop.f32.mrb[0].mxu0
        %430 = vmatprep.mubr.f32.mxu0 0.0
        %431 = vmatmul.mubr.f32.gmra.mrb[0].mxu0 %v281
        %v432 = vpop.f32.mrb[0].mxu0
        %v433 = vadd.f32 0.0, %v432
        %v434 = vpop.f32.mrb[0].mxu0
        %435 = vmatprep.mubr.f32.mxu0 0.0
        %436 = vmatmul.mubr.f32.gmra.mrb[0].mxu0 %v284
        %v437 = vpop.f32.mrb[0].mxu0
        %v438 = vadd.f32 0.0, %v437
        %v439 = vpop.f32.mrb[0].mxu0
        %440 = vmatprep.mubr.f32.mxu0 0.0
        %441 = vmatmul.mubr.f32.gmra.mrb[0].mxu0 %v287
        %v442 = vpop.f32.mrb[0].mxu0
        %v443 = vadd.f32 0.0, %v442
        %v444 = vpop.f32.mrb[0].mxu0
        %445 = vmatprep.mubr.f32.mxu0 0.0
        %446 = vmatmul.mubr.f32.gmra.mrb[0].mxu0 %v290
        %v447 = vpop.f32.mrb[0].mxu0
        %v448 = vadd.f32 0.0, %v447
        %v449 = vpop.f32.mrb[0].mxu0
        %450 = vmatprep.mubr.f32.mxu0 0.0
        %451 = vmatmul.mubr.f32.gmra.mrb[0].mxu0 %v293
        %v452 = vpop.f32.mrb[0].mxu0
        %v453 = vadd.f32 0.0, %v452
        %v454 = vpop.f32.mrb[0].mxu0
        %455 = vmatprep.mubr.f32.mxu0 0.0
        %456 = vmatmul.mubr.f32.gmra.mrb[0].mxu0 %v296
        %v457 = vpop.f32.mrb[0].mxu0
        %v458 = vadd.f32 0.0, %v457
        %v459 = vpop.f32.mrb[0].mxu0
        %460 = vmatprep.mubr.f32.mxu0 0.0
        %461 = vmatmul.mubr.f32.gmra.mrb[0].mxu0 %v299
        %v462 = vpop.f32.mrb[0].mxu0
        %v463 = vadd.f32 0.0, %v462
        %v464 = vpop.f32.mrb[0].mxu0
        %465 = vmatprep.mubr.f32.mxu0 0.0
        %466 = vmatmul.mubr.f32.gmra.mrb[0].mxu0 %v302
        %v467 = vpop.f32.mrb[0].mxu0
        %v468 = vadd.f32 0.0, %v467
        %v469 = vpop.f32.mrb[0].mxu0
        %470 = vmatprep.mubr.f32.mxu0 0.0
        %471 = vmatmul.mubr.f32.gmra.mrb[0].mxu0 %v305
        %v472 = vpop.f32.mrb[0].mxu0
        %v473 = vadd.f32 0.0, %v472
        %v474 = vpop.f32.mrb[0].mxu0
        %475 = vmatprep.mubr.f32.mxu0 0.0
        %476 = vmatmul.mubr.f32.gmra.mrb[0].mxu0 %v308
        %v477 = vpop.f32.mrb[0].mxu0
        %v478 = vadd.f32 0.0, %v477
        %v479 = vpop.f32.mrb[0].mxu0
        %480 = vmatprep.mubr.f32.mxu0 0.0
        %481 = vmatmul.mubr.f32.gmra.mrb[0].mxu0 %v311
        %v482 = vpop.f32.mrb[0].mxu0
        %v483 = vadd.f32 0.0, %v482
        %v484 = vpop.f32.mrb[0].mxu0
        %485 = vmatprep.mubr.f32.mxu0 0.0
        %486 = vmatmul.mubr.f32.gmra.mrb[0].mxu0 %v314
        %v487 = vpop.f32.mrb[0].mxu0
        %v488 = vadd.f32 0.0, %v487
        %v489 = vpop.f32.mrb[0].mxu0
        %490 = vmatprep.mubr.f32.mxu0 0.0
        %491 = vmatmul.mubr.f32.gmra.mrb[0].mxu0 %v317
        %v492 = vpop.f32.mrb[0].mxu0
        %v493 = vadd.f32 0.0, %v492
        %v494 = vpop.f32.mrb[0].mxu0
        %495 = vmatprep.mubr.f32.mxu0 0.0
        %496 = vmatmul.mubr.f32.gmra.mrb[0].mxu0 %v320
        %v497 = vpop.f32.mrb[0].mxu0
        %v498 = vadd.f32 0.0, %v497
        %v499 = vpop.f32.mrb[0].mxu0
        %500 = vmatprep.mubr.f32.mxu0 0.0
        %501 = vmatmul.mubr.f32.gmra.mrb[0].mxu0 %v323
        %v502 = vpop.f32.mrb[0].mxu0
        %v503 = vadd.f32 0.0, %v502
        %v504 = vpop.f32.mrb[0].mxu0
        %505 = vmatprep.mubr.f32.mxu0 0.0
        %506 = vmatmul.mubr.f32.gmra.mrb[0].mxu0 %v326
        %v507 = vpop.f32.mrb[0].mxu0
        %v508 = vadd.f32 0.0, %v507
        %v509 = vpop.f32.mrb[0].mxu0
        %510 = vmatprep.mubr.f32.mxu0 0.0
        %511 = vmatmul.mubr.f32.gmra.mrb[0].mxu0 %v329
        %v512 = vpop.f32.mrb[0].mxu0
        %v513 = vadd.f32 0.0, %v512
        %v514 = vpop.f32.mrb[0].mxu0
        %515 = vmatprep.mubr.f32.mxu0 0.0
        %516 = vmatmul.mubr.f32.gmra.mrb[0].mxu0 %v332
        %v517 = vpop.f32.mrb[0].mxu0
        %v518 = vadd.f32 0.0, %v517
        %v519 = vpop.f32.mrb[0].mxu0
        %520 = vmatprep.mubr.f32.mxu0 0.0
        %521 = vmatmul.mubr.f32.gmra.mrb[0].mxu0 %v335
        %v522 = vpop.f32.mrb[0].mxu0
        %v523 = vadd.f32 0.0, %v522
        %v524 = vpop.f32.mrb[0].mxu0
        %525 = vdwg.mxu0
        %526 = vst.msk [vmem:[#allocation2] sm:$0xff] %vm264, %v408
        %527 = vst.msk [vmem:[#allocation2 + $0x8] sm:$0xff] %vm264, %v413
        %528 = vst.msk [vmem:[#allocation2 + $0x10] sm:$0xff] %vm264, %v418
        %529 = vst.msk [vmem:[#allocation2 + $0x18] sm:$0xff] %vm264, %v423
        %530 = vst.msk [vmem:[#allocation2 + $0x20] sm:$0xff] %vm264, %v428
        %531 = vst.msk [vmem:[#allocation2 + $0x28] sm:$0xff] %vm264, %v433
        %532 = vst.msk [vmem:[#allocation2 + $0x30] sm:$0xff] %vm264, %v438
        %533 = vst.msk [vmem:[#allocation2 + $0x38] sm:$0xff] %vm264, %v443
        %534 = vst.msk [vmem:[#allocation2 + $0x40] sm:$0xff] %vm264, %v448
        %535 = vst.msk [vmem:[#allocation2 + $0x48] sm:$0xff] %vm264, %v453
        %536 = vst.msk [vmem:[#allocation2 + $0x50] sm:$0xff] %vm264, %v458
        %537 = vst.msk [vmem:[#allocation2 + $0x58] sm:$0xff] %vm264, %v463
        %538 = vst.msk [vmem:[#allocation2 + $0x60] sm:$0xff] %vm264, %v468
        %539 = vst.msk [vmem:[#allocation2 + $0x68] sm:$0xff] %vm264, %v473
        %540 = vst.msk [vmem:[#allocation2 + $0x70] sm:$0xff] %vm264, %v478
        %541 = vst.msk [vmem:[#allocation2 + $0x78] sm:$0xff] %vm264, %v483
        %542 = vst.msk [vmem:[#allocation2 + $0x80] sm:$0xff] %vm264, %v488
        %543 = vst.msk [vmem:[#allocation2 + $0x88] sm:$0xff] %vm264, %v493
        %544 = vst.msk [vmem:[#allocation2 + $0x90] sm:$0xff] %vm264, %v498
        %545 = vst.msk [vmem:[#allocation2 + $0x98] sm:$0xff] %vm264, %v503
        %546 = vst.msk [vmem:[#allocation2 + $0xa0] sm:$0xff] %vm264, %v508
        %547 = vst.msk [vmem:[#allocation2 + $0xa8] sm:$0xff] %vm264, %v513
        %548 = vst.msk [vmem:[#allocation2 + $0xb0] sm:$0xff] %vm264, %v518
        %549 = vst.msk [vmem:[#allocation2 + $0xb8] sm:$0xff] %vm264, %v523
        %s550 = scalar_lea.vmem [#allocation7], 4
        %v551 = vld [vmem:[%s550] sm:$0xf]
        %v553 = vsel %vm337, %v551, 0
        %555 = vmatprep.subr.mxu0 0.0
        %556 = vmatpush1.msra.mxu0 %v553
        %557 = vmatprep.subr.mxu0 0.0
        %558 = vmatpush1.msra.mxu0 0.0
        %559 = vmatprep.subr.mxu0 0.0
        %560 = vmatpush1.msra.mxu0 0.0
        %561 = vmatprep.subr.mxu0 0.0
        %562 = vmatpush1.msra.mxu0 0.0
        %563 = vmatprep.subr.mxu0 0.0
        %564 = vmatpush1.msra.mxu0 0.0
        %565 = vmatprep.subr.mxu0 0.0
        %566 = vmatpush1.msra.mxu0 0.0
        %567 = vmatprep.subr.mxu0 0.0
        %568 = vmatpush1.msra.mxu0 0.0
        %569 = vmatprep.subr.mxu0 0.0
        %570 = vmatpush1.msra.mxu0 0.0
        %571 = vmatprep.subr.mxu0 0.0
        %572 = vmatpush1.msra.mxu0 0.0
        %573 = vmatprep.subr.mxu0 0.0
        %574 = vmatpush1.msra.mxu0 0.0
        %575 = vmatprep.subr.mxu0 0.0
        %576 = vmatpush1.msra.mxu0 0.0
        %577 = vmatprep.subr.mxu0 0.0
        %578 = vmatpush1.msra.mxu0 0.0
        %579 = vmatprep.subr.mxu0 0.0
        %580 = vmatpush1.msra.mxu0 0.0
        %581 = vmatprep.subr.mxu0 0.0
        %582 = vmatpush1.msra.mxu0 0.0
        %583 = vmatprep.subr.mxu0 0.0
        %584 = vmatpush1.msra.mxu0 0.0
        %585 = vmatprep.subr.mxu0 0.0
        %586 = vmatpush1.msra.mxu0 0.0
        %587 = vmatprep.subr.mxu0 0.0
        %588 = vmatpush1.msra.mxu0 0.0
        %589 = vmatprep.subr.mxu0 0.0
        %590 = vmatpush1.msra.mxu0 0.0
        %591 = vmatprep.subr.mxu0 0.0
        %592 = vmatpush1.msra.mxu0 0.0
        %593 = vmatprep.subr.mxu0 0.0
        %594 = vmatpush1.msra.mxu0 0.0
        %595 = vmatprep.subr.mxu0 0.0
        %596 = vmatpush1.msra.mxu0 0.0
        %597 = vmatprep.subr.mxu0 0.0
        %598 = vmatpush1.msra.mxu0 0.0
        %599 = vmatprep.subr.mxu0 0.0
        %600 = vmatpush1.msra.mxu0 0.0
        %601 = vmatprep.subr.mxu0 0.0
        %602 = vmatpush1.msra.mxu0 0.0
        %603 = vmatprep.subr.mxu0 0.0
        %604 = vmatpush1.msra.mxu0 0.0
        %605 = vmatprep.subr.mxu0 0.0
        %606 = vmatpush1.msra.mxu0 0.0
        %607 = vmatprep.subr.mxu0 0.0
        %608 = vmatpush1.msra.mxu0 0.0
        %609 = vmatprep.subr.mxu0 0.0
        %610 = vmatpush1.msra.mxu0 0.0
        %611 = vmatprep.subr.mxu0 0.0
        %612 = vmatpush1.msra.mxu0 0.0
        %613 = vmatprep.subr.mxu0 0.0
        %614 = vmatpush1.msra.mxu0 0.0
        %615 = vmatprep.subr.mxu0 0.0
        %616 = vmatpush1.msra.mxu0 0.0
        %617 = vmatprep.subr.mxu0 0.0
        %618 = vmatpush1.msra.mxu0 0.0
        %619 = vmatprep.mubr.f32.mxu0 0.0
        %620 = vmatmul.mubr.f32.gmra.mrb[0].mxu0 %v266
        %v621 = vpop.f32.mrb[0].mxu0
        %v622 = vadd.f32 0.0, %v621
        %v623 = vpop.f32.mrb[0].mxu0
        %624 = vmatprep.mubr.f32.mxu0 0.0
        %625 = vmatmul.mubr.f32.gmra.mrb[0].mxu0 %v269
        %v626 = vpop.f32.mrb[0].mxu0
        %v627 = vadd.f32 0.0, %v626
        %v628 = vpop.f32.mrb[0].mxu0
        %629 = vmatprep.mubr.f32.mxu0 0.0
        %630 = vmatmul.mubr.f32.gmra.mrb[0].mxu0 %v272
        %v631 = vpop.f32.mrb[0].mxu0
        %v632 = vadd.f32 0.0, %v631
        %v633 = vpop.f32.mrb[0].mxu0
        %634 = vmatprep.mubr.f32.mxu0 0.0
        %635 = vmatmul.mubr.f32.gmra.mrb[0].mxu0 %v275
        %v636 = vpop.f32.mrb[0].mxu0
        %v637 = vadd.f32 0.0, %v636
        %v638 = vpop.f32.mrb[0].mxu0
        %639 = vmatprep.mubr.f32.mxu0 0.0
        %640 = vmatmul.mubr.f32.gmra.mrb[0].mxu0 %v278
        %v641 = vpop.f32.mrb[0].mxu0
        %v642 = vadd.f32 0.0, %v641
        %v643 = vpop.f32.mrb[0].mxu0
        %644 = vmatprep.mubr.f32.mxu0 0.0
        %645 = vmatmul.mubr.f32.gmra.mrb[0].mxu0 %v281
        %v646 = vpop.f32.mrb[0].mxu0
        %v647 = vadd.f32 0.0, %v646
        %v648 = vpop.f32.mrb[0].mxu0
        %649 = vmatprep.mubr.f32.mxu0 0.0
        %650 = vmatmul.mubr.f32.gmra.mrb[0].mxu0 %v284
        %v651 = vpop.f32.mrb[0].mxu0
        %v652 = vadd.f32 0.0, %v651
        %v653 = vpop.f32.mrb[0].mxu0
        %654 = vmatprep.mubr.f32.mxu0 0.0
        %655 = vmatmul.mubr.f32.gmra.mrb[0].mxu0 %v287
        %v656 = vpop.f32.mrb[0].mxu0
        %v657 = vadd.f32 0.0, %v656
        %v658 = vpop.f32.mrb[0].mxu0
        %659 = vmatprep.mubr.f32.mxu0 0.0
        %660 = vmatmul.mubr.f32.gmra.mrb[0].mxu0 %v290
        %v661 = vpop.f32.mrb[0].mxu0
        %v662 = vadd.f32 0.0, %v661
        %v663 = vpop.f32.mrb[0].mxu0
        %664 = vmatprep.mubr.f32.mxu0 0.0
        %665 = vmatmul.mubr.f32.gmra.mrb[0].mxu0 %v293
        %v666 = vpop.f32.mrb[0].mxu0
        %v667 = vadd.f32 0.0, %v666
        %v668 = vpop.f32.mrb[0].mxu0
        %669 = vmatprep.mubr.f32.mxu0 0.0
        %670 = vmatmul.mubr.f32.gmra.mrb[0].mxu0 %v296
        %v671 = vpop.f32.mrb[0].mxu0
        %v672 = vadd.f32 0.0, %v671
        %v673 = vpop.f32.mrb[0].mxu0
        %674 = vmatprep.mubr.f32.mxu0 0.0
        %675 = vmatmul.mubr.f32.gmra.mrb[0].mxu0 %v299
        %v676 = vpop.f32.mrb[0].mxu0
        %v677 = vadd.f32 0.0, %v676
        %v678 = vpop.f32.mrb[0].mxu0
        %679 = vmatprep.mubr.f32.mxu0 0.0
        %680 = vmatmul.mubr.f32.gmra.mrb[0].mxu0 %v302
        %v681 = vpop.f32.mrb[0].mxu0
        %v682 = vadd.f32 0.0, %v681
        %v683 = vpop.f32.mrb[0].mxu0
        %684 = vmatprep.mubr.f32.mxu0 0.0
        %685 = vmatmul.mubr.f32.gmra.mrb[0].mxu0 %v305
        %v686 = vpop.f32.mrb[0].mxu0
        %v687 = vadd.f32 0.0, %v686
        %v688 = vpop.f32.mrb[0].mxu0
        %689 = vmatprep.mubr.f32.mxu0 0.0
        %690 = vmatmul.mubr.f32.gmra.mrb[0].mxu0 %v308
        %v691 = vpop.f32.mrb[0].mxu0
        %v692 = vadd.f32 0.0, %v691
        %v693 = vpop.f32.mrb[0].mxu0
        %694 = vmatprep.mubr.f32.mxu0 0.0
        %695 = vmatmul.mubr.f32.gmra.mrb[0].mxu0 %v311
        %v696 = vpop.f32.mrb[0].mxu0
        %v697 = vadd.f32 0.0, %v696
        %v698 = vpop.f32.mrb[0].mxu0
        %699 = vmatprep.mubr.f32.mxu0 0.0
        %700 = vmatmul.mubr.f32.gmra.mrb[0].mxu0 %v314
        %v701 = vpop.f32.mrb[0].mxu0
        %v702 = vadd.f32 0.0, %v701
        %v703 = vpop.f32.mrb[0].mxu0
        %704 = vmatprep.mubr.f32.mxu0 0.0
        %705 = vmatmul.mubr.f32.gmra.mrb[0].mxu0 %v317
        %v706 = vpop.f32.mrb[0].mxu0
        %v707 = vadd.f32 0.0, %v706
        %v708 = vpop.f32.mrb[0].mxu0
        %709 = vmatprep.mubr.f32.mxu0 0.0
        %710 = vmatmul.mubr.f32.gmra.mrb[0].mxu0 %v320
        %v711 = vpop.f32.mrb[0].mxu0
        %v712 = vadd.f32 0.0, %v711
        %v713 = vpop.f32.mrb[0].mxu0
        %714 = vmatprep.mubr.f32.mxu0 0.0
        %715 = vmatmul.mubr.f32.gmra.mrb[0].mxu0 %v323
        %v716 = vpop.f32.mrb[0].mxu0
        %v717 = vadd.f32 0.0, %v716
        %v718 = vpop.f32.mrb[0].mxu0
        %719 = vmatprep.mubr.f32.mxu0 0.0
        %720 = vmatmul.mubr.f32.gmra.mrb[0].mxu0 %v326
        %v721 = vpop.f32.mrb[0].mxu0
        %v722 = vadd.f32 0.0, %v721
        %v723 = vpop.f32.mrb[0].mxu0
        %724 = vmatprep.mubr.f32.mxu0 0.0
        %725 = vmatmul.mubr.f32.gmra.mrb[0].mxu0 %v329
        %v726 = vpop.f32.mrb[0].mxu0
        %v727 = vadd.f32 0.0, %v726
        %v728 = vpop.f32.mrb[0].mxu0
        %729 = vmatprep.mubr.f32.mxu0 0.0
        %730 = vmatmul.mubr.f32.gmra.mrb[0].mxu0 %v332
        %v731 = vpop.f32.mrb[0].mxu0
        %v732 = vadd.f32 0.0, %v731
        %v733 = vpop.f32.mrb[0].mxu0
        %734 = vmatprep.mubr.f32.mxu0 0.0
        %735 = vmatmul.mubr.f32.gmra.mrb[0].mxu0 %v335
        %v736 = vpop.f32.mrb[0].mxu0
        %v737 = vadd.f32 0.0, %v736
        %v738 = vpop.f32.mrb[0].mxu0
        %739 = vdwg.mxu0
        %s740 = scalar_lea.vmem [#allocation2], 192
        %741 = vst.msk [vmem:[%s740] sm:$0xff] %vm264, %v622
        %742 = vst.msk [vmem:[%s740 + $0x8] sm:$0xff] %vm264, %v627
        %743 = vst.msk [vmem:[%s740 + $0x10] sm:$0xff] %vm264, %v632
        %744 = vst.msk [vmem:[%s740 + $0x18] sm:$0xff] %vm264, %v637
        %745 = vst.msk [vmem:[%s740 + $0x20] sm:$0xff] %vm264, %v642
        %746 = vst.msk [vmem:[%s740 + $0x28] sm:$0xff] %vm264, %v647
        %747 = vst.msk [vmem:[%s740 + $0x30] sm:$0xff] %vm264, %v652
        %748 = vst.msk [vmem:[%s740 + $0x38] sm:$0xff] %vm264, %v657
        %749 = vst.msk [vmem:[%s740 + $0x40] sm:$0xff] %vm264, %v662
        %750 = vst.msk [vmem:[%s740 + $0x48] sm:$0xff] %vm264, %v667
        %751 = vst.msk [vmem:[%s740 + $0x50] sm:$0xff] %vm264, %v672
        %752 = vst.msk [vmem:[%s740 + $0x58] sm:$0xff] %vm264, %v677
        %753 = vst.msk [vmem:[%s740 + $0x60] sm:$0xff] %vm264, %v682
        %754 = vst.msk [vmem:[%s740 + $0x68] sm:$0xff] %vm264, %v687
        %755 = vst.msk [vmem:[%s740 + $0x70] sm:$0xff] %vm264, %v692
        %756 = vst.msk [vmem:[%s740 + $0x78] sm:$0xff] %vm264, %v697
        %757 = vst.msk [vmem:[%s740 + $0x80] sm:$0xff] %vm264, %v702
        %758 = vst.msk [vmem:[%s740 + $0x88] sm:$0xff] %vm264, %v707
        %759 = vst.msk [vmem:[%s740 + $0x90] sm:$0xff] %vm264, %v712
        %760 = vst.msk [vmem:[%s740 + $0x98] sm:$0xff] %vm264, %v717
        %761 = vst.msk [vmem:[%s740 + $0xa0] sm:$0xff] %vm264, %v722
        %762 = vst.msk [vmem:[%s740 + $0xa8] sm:$0xff] %vm264, %v727
        %763 = vst.msk [vmem:[%s740 + $0xb0] sm:$0xff] %vm264, %v732
        %764 = vst.msk [vmem:[%s740 + $0xb8] sm:$0xff] %vm264, %v737
        %s765 = scalar_lea.vmem [#allocation7], 8
        %v766 = vld [vmem:[%s765] sm:$0xf]
        %v768 = vsel %vm337, %v766, 0
        %770 = vmatprep.subr.mxu0 0.0
        %771 = vmatpush1.msra.mxu0 %v768
        %772 = vmatprep.subr.mxu0 0.0
        %773 = vmatpush1.msra.mxu0 0.0
        %774 = vmatprep.subr.mxu0 0.0
        %775 = vmatpush1.msra.mxu0 0.0
        %776 = vmatprep.subr.mxu0 0.0
        %777 = vmatpush1.msra.mxu0 0.0
        %778 = vmatprep.subr.mxu0 0.0
        %779 = vmatpush1.msra.mxu0 0.0
        %780 = vmatprep.subr.mxu0 0.0
        %781 = vmatpush1.msra.mxu0 0.0
        %782 = vmatprep.subr.mxu0 0.0
        %783 = vmatpush1.msra.mxu0 0.0
        %784 = vmatprep.subr.mxu0 0.0
        %785 = vmatpush1.msra.mxu0 0.0
        %786 = vmatprep.subr.mxu0 0.0
        %787 = vmatpush1.msra.mxu0 0.0
        %788 = vmatprep.subr.mxu0 0.0
        %789 = vmatpush1.msra.mxu0 0.0
        %790 = vmatprep.subr.mxu0 0.0
        %791 = vmatpush1.msra.mxu0 0.0
        %792 = vmatprep.subr.mxu0 0.0
        %793 = vmatpush1.msra.mxu0 0.0
        %794 = vmatprep.subr.mxu0 0.0
        %795 = vmatpush1.msra.mxu0 0.0
        %796 = vmatprep.subr.mxu0 0.0
        %797 = vmatpush1.msra.mxu0 0.0
        %798 = vmatprep.subr.mxu0 0.0
        %799 = vmatpush1.msra.mxu0 0.0
        %800 = vmatprep.subr.mxu0 0.0
        %801 = vmatpush1.msra.mxu0 0.0
        %802 = vmatprep.subr.mxu0 0.0
        %803 = vmatpush1.msra.mxu0 0.0
        %804 = vmatprep.subr.mxu0 0.0
        %805 = vmatpush1.msra.mxu0 0.0
        %806 = vmatprep.subr.mxu0 0.0
        %807 = vmatpush1.msra.mxu0 0.0
        %808 = vmatprep.subr.mxu0 0.0
        %809 = vmatpush1.msra.mxu0 0.0
        %810 = vmatprep.subr.mxu0 0.0
        %811 = vmatpush1.msra.mxu0 0.0
        %812 = vmatprep.subr.mxu0 0.0
        %813 = vmatpush1.msra.mxu0 0.0
        %814 = vmatprep.subr.mxu0 0.0
        %815 = vmatpush1.msra.mxu0 0.0
        %816 = vmatprep.subr.mxu0 0.0
        %817 = vmatpush1.msra.mxu0 0.0
        %818 = vmatprep.subr.mxu0 0.0
        %819 = vmatpush1.msra.mxu0 0.0
        %820 = vmatprep.subr.mxu0 0.0
        %821 = vmatpush1.msra.mxu0 0.0
        %822 = vmatprep.subr.mxu0 0.0
        %823 = vmatpush1.msra.mxu0 0.0
        %824 = vmatprep.subr.mxu0 0.0
        %825 = vmatpush1.msra.mxu0 0.0
        %826 = vmatprep.subr.mxu0 0.0
        %827 = vmatpush1.msra.mxu0 0.0
        %828 = vmatprep.subr.mxu0 0.0
        %829 = vmatpush1.msra.mxu0 0.0
        %830 = vmatprep.subr.mxu0 0.0
        %831 = vmatpush1.msra.mxu0 0.0
        %832 = vmatprep.subr.mxu0 0.0
        %833 = vmatpush1.msra.mxu0 0.0
        %834 = vmatprep.mubr.f32.mxu0 0.0
        %835 = vmatmul.mubr.f32.gmra.mrb[0].mxu0 %v266
        %v836 = vpop.f32.mrb[0].mxu0
        %v837 = vadd.f32 0.0, %v836
        %v838 = vpop.f32.mrb[0].mxu0
        %839 = vmatprep.mubr.f32.mxu0 0.0
        %840 = vmatmul.mubr.f32.gmra.mrb[0].mxu0 %v269
        %v841 = vpop.f32.mrb[0].mxu0
        %v842 = vadd.f32 0.0, %v841
        %v843 = vpop.f32.mrb[0].mxu0
        %844 = vmatprep.mubr.f32.mxu0 0.0
        %845 = vmatmul.mubr.f32.gmra.mrb[0].mxu0 %v272
        %v846 = vpop.f32.mrb[0].mxu0
        %v847 = vadd.f32 0.0, %v846
        %v848 = vpop.f32.mrb[0].mxu0
        %849 = vmatprep.mubr.f32.mxu0 0.0
        %850 = vmatmul.mubr.f32.gmra.mrb[0].mxu0 %v275
        %v851 = vpop.f32.mrb[0].mxu0
        %v852 = vadd.f32 0.0, %v851
        %v853 = vpop.f32.mrb[0].mxu0
        %854 = vmatprep.mubr.f32.mxu0 0.0
        %855 = vmatmul.mubr.f32.gmra.mrb[0].mxu0 %v278
        %v856 = vpop.f32.mrb[0].mxu0
        %v857 = vadd.f32 0.0, %v856
        %v858 = vpop.f32.mrb[0].mxu0
        %859 = vmatprep.mubr.f32.mxu0 0.0
        %860 = vmatmul.mubr.f32.gmra.mrb[0].mxu0 %v281
        %v861 = vpop.f32.mrb[0].mxu0
        %v862 = vadd.f32 0.0, %v861
        %v863 = vpop.f32.mrb[0].mxu0
        %864 = vmatprep.mubr.f32.mxu0 0.0
        %865 = vmatmul.mubr.f32.gmra.mrb[0].mxu0 %v284
        %v866 = vpop.f32.mrb[0].mxu0
        %v867 = vadd.f32 0.0, %v866
        %v868 = vpop.f32.mrb[0].mxu0
        %869 = vmatprep.mubr.f32.mxu0 0.0
        %870 = vmatmul.mubr.f32.gmra.mrb[0].mxu0 %v287
        %v871 = vpop.f32.mrb[0].mxu0
        %v872 = vadd.f32 0.0, %v871
        %v873 = vpop.f32.mrb[0].mxu0
        %874 = vmatprep.mubr.f32.mxu0 0.0
        %875 = vmatmul.mubr.f32.gmra.mrb[0].mxu0 %v290
        %v876 = vpop.f32.mrb[0].mxu0
        %v877 = vadd.f32 0.0, %v876
        %v878 = vpop.f32.mrb[0].mxu0
        %879 = vmatprep.mubr.f32.mxu0 0.0
        %880 = vmatmul.mubr.f32.gmra.mrb[0].mxu0 %v293
        %v881 = vpop.f32.mrb[0].mxu0
        %v882 = vadd.f32 0.0, %v881
        %v883 = vpop.f32.mrb[0].mxu0
        %884 = vmatprep.mubr.f32.mxu0 0.0
        %885 = vmatmul.mubr.f32.gmra.mrb[0].mxu0 %v296
        %v886 = vpop.f32.mrb[0].mxu0
        %v887 = vadd.f32 0.0, %v886
        %v888 = vpop.f32.mrb[0].mxu0
        %889 = vmatprep.mubr.f32.mxu0 0.0
        %890 = vmatmul.mubr.f32.gmra.mrb[0].mxu0 %v299
        %v891 = vpop.f32.mrb[0].mxu0
        %v892 = vadd.f32 0.0, %v891
        %v893 = vpop.f32.mrb[0].mxu0
        %894 = vmatprep.mubr.f32.mxu0 0.0
        %895 = vmatmul.mubr.f32.gmra.mrb[0].mxu0 %v302
        %v896 = vpop.f32.mrb[0].mxu0
        %v897 = vadd.f32 0.0, %v896
        %v898 = vpop.f32.mrb[0].mxu0
        %899 = vmatprep.mubr.f32.mxu0 0.0
        %900 = vmatmul.mubr.f32.gmra.mrb[0].mxu0 %v305
        %v901 = vpop.f32.mrb[0].mxu0
        %v902 = vadd.f32 0.0, %v901
        %v903 = vpop.f32.mrb[0].mxu0
        %904 = vmatprep.mubr.f32.mxu0 0.0
        %905 = vmatmul.mubr.f32.gmra.mrb[0].mxu0 %v308
        %v906 = vpop.f32.mrb[0].mxu0
        %v907 = vadd.f32 0.0, %v906
        %v908 = vpop.f32.mrb[0].mxu0
        %909 = vmatprep.mubr.f32.mxu0 0.0
        %910 = vmatmul.mubr.f32.gmra.mrb[0].mxu0 %v311
        %v911 = vpop.f32.mrb[0].mxu0
        %v912 = vadd.f32 0.0, %v911
        %v913 = vpop.f32.mrb[0].mxu0
        %914 = vmatprep.mubr.f32.mxu0 0.0
        %915 = vmatmul.mubr.f32.gmra.mrb[0].mxu0 %v314
        %v916 = vpop.f32.mrb[0].mxu0
        %v917 = vadd.f32 0.0, %v916
        %v918 = vpop.f32.mrb[0].mxu0
        %919 = vmatprep.mubr.f32.mxu0 0.0
        %920 = vmatmul.mubr.f32.gmra.mrb[0].mxu0 %v317
        %v921 = vpop.f32.mrb[0].mxu0
        %v922 = vadd.f32 0.0, %v921
        %v923 = vpop.f32.mrb[0].mxu0
        %924 = vmatprep.mubr.f32.mxu0 0.0
        %925 = vmatmul.mubr.f32.gmra.mrb[0].mxu0 %v320
        %v926 = vpop.f32.mrb[0].mxu0
        %v927 = vadd.f32 0.0, %v926
        %v928 = vpop.f32.mrb[0].mxu0
        %929 = vmatprep.mubr.f32.mxu0 0.0
        %930 = vmatmul.mubr.f32.gmra.mrb[0].mxu0 %v323
        %v931 = vpop.f32.mrb[0].mxu0
        %v932 = vadd.f32 0.0, %v931
        %v933 = vpop.f32.mrb[0].mxu0
        %934 = vmatprep.mubr.f32.mxu0 0.0
        %935 = vmatmul.mubr.f32.gmra.mrb[0].mxu0 %v326
        %v936 = vpop.f32.mrb[0].mxu0
        %v937 = vadd.f32 0.0, %v936
        %v938 = vpop.f32.mrb[0].mxu0
        %939 = vmatprep.mubr.f32.mxu0 0.0
        %940 = vmatmul.mubr.f32.gmra.mrb[0].mxu0 %v329
        %v941 = vpop.f32.mrb[0].mxu0
        %v942 = vadd.f32 0.0, %v941
        %v943 = vpop.f32.mrb[0].mxu0
        %944 = vmatprep.mubr.f32.mxu0 0.0
        %945 = vmatmul.mubr.f32.gmra.mrb[0].mxu0 %v332
        %v946 = vpop.f32.mrb[0].mxu0
        %v947 = vadd.f32 0.0, %v946
        %v948 = vpop.f32.mrb[0].mxu0
        %949 = vmatprep.mubr.f32.mxu0 0.0
        %950 = vmatmul.mubr.f32.gmra.mrb[0].mxu0 %v335
        %v951 = vpop.f32.mrb[0].mxu0
        %v952 = vadd.f32 0.0, %v951
        %v953 = vpop.f32.mrb[0].mxu0
        %954 = vdwg.mxu0
        %s955 = scalar_lea.vmem [#allocation2], 384
        %956 = vst.msk [vmem:[%s955] sm:$0xff] %vm264, %v837
        %957 = vst.msk [vmem:[%s955 + $0x8] sm:$0xff] %vm264, %v842
        %958 = vst.msk [vmem:[%s955 + $0x10] sm:$0xff] %vm264, %v847
        %959 = vst.msk [vmem:[%s955 + $0x18] sm:$0xff] %vm264, %v852
        %960 = vst.msk [vmem:[%s955 + $0x20] sm:$0xff] %vm264, %v857
        %961 = vst.msk [vmem:[%s955 + $0x28] sm:$0xff] %vm264, %v862
        %962 = vst.msk [vmem:[%s955 + $0x30] sm:$0xff] %vm264, %v867
        %963 = vst.msk [vmem:[%s955 + $0x38] sm:$0xff] %vm264, %v872
        %964 = vst.msk [vmem:[%s955 + $0x40] sm:$0xff] %vm264, %v877
        %965 = vst.msk [vmem:[%s955 + $0x48] sm:$0xff] %vm264, %v882
        %966 = vst.msk [vmem:[%s955 + $0x50] sm:$0xff] %vm264, %v887
        %967 = vst.msk [vmem:[%s955 + $0x58] sm:$0xff] %vm264, %v892
        %968 = vst.msk [vmem:[%s955 + $0x60] sm:$0xff] %vm264, %v897
        %969 = vst.msk [vmem:[%s955 + $0x68] sm:$0xff] %vm264, %v902
        %970 = vst.msk [vmem:[%s955 + $0x70] sm:$0xff] %vm264, %v907
        %971 = vst.msk [vmem:[%s955 + $0x78] sm:$0xff] %vm264, %v912
        %972 = vst.msk [vmem:[%s955 + $0x80] sm:$0xff] %vm264, %v917
        %973 = vst.msk [vmem:[%s955 + $0x88] sm:$0xff] %vm264, %v922
        %974 = vst.msk [vmem:[%s955 + $0x90] sm:$0xff] %vm264, %v927
        %975 = vst.msk [vmem:[%s955 + $0x98] sm:$0xff] %vm264, %v932
        %976 = vst.msk [vmem:[%s955 + $0xa0] sm:$0xff] %vm264, %v937
        %977 = vst.msk [vmem:[%s955 + $0xa8] sm:$0xff] %vm264, %v942
        %978 = vst.msk [vmem:[%s955 + $0xb0] sm:$0xff] %vm264, %v947
        %979 = vst.msk [vmem:[%s955 + $0xb8] sm:$0xff] %vm264, %v952
        %s980 = scalar_lea.vmem %s205, 24 [#allocation4]
        %v981 = vld [vmem:[%s980] sm:$0xff]
        %v982 = vld [vmem:[%s980 + $0x8] sm:$0xff]
        %v983 = vld [vmem:[%s980 + $0x10] sm:$0xff]
        %v984 = vld [vmem:[%s980 + $0x18] sm:$0xff]
        %v985 = vld [vmem:[%s980 + $0x20] sm:$0xff]
        %v986 = vld [vmem:[%s980 + $0x28] sm:$0xff]
        %v987 = vld [vmem:[%s980 + $0x30] sm:$0xff]
        %v988 = vld [vmem:[%s980 + $0x38] sm:$0xff]
        %v989 = vld [vmem:[%s980 + $0x40] sm:$0xff]
        %v990 = vld [vmem:[%s980 + $0x48] sm:$0xff]
        %v991 = vld [vmem:[%s980 + $0x50] sm:$0xff]
        %v992 = vld [vmem:[%s980 + $0x58] sm:$0xff]
        %v993 = vld [vmem:[%s980 + $0x60] sm:$0xff]
        %v994 = vld [vmem:[%s980 + $0x68] sm:$0xff]
        %v995 = vld [vmem:[%s980 + $0x70] sm:$0xff]
        %v996 = vld [vmem:[%s980 + $0x78] sm:$0xff]
        %v997 = vld [vmem:[%s980 + $0x80] sm:$0xff]
        %v998 = vld [vmem:[%s980 + $0x88] sm:$0xff]
        %v999 = vld [vmem:[%s980 + $0x90] sm:$0xff]
        %v1000 = vld [vmem:[%s980 + $0x98] sm:$0xff]
        %v1001 = vld [vmem:[%s980 + $0xa0] sm:$0xff]
        %v1002 = vld [vmem:[%s980 + $0xa8] sm:$0xff]
        %v1003 = vld [vmem:[%s980 + $0xb0] sm:$0xff]
        %v1004 = vld [vmem:[%s980 + $0xb8] sm:$0xff]
        %s1005 = scalar_lea.vmem [#allocation7], 12
        %v1006 = vld [vmem:[%s1005] sm:$0xf]
        %v1008 = vsel %vm264, %v981, 0
        %v1011 = vsel %vm264, %v982, 0
        %v1014 = vsel %vm264, %v983, 0
        %v1017 = vsel %vm264, %v984, 0
        %v1020 = vsel %vm264, %v985, 0
        %v1023 = vsel %vm264, %v986, 0
        %v1026 = vsel %vm264, %v987, 0
        %v1029 = vsel %vm264, %v988, 0
        %v1032 = vsel %vm264, %v989, 0
        %v1035 = vsel %vm264, %v990, 0
        %v1038 = vsel %vm264, %v991, 0
        %v1041 = vsel %vm264, %v992, 0
        %v1044 = vsel %vm264, %v993, 0
        %v1047 = vsel %vm264, %v994, 0
        %v1050 = vsel %vm264, %v995, 0
        %v1053 = vsel %vm264, %v996, 0
        %v1056 = vsel %vm264, %v997, 0
        %v1059 = vsel %vm264, %v998, 0
        %v1062 = vsel %vm264, %v999, 0
        %v1065 = vsel %vm264, %v1000, 0
        %v1068 = vsel %vm264, %v1001, 0
        %v1071 = vsel %vm264, %v1002, 0
        %v1074 = vsel %vm264, %v1003, 0
        %v1077 = vsel %vm264, %v1004, 0
        %v1080 = vsel %vm337, %v1006, 0
        %1082 = vmatprep.subr.mxu0 0.0
        %1083 = vmatpush1.msra.mxu0 %v1080
        %1084 = vmatprep.subr.mxu0 0.0
        %1085 = vmatpush1.msra.mxu0 0.0
        %1086 = vmatprep.subr.mxu0 0.0
        %1087 = vmatpush1.msra.mxu0 0.0
        %1088 = vmatprep.subr.mxu0 0.0
        %1089 = vmatpush1.msra.mxu0 0.0
        %1090 = vmatprep.subr.mxu0 0.0
        %1091 = vmatpush1.msra.mxu0 0.0
        %1092 = vmatprep.subr.mxu0 0.0
        %1093 = vmatpush1.msra.mxu0 0.0
        %1094 = vmatprep.subr.mxu0 0.0
        %1095 = vmatpush1.msra.mxu0 0.0
        %1096 = vmatprep.subr.mxu0 0.0
        %1097 = vmatpush1.msra.mxu0 0.0
        %1098 = vmatprep.subr.mxu0 0.0
        %1099 = vmatpush1.msra.mxu0 0.0
        %1100 = vmatprep.subr.mxu0 0.0
        %1101 = vmatpush1.msra.mxu0 0.0
        %1102 = vmatprep.subr.mxu0 0.0
        %1103 = vmatpush1.msra.mxu0 0.0
        %1104 = vmatprep.subr.mxu0 0.0
        %1105 = vmatpush1.msra.mxu0 0.0
        %1106 = vmatprep.subr.mxu0 0.0
        %1107 = vmatpush1.msra.mxu0 0.0
        %1108 = vmatprep.subr.mxu0 0.0
        %1109 = vmatpush1.msra.mxu0 0.0
        %1110 = vmatprep.subr.mxu0 0.0
        %1111 = vmatpush1.msra.mxu0 0.0
        %1112 = vmatprep.subr.mxu0 0.0
        %1113 = vmatpush1.msra.mxu0 0.0
        %1114 = vmatprep.subr.mxu0 0.0
        %1115 = vmatpush1.msra.mxu0 0.0
        %1116 = vmatprep.subr.mxu0 0.0
        %1117 = vmatpush1.msra.mxu0 0.0
        %1118 = vmatprep.subr.mxu0 0.0
        %1119 = vmatpush1.msra.mxu0 0.0
        %1120 = vmatprep.subr.mxu0 0.0
        %1121 = vmatpush1.msra.mxu0 0.0
        %1122 = vmatprep.subr.mxu0 0.0
        %1123 = vmatpush1.msra.mxu0 0.0
        %1124 = vmatprep.subr.mxu0 0.0
        %1125 = vmatpush1.msra.mxu0 0.0
        %1126 = vmatprep.subr.mxu0 0.0
        %1127 = vmatpush1.msra.mxu0 0.0
        %1128 = vmatprep.subr.mxu0 0.0
        %1129 = vmatpush1.msra.mxu0 0.0
        %1130 = vmatprep.subr.mxu0 0.0
        %1131 = vmatpush1.msra.mxu0 0.0
        %1132 = vmatprep.subr.mxu0 0.0
        %1133 = vmatpush1.msra.mxu0 0.0
        %1134 = vmatprep.subr.mxu0 0.0
        %1135 = vmatpush1.msra.mxu0 0.0
        %1136 = vmatprep.subr.mxu0 0.0
        %1137 = vmatpush1.msra.mxu0 0.0
        %1138 = vmatprep.subr.mxu0 0.0
        %1139 = vmatpush1.msra.mxu0 0.0
        %1140 = vmatprep.subr.mxu0 0.0
        %1141 = vmatpush1.msra.mxu0 0.0
        %1142 = vmatprep.subr.mxu0 0.0
        %1143 = vmatpush1.msra.mxu0 0.0
        %1144 = vmatprep.subr.mxu0 0.0
        %1145 = vmatpush1.msra.mxu0 0.0
        %1146 = vmatprep.mubr.f32.mxu0 0.0
        %1147 = vmatmul.mubr.f32.gmra.mrb[0].mxu0 %v1008
        %v1148 = vpop.f32.mrb[0].mxu0
        %v1149 = vadd.f32 0.0, %v1148
        %v1150 = vpop.f32.mrb[0].mxu0
        %1151 = vmatprep.mubr.f32.mxu0 0.0
        %1152 = vmatmul.mubr.f32.gmra.mrb[0].mxu0 %v1011
        %v1153 = vpop.f32.mrb[0].mxu0
        %v1154 = vadd.f32 0.0, %v1153
        %v1155 = vpop.f32.mrb[0].mxu0
        %1156 = vmatprep.mubr.f32.mxu0 0.0
        %1157 = vmatmul.mubr.f32.gmra.mrb[0].mxu0 %v1014
        %v1158 = vpop.f32.mrb[0].mxu0
        %v1159 = vadd.f32 0.0, %v1158
        %v1160 = vpop.f32.mrb[0].mxu0
        %1161 = vmatprep.mubr.f32.mxu0 0.0
        %1162 = vmatmul.mubr.f32.gmra.mrb[0].mxu0 %v1017
        %v1163 = vpop.f32.mrb[0].mxu0
        %v1164 = vadd.f32 0.0, %v1163
        %v1165 = vpop.f32.mrb[0].mxu0
        %1166 = vmatprep.mubr.f32.mxu0 0.0
        %1167 = vmatmul.mubr.f32.gmra.mrb[0].mxu0 %v1020
        %v1168 = vpop.f32.mrb[0].mxu0
        %v1169 = vadd.f32 0.0, %v1168
        %v1170 = vpop.f32.mrb[0].mxu0
        %1171 = vmatprep.mubr.f32.mxu0 0.0
        %1172 = vmatmul.mubr.f32.gmra.mrb[0].mxu0 %v1023
        %v1173 = vpop.f32.mrb[0].mxu0
        %v1174 = vadd.f32 0.0, %v1173
        %v1175 = vpop.f32.mrb[0].mxu0
        %1176 = vmatprep.mubr.f32.mxu0 0.0
        %1177 = vmatmul.mubr.f32.gmra.mrb[0].mxu0 %v1026
        %v1178 = vpop.f32.mrb[0].mxu0
        %v1179 = vadd.f32 0.0, %v1178
        %v1180 = vpop.f32.mrb[0].mxu0
        %1181 = vmatprep.mubr.f32.mxu0 0.0
        %1182 = vmatmul.mubr.f32.gmra.mrb[0].mxu0 %v1029
        %v1183 = vpop.f32.mrb[0].mxu0
        %v1184 = vadd.f32 0.0, %v1183
        %v1185 = vpop.f32.mrb[0].mxu0
        %1186 = vmatprep.mubr.f32.mxu0 0.0
        %1187 = vmatmul.mubr.f32.gmra.mrb[0].mxu0 %v1032
        %v1188 = vpop.f32.mrb[0].mxu0
        %v1189 = vadd.f32 0.0, %v1188
        %v1190 = vpop.f32.mrb[0].mxu0
        %1191 = vmatprep.mubr.f32.mxu0 0.0
        %1192 = vmatmul.mubr.f32.gmra.mrb[0].mxu0 %v1035
        %v1193 = vpop.f32.mrb[0].mxu0
        %v1194 = vadd.f32 0.0, %v1193
        %v1195 = vpop.f32.mrb[0].mxu0
        %1196 = vmatprep.mubr.f32.mxu0 0.0
        %1197 = vmatmul.mubr.f32.gmra.mrb[0].mxu0 %v1038
        %v1198 = vpop.f32.mrb[0].mxu0
        %v1199 = vadd.f32 0.0, %v1198
        %v1200 = vpop.f32.mrb[0].mxu0
        %1201 = vmatprep.mubr.f32.mxu0 0.0
        %1202 = vmatmul.mubr.f32.gmra.mrb[0].mxu0 %v1041
        %v1203 = vpop.f32.mrb[0].mxu0
        %v1204 = vadd.f32 0.0, %v1203
        %v1205 = vpop.f32.mrb[0].mxu0
        %1206 = vmatprep.mubr.f32.mxu0 0.0
        %1207 = vmatmul.mubr.f32.gmra.mrb[0].mxu0 %v1044
        %v1208 = vpop.f32.mrb[0].mxu0
        %v1209 = vadd.f32 0.0, %v1208
        %v1210 = vpop.f32.mrb[0].mxu0
        %1211 = vmatprep.mubr.f32.mxu0 0.0
        %1212 = vmatmul.mubr.f32.gmra.mrb[0].mxu0 %v1047
        %v1213 = vpop.f32.mrb[0].mxu0
        %v1214 = vadd.f32 0.0, %v1213
        %v1215 = vpop.f32.mrb[0].mxu0
        %1216 = vmatprep.mubr.f32.mxu0 0.0
        %1217 = vmatmul.mubr.f32.gmra.mrb[0].mxu0 %v1050
        %v1218 = vpop.f32.mrb[0].mxu0
        %v1219 = vadd.f32 0.0, %v1218
        %v1220 = vpop.f32.mrb[0].mxu0
        %1221 = vmatprep.mubr.f32.mxu0 0.0
        %1222 = vmatmul.mubr.f32.gmra.mrb[0].mxu0 %v1053
        %v1223 = vpop.f32.mrb[0].mxu0
        %v1224 = vadd.f32 0.0, %v1223
        %v1225 = vpop.f32.mrb[0].mxu0
        %1226 = vmatprep.mubr.f32.mxu0 0.0
        %1227 = vmatmul.mubr.f32.gmra.mrb[0].mxu0 %v1056
        %v1228 = vpop.f32.mrb[0].mxu0
        %v1229 = vadd.f32 0.0, %v1228
        %v1230 = vpop.f32.mrb[0].mxu0
        %1231 = vmatprep.mubr.f32.mxu0 0.0
        %1232 = vmatmul.mubr.f32.gmra.mrb[0].mxu0 %v1059
        %v1233 = vpop.f32.mrb[0].mxu0
        %v1234 = vadd.f32 0.0, %v1233
        %v1235 = vpop.f32.mrb[0].mxu0
        %1236 = vmatprep.mubr.f32.mxu0 0.0
        %1237 = vmatmul.mubr.f32.gmra.mrb[0].mxu0 %v1062
        %v1238 = vpop.f32.mrb[0].mxu0
        %v1239 = vadd.f32 0.0, %v1238
        %v1240 = vpop.f32.mrb[0].mxu0
        %1241 = vmatprep.mubr.f32.mxu0 0.0
        %1242 = vmatmul.mubr.f32.gmra.mrb[0].mxu0 %v1065
        %v1243 = vpop.f32.mrb[0].mxu0
        %v1244 = vadd.f32 0.0, %v1243
        %v1245 = vpop.f32.mrb[0].mxu0
        %1246 = vmatprep.mubr.f32.mxu0 0.0
        %1247 = vmatmul.mubr.f32.gmra.mrb[0].mxu0 %v1068
        %v1248 = vpop.f32.mrb[0].mxu0
        %v1249 = vadd.f32 0.0, %v1248
        %v1250 = vpop.f32.mrb[0].mxu0
        %1251 = vmatprep.mubr.f32.mxu0 0.0
        %1252 = vmatmul.mubr.f32.gmra.mrb[0].mxu0 %v1071
        %v1253 = vpop.f32.mrb[0].mxu0
        %v1254 = vadd.f32 0.0, %v1253
        %v1255 = vpop.f32.mrb[0].mxu0
        %1256 = vmatprep.mubr.f32.mxu0 0.0
        %1257 = vmatmul.mubr.f32.gmra.mrb[0].mxu0 %v1074
        %v1258 = vpop.f32.mrb[0].mxu0
        %v1259 = vadd.f32 0.0, %v1258
        %v1260 = vpop.f32.mrb[0].mxu0
        %1261 = vmatprep.mubr.f32.mxu0 0.0
        %1262 = vmatmul.mubr.f32.gmra.mrb[0].mxu0 %v1077
        %v1263 = vpop.f32.mrb[0].mxu0
        %v1264 = vadd.f32 0.0, %v1263
        %v1265 = vpop.f32.mrb[0].mxu0
        %1266 = vdwg.mxu0
        %v1267 = vld [vmem:[#allocation2] sm:$0xff]
        %v1268 = vld [vmem:[#allocation2 + $0x8] sm:$0xff]
        %v1269 = vld [vmem:[#allocation2 + $0x10] sm:$0xff]
        %v1270 = vld [vmem:[#allocation2 + $0x18] sm:$0xff]
        %v1271 = vld [vmem:[#allocation2 + $0x20] sm:$0xff]
        %v1272 = vld [vmem:[#allocation2 + $0x28] sm:$0xff]
        %v1273 = vld [vmem:[#allocation2 + $0x30] sm:$0xff]
        %v1274 = vld [vmem:[#allocation2 + $0x38] sm:$0xff]
        %v1275 = vld [vmem:[#allocation2 + $0x40] sm:$0xff]
        %v1276 = vld [vmem:[#allocation2 + $0x48] sm:$0xff]
        %v1277 = vld [vmem:[#allocation2 + $0x50] sm:$0xff]
        %v1278 = vld [vmem:[#allocation2 + $0x58] sm:$0xff]
        %v1279 = vld [vmem:[#allocation2 + $0x60] sm:$0xff]
        %v1280 = vld [vmem:[#allocation2 + $0x68] sm:$0xff]
        %v1281 = vld [vmem:[#allocation2 + $0x70] sm:$0xff]
        %v1282 = vld [vmem:[#allocation2 + $0x78] sm:$0xff]
        %v1283 = vld [vmem:[#allocation2 + $0x80] sm:$0xff]
        %v1284 = vld [vmem:[#allocation2 + $0x88] sm:$0xff]
        %v1285 = vld [vmem:[#allocation2 + $0x90] sm:$0xff]
        %v1286 = vld [vmem:[#allocation2 + $0x98] sm:$0xff]
        %v1287 = vld [vmem:[#allocation2 + $0xa0] sm:$0xff]
        %v1288 = vld [vmem:[#allocation2 + $0xa8] sm:$0xff]
        %v1289 = vld [vmem:[#allocation2 + $0xb0] sm:$0xff]
        %v1290 = vld [vmem:[#allocation2 + $0xb8] sm:$0xff]
        %v1291 = vadd.f32 %v1267, %v1149
        %v1292 = vadd.f32 %v1268, %v1154
        %v1293 = vadd.f32 %v1269, %v1159
        %v1294 = vadd.f32 %v1270, %v1164
        %v1295 = vadd.f32 %v1271, %v1169
        %v1296 = vadd.f32 %v1272, %v1174
        %v1297 = vadd.f32 %v1273, %v1179
        %v1298 = vadd.f32 %v1274, %v1184
        %v1299 = vadd.f32 %v1275, %v1189
        %v1300 = vadd.f32 %v1276, %v1194
        %v1301 = vadd.f32 %v1277, %v1199
        %v1302 = vadd.f32 %v1278, %v1204
        %v1303 = vadd.f32 %v1279, %v1209
        %v1304 = vadd.f32 %v1280, %v1214
        %v1305 = vadd.f32 %v1281, %v1219
        %v1306 = vadd.f32 %v1282, %v1224
        %v1307 = vadd.f32 %v1283, %v1229
        %v1308 = vadd.f32 %v1284, %v1234
        %v1309 = vadd.f32 %v1285, %v1239
        %v1310 = vadd.f32 %v1286, %v1244
        %v1311 = vadd.f32 %v1287, %v1249
        %v1312 = vadd.f32 %v1288, %v1254
        %v1313 = vadd.f32 %v1289, %v1259
        %v1314 = vadd.f32 %v1290, %v1264
        %1315 = vst.msk [vmem:[#allocation2] sm:$0xff] %vm264, %v1291
        %1316 = vst.msk [vmem:[#allocation2 + $0x8] sm:$0xff] %vm264, %v1292
        %1317 = vst.msk [vmem:[#allocation2 + $0x10] sm:$0xff] %vm264, %v1293
        %1318 = vst.msk [vmem:[#allocation2 + $0x18] sm:$0xff] %vm264, %v1294
        %1319 = vst.msk [vmem:[#allocation2 + $0x20] sm:$0xff] %vm264, %v1295
        %1320 = vst.msk [vmem:[#allocation2 + $0x28] sm:$0xff] %vm264, %v1296
        %1321 = vst.msk [vmem:[#allocation2 + $0x30] sm:$0xff] %vm264, %v1297
        %1322 = vst.msk [vmem:[#allocation2 + $0x38] sm:$0xff] %vm264, %v1298
        %1323 = vst.msk [vmem:[#allocation2 + $0x40] sm:$0xff] %vm264, %v1299
        %1324 = vst.msk [vmem:[#allocation2 + $0x48] sm:$0xff] %vm264, %v1300
        %1325 = vst.msk [vmem:[#allocation2 + $0x50] sm:$0xff] %vm264, %v1301
        %1326 = vst.msk [vmem:[#allocation2 + $0x58] sm:$0xff] %vm264, %v1302
        %1327 = vst.msk [vmem:[#allocation2 + $0x60] sm:$0xff] %vm264, %v1303
        %1328 = vst.msk [vmem:[#allocation2 + $0x68] sm:$0xff] %vm264, %v1304
        %1329 = vst.msk [vmem:[#allocation2 + $0x70] sm:$0xff] %vm264, %v1305
        %1330 = vst.msk [vmem:[#allocation2 + $0x78] sm:$0xff] %vm264, %v1306
        %1331 = vst.msk [vmem:[#allocation2 + $0x80] sm:$0xff] %vm264, %v1307
        %1332 = vst.msk [vmem:[#allocation2 + $0x88] sm:$0xff] %vm264, %v1308
        %1333 = vst.msk [vmem:[#allocation2 + $0x90] sm:$0xff] %vm264, %v1309
        %1334 = vst.msk [vmem:[#allocation2 + $0x98] sm:$0xff] %vm264, %v1310
        %1335 = vst.msk [vmem:[#allocation2 + $0xa0] sm:$0xff] %vm264, %v1311
        %1336 = vst.msk [vmem:[#allocation2 + $0xa8] sm:$0xff] %vm264, %v1312
        %1337 = vst.msk [vmem:[#allocation2 + $0xb0] sm:$0xff] %vm264, %v1313
        %1338 = vst.msk [vmem:[#allocation2 + $0xb8] sm:$0xff] %vm264, %v1314
        %s1339 = scalar_lea.vmem [#allocation7], 16
        %v1340 = vld [vmem:[%s1339] sm:$0xf]
        %v1342 = vsel %vm337, %v1340, 0
        %1344 = vmatprep.subr.mxu0 0.0
        %1345 = vmatpush1.msra.mxu0 %v1342
        %1346 = vmatprep.subr.mxu0 0.0
        %1347 = vmatpush1.msra.mxu0 0.0
        %1348 = vmatprep.subr.mxu0 0.0
        %1349 = vmatpush1.msra.mxu0 0.0
        %1350 = vmatprep.subr.mxu0 0.0
        %1351 = vmatpush1.msra.mxu0 0.0
        %1352 = vmatprep.subr.mxu0 0.0
        %1353 = vmatpush1.msra.mxu0 0.0
        %1354 = vmatprep.subr.mxu0 0.0
        %1355 = vmatpush1.msra.mxu0 0.0
        %1356 = vmatprep.subr.mxu0 0.0
        %1357 = vmatpush1.msra.mxu0 0.0
        %1358 = vmatprep.subr.mxu0 0.0
        %1359 = vmatpush1.msra.mxu0 0.0
        %1360 = vmatprep.subr.mxu0 0.0
        %1361 = vmatpush1.msra.mxu0 0.0
        %1362 = vmatprep.subr.mxu0 0.0
        %1363 = vmatpush1.msra.mxu0 0.0
        %1364 = vmatprep.subr.mxu0 0.0
        %1365 = vmatpush1.msra.mxu0 0.0
        %1366 = vmatprep.subr.mxu0 0.0
        %1367 = vmatpush1.msra.mxu0 0.0
        %1368 = vmatprep.subr.mxu0 0.0
        %1369 = vmatpush1.msra.mxu0 0.0
        %1370 = vmatprep.subr.mxu0 0.0
        %1371 = vmatpush1.msra.mxu0 0.0
        %1372 = vmatprep.subr.mxu0 0.0
        %1373 = vmatpush1.msra.mxu0 0.0
        %1374 = vmatprep.subr.mxu0 0.0
        %1375 = vmatpush1.msra.mxu0 0.0
        %1376 = vmatprep.subr.mxu0 0.0
        %1377 = vmatpush1.msra.mxu0 0.0
        %1378 = vmatprep.subr.mxu0 0.0
        %1379 = vmatpush1.msra.mxu0 0.0
        %1380 = vmatprep.subr.mxu0 0.0
        %1381 = vmatpush1.msra.mxu0 0.0
        %1382 = vmatprep.subr.mxu0 0.0
        %1383 = vmatpush1.msra.mxu0 0.0
        %1384 = vmatprep.subr.mxu0 0.0
        %1385 = vmatpush1.msra.mxu0 0.0
        %1386 = vmatprep.subr.mxu0 0.0
        %1387 = vmatpush1.msra.mxu0 0.0
        %1388 = vmatprep.subr.mxu0 0.0
        %1389 = vmatpush1.msra.mxu0 0.0
        %1390 = vmatprep.subr.mxu0 0.0
        %1391 = vmatpush1.msra.mxu0 0.0
        %1392 = vmatprep.subr.mxu0 0.0
        %1393 = vmatpush1.msra.mxu0 0.0
        %1394 = vmatprep.subr.mxu0 0.0
        %1395 = vmatpush1.msra.mxu0 0.0
        %1396 = vmatprep.subr.mxu0 0.0
        %1397 = vmatpush1.msra.mxu0 0.0
        %1398 = vmatprep.subr.mxu0 0.0
        %1399 = vmatpush1.msra.mxu0 0.0
        %1400 = vmatprep.subr.mxu0 0.0
        %1401 = vmatpush1.msra.mxu0 0.0
        %1402 = vmatprep.subr.mxu0 0.0
        %1403 = vmatpush1.msra.mxu0 0.0
        %1404 = vmatprep.subr.mxu0 0.0
        %1405 = vmatpush1.msra.mxu0 0.0
        %1406 = vmatprep.subr.mxu0 0.0
        %1407 = vmatpush1.msra.mxu0 0.0
        %1408 = vmatprep.mubr.f32.mxu0 0.0
        %1409 = vmatmul.mubr.f32.gmra.mrb[0].mxu0 %v1008
        %v1410 = vpop.f32.mrb[0].mxu0
        %v1411 = vadd.f32 0.0, %v1410
        %v1412 = vpop.f32.mrb[0].mxu0
        %1413 = vmatprep.mubr.f32.mxu0 0.0
        %1414 = vmatmul.mubr.f32.gmra.mrb[0].mxu0 %v1011
        %v1415 = vpop.f32.mrb[0].mxu0
        %v1416 = vadd.f32 0.0, %v1415
        %v1417 = vpop.f32.mrb[0].mxu0
        %1418 = vmatprep.mubr.f32.mxu0 0.0
        %1419 = vmatmul.mubr.f32.gmra.mrb[0].mxu0 %v1014
        %v1420 = vpop.f32.mrb[0].mxu0
        %v1421 = vadd.f32 0.0, %v1420
        %v1422 = vpop.f32.mrb[0].mxu0
        %1423 = vmatprep.mubr.f32.mxu0 0.0
        %1424 = vmatmul.mubr.f32.gmra.mrb[0].mxu0 %v1017
        %v1425 = vpop.f32.mrb[0].mxu0
        %v1426 = vadd.f32 0.0, %v1425
        %v1427 = vpop.f32.mrb[0].mxu0
        %1428 = vmatprep.mubr.f32.mxu0 0.0
        %1429 = vmatmul.mubr.f32.gmra.mrb[0].mxu0 %v1020
        %v1430 = vpop.f32.mrb[0].mxu0
        %v1431 = vadd.f32 0.0, %v1430
        %v1432 = vpop.f32.mrb[0].mxu0
        %1433 = vmatprep.mubr.f32.mxu0 0.0
        %1434 = vmatmul.mubr.f32.gmra.mrb[0].mxu0 %v1023
        %v1435 = vpop.f32.mrb[0].mxu0
        %v1436 = vadd.f32 0.0, %v1435
        %v1437 = vpop.f32.mrb[0].mxu0
        %1438 = vmatprep.mubr.f32.mxu0 0.0
        %1439 = vmatmul.mubr.f32.gmra.mrb[0].mxu0 %v1026
        %v1440 = vpop.f32.mrb[0].mxu0
        %v1441 = vadd.f32 0.0, %v1440
        %v1442 = vpop.f32.mrb[0].mxu0
        %1443 = vmatprep.mubr.f32.mxu0 0.0
        %1444 = vmatmul.mubr.f32.gmra.mrb[0].mxu0 %v1029
        %v1445 = vpop.f32.mrb[0].mxu0
        %v1446 = vadd.f32 0.0, %v1445
        %v1447 = vpop.f32.mrb[0].mxu0
        %1448 = vmatprep.mubr.f32.mxu0 0.0
        %1449 = vmatmul.mubr.f32.gmra.mrb[0].mxu0 %v1032
        %v1450 = vpop.f32.mrb[0].mxu0
        %v1451 = vadd.f32 0.0, %v1450
        %v1452 = vpop.f32.mrb[0].mxu0
        %1453 = vmatprep.mubr.f32.mxu0 0.0
        %1454 = vmatmul.mubr.f32.gmra.mrb[0].mxu0 %v1035
        %v1455 = vpop.f32.mrb[0].mxu0
        %v1456 = vadd.f32 0.0, %v1455
        %v1457 = vpop.f32.mrb[0].mxu0
        %1458 = vmatprep.mubr.f32.mxu0 0.0
        %1459 = vmatmul.mubr.f32.gmra.mrb[0].mxu0 %v1038
        %v1460 = vpop.f32.mrb[0].mxu0
        %v1461 = vadd.f32 0.0, %v1460
        %v1462 = vpop.f32.mrb[0].mxu0
        %1463 = vmatprep.mubr.f32.mxu0 0.0
        %1464 = vmatmul.mubr.f32.gmra.mrb[0].mxu0 %v1041
        %v1465 = vpop.f32.mrb[0].mxu0
        %v1466 = vadd.f32 0.0, %v1465
        %v1467 = vpop.f32.mrb[0].mxu0
        %1468 = vmatprep.mubr.f32.mxu0 0.0
        %1469 = vmatmul.mubr.f32.gmra.mrb[0].mxu0 %v1044
        %v1470 = vpop.f32.mrb[0].mxu0
        %v1471 = vadd.f32 0.0, %v1470
        %v1472 = vpop.f32.mrb[0].mxu0
        %1473 = vmatprep.mubr.f32.mxu0 0.0
        %1474 = vmatmul.mubr.f32.gmra.mrb[0].mxu0 %v1047
        %v1475 = vpop.f32.mrb[0].mxu0
        %v1476 = vadd.f32 0.0, %v1475
        %v1477 = vpop.f32.mrb[0].mxu0
        %1478 = vmatprep.mubr.f32.mxu0 0.0
        %1479 = vmatmul.mubr.f32.gmra.mrb[0].mxu0 %v1050
        %v1480 = vpop.f32.mrb[0].mxu0
        %v1481 = vadd.f32 0.0, %v1480
        %v1482 = vpop.f32.mrb[0].mxu0
        %1483 = vmatprep.mubr.f32.mxu0 0.0
        %1484 = vmatmul.mubr.f32.gmra.mrb[0].mxu0 %v1053
        %v1485 = vpop.f32.mrb[0].mxu0
        %v1486 = vadd.f32 0.0, %v1485
        %v1487 = vpop.f32.mrb[0].mxu0
        %1488 = vmatprep.mubr.f32.mxu0 0.0
        %1489 = vmatmul.mubr.f32.gmra.mrb[0].mxu0 %v1056
        %v1490 = vpop.f32.mrb[0].mxu0
        %v1491 = vadd.f32 0.0, %v1490
        %v1492 = vpop.f32.mrb[0].mxu0
        %1493 = vmatprep.mubr.f32.mxu0 0.0
        %1494 = vmatmul.mubr.f32.gmra.mrb[0].mxu0 %v1059
        %v1495 = vpop.f32.mrb[0].mxu0
        %v1496 = vadd.f32 0.0, %v1495
        %v1497 = vpop.f32.mrb[0].mxu0
        %1498 = vmatprep.mubr.f32.mxu0 0.0
        %1499 = vmatmul.mubr.f32.gmra.mrb[0].mxu0 %v1062
        %v1500 = vpop.f32.mrb[0].mxu0
        %v1501 = vadd.f32 0.0, %v1500
        %v1502 = vpop.f32.mrb[0].mxu0
        %1503 = vmatprep.mubr.f32.mxu0 0.0
        %1504 = vmatmul.mubr.f32.gmra.mrb[0].mxu0 %v1065
        %v1505 = vpop.f32.mrb[0].mxu0
        %v1506 = vadd.f32 0.0, %v1505
        %v1507 = vpop.f32.mrb[0].mxu0
        %1508 = vmatprep.mubr.f32.mxu0 0.0
        %1509 = vmatmul.mubr.f32.gmra.mrb[0].mxu0 %v1068
        %v1510 = vpop.f32.mrb[0].mxu0
        %v1511 = vadd.f32 0.0, %v1510
        %v1512 = vpop.f32.mrb[0].mxu0
        %1513 = vmatprep.mubr.f32.mxu0 0.0
        %1514 = vmatmul.mubr.f32.gmra.mrb[0].mxu0 %v1071
        %v1515 = vpop.f32.mrb[0].mxu0
        %v1516 = vadd.f32 0.0, %v1515
        %v1517 = vpop.f32.mrb[0].mxu0
        %1518 = vmatprep.mubr.f32.mxu0 0.0
        %1519 = vmatmul.mubr.f32.gmra.mrb[0].mxu0 %v1074
        %v1520 = vpop.f32.mrb[0].mxu0
        %v1521 = vadd.f32 0.0, %v1520
        %v1522 = vpop.f32.mrb[0].mxu0
        %1523 = vmatprep.mubr.f32.mxu0 0.0
        %1524 = vmatmul.mubr.f32.gmra.mrb[0].mxu0 %v1077
        %v1525 = vpop.f32.mrb[0].mxu0
        %v1526 = vadd.f32 0.0, %v1525
        %v1527 = vpop.f32.mrb[0].mxu0
        %1528 = vdwg.mxu0
        %v1529 = vld [vmem:[%s740] sm:$0xff]
        %v1530 = vld [vmem:[%s740 + $0x8] sm:$0xff]
        %v1531 = vld [vmem:[%s740 + $0x10] sm:$0xff]
        %v1532 = vld [vmem:[%s740 + $0x18] sm:$0xff]
        %v1533 = vld [vmem:[%s740 + $0x20] sm:$0xff]
        %v1534 = vld [vmem:[%s740 + $0x28] sm:$0xff]
        %v1535 = vld [vmem:[%s740 + $0x30] sm:$0xff]
        %v1536 = vld [vmem:[%s740 + $0x38] sm:$0xff]
        %v1537 = vld [vmem:[%s740 + $0x40] sm:$0xff]
        %v1538 = vld [vmem:[%s740 + $0x48] sm:$0xff]
        %v1539 = vld [vmem:[%s740 + $0x50] sm:$0xff]
        %v1540 = vld [vmem:[%s740 + $0x58] sm:$0xff]
        %v1541 = vld [vmem:[%s740 + $0x60] sm:$0xff]
        %v1542 = vld [vmem:[%s740 + $0x68] sm:$0xff]
        %v1543 = vld [vmem:[%s740 + $0x70] sm:$0xff]
        %v1544 = vld [vmem:[%s740 + $0x78] sm:$0xff]
        %v1545 = vld [vmem:[%s740 + $0x80] sm:$0xff]
        %v1546 = vld [vmem:[%s740 + $0x88] sm:$0xff]
        %v1547 = vld [vmem:[%s740 + $0x90] sm:$0xff]
        %v1548 = vld [vmem:[%s740 + $0x98] sm:$0xff]
        %v1549 = vld [vmem:[%s740 + $0xa0] sm:$0xff]
        %v1550 = vld [vmem:[%s740 + $0xa8] sm:$0xff]
        %v1551 = vld [vmem:[%s740 + $0xb0] sm:$0xff]
        %v1552 = vld [vmem:[%s740 + $0xb8] sm:$0xff]
        %v1553 = vadd.f32 %v1529, %v1411
        %v1554 = vadd.f32 %v1530, %v1416
        %v1555 = vadd.f32 %v1531, %v1421
        %v1556 = vadd.f32 %v1532, %v1426
        %v1557 = vadd.f32 %v1533, %v1431
        %v1558 = vadd.f32 %v1534, %v1436
        %v1559 = vadd.f32 %v1535, %v1441
        %v1560 = vadd.f32 %v1536, %v1446
        %v1561 = vadd.f32 %v1537, %v1451
        %v1562 = vadd.f32 %v1538, %v1456
        %v1563 = vadd.f32 %v1539, %v1461
        %v1564 = vadd.f32 %v1540, %v1466
        %v1565 = vadd.f32 %v1541, %v1471
        %v1566 = vadd.f32 %v1542, %v1476
        %v1567 = vadd.f32 %v1543, %v1481
        %v1568 = vadd.f32 %v1544, %v1486
        %v1569 = vadd.f32 %v1545, %v1491
        %v1570 = vadd.f32 %v1546, %v1496
        %v1571 = vadd.f32 %v1547, %v1501
        %v1572 = vadd.f32 %v1548, %v1506
        %v1573 = vadd.f32 %v1549, %v1511
        %v1574 = vadd.f32 %v1550, %v1516
        %v1575 = vadd.f32 %v1551, %v1521
        %v1576 = vadd.f32 %v1552, %v1526
        %1577 = vst.msk [vmem:[%s740] sm:$0xff] %vm264, %v1553
        %1578 = vst.msk [vmem:[%s740 + $0x8] sm:$0xff] %vm264, %v1554
        %1579 = vst.msk [vmem:[%s740 + $0x10] sm:$0xff] %vm264, %v1555
        %1580 = vst.msk [vmem:[%s740 + $0x18] sm:$0xff] %vm264, %v1556
        %1581 = vst.msk [vmem:[%s740 + $0x20] sm:$0xff] %vm264, %v1557
        %1582 = vst.msk [vmem:[%s740 + $0x28] sm:$0xff] %vm264, %v1558
        %1583 = vst.msk [vmem:[%s740 + $0x30] sm:$0xff] %vm264, %v1559
        %1584 = vst.msk [vmem:[%s740 + $0x38] sm:$0xff] %vm264, %v1560
        %1585 = vst.msk [vmem:[%s740 + $0x40] sm:$0xff] %vm264, %v1561
        %1586 = vst.msk [vmem:[%s740 + $0x48] sm:$0xff] %vm264, %v1562
        %1587 = vst.msk [vmem:[%s740 + $0x50] sm:$0xff] %vm264, %v1563
        %1588 = vst.msk [vmem:[%s740 + $0x58] sm:$0xff] %vm264, %v1564
        %1589 = vst.msk [vmem:[%s740 + $0x60] sm:$0xff] %vm264, %v1565
        %1590 = vst.msk [vmem:[%s740 + $0x68] sm:$0xff] %vm264, %v1566
        %1591 = vst.msk [vmem:[%s740 + $0x70] sm:$0xff] %vm264, %v1567
        %1592 = vst.msk [vmem:[%s740 + $0x78] sm:$0xff] %vm264, %v1568
        %1593 = vst.msk [vmem:[%s740 + $0x80] sm:$0xff] %vm264, %v1569
        %1594 = vst.msk [vmem:[%s740 + $0x88] sm:$0xff] %vm264, %v1570
        %1595 = vst.msk [vmem:[%s740 + $0x90] sm:$0xff] %vm264, %v1571
        %1596 = vst.msk [vmem:[%s740 + $0x98] sm:$0xff] %vm264, %v1572
        %1597 = vst.msk [vmem:[%s740 + $0xa0] sm:$0xff] %vm264, %v1573
        %1598 = vst.msk [vmem:[%s740 + $0xa8] sm:$0xff] %vm264, %v1574
        %1599 = vst.msk [vmem:[%s740 + $0xb0] sm:$0xff] %vm264, %v1575
        %1600 = vst.msk [vmem:[%s740 + $0xb8] sm:$0xff] %vm264, %v1576
        %s1601 = scalar_lea.vmem [#allocation7], 20
        %v1602 = vld [vmem:[%s1601] sm:$0xf]
        %v1604 = vsel %vm337, %v1602, 0
        %1606 = vmatprep.subr.mxu0 0.0
        %1607 = vmatpush1.msra.mxu0 %v1604
        %1608 = vmatprep.subr.mxu0 0.0
        %1609 = vmatpush1.msra.mxu0 0.0
        %1610 = vmatprep.subr.mxu0 0.0
        %1611 = vmatpush1.msra.mxu0 0.0
        %1612 = vmatprep.subr.mxu0 0.0
        %1613 = vmatpush1.msra.mxu0 0.0
        %1614 = vmatprep.subr.mxu0 0.0
        %1615 = vmatpush1.msra.mxu0 0.0
        %1616 = vmatprep.subr.mxu0 0.0
        %1617 = vmatpush1.msra.mxu0 0.0
        %1618 = vmatprep.subr.mxu0 0.0
        %1619 = vmatpush1.msra.mxu0 0.0
        %1620 = vmatprep.subr.mxu0 0.0
        %1621 = vmatpush1.msra.mxu0 0.0
        %1622 = vmatprep.subr.mxu0 0.0
        %1623 = vmatpush1.msra.mxu0 0.0
        %1624 = vmatprep.subr.mxu0 0.0
        %1625 = vmatpush1.msra.mxu0 0.0
        %1626 = vmatprep.subr.mxu0 0.0
        %1627 = vmatpush1.msra.mxu0 0.0
        %1628 = vmatprep.subr.mxu0 0.0
        %1629 = vmatpush1.msra.mxu0 0.0
        %1630 = vmatprep.subr.mxu0 0.0
        %1631 = vmatpush1.msra.mxu0 0.0
        %1632 = vmatprep.subr.mxu0 0.0
        %1633 = vmatpush1.msra.mxu0 0.0
        %1634 = vmatprep.subr.mxu0 0.0
        %1635 = vmatpush1.msra.mxu0 0.0
        %1636 = vmatprep.subr.mxu0 0.0
        %1637 = vmatpush1.msra.mxu0 0.0
        %1638 = vmatprep.subr.mxu0 0.0
        %1639 = vmatpush1.msra.mxu0 0.0
        %1640 = vmatprep.subr.mxu0 0.0
        %1641 = vmatpush1.msra.mxu0 0.0
        %1642 = vmatprep.subr.mxu0 0.0
        %1643 = vmatpush1.msra.mxu0 0.0
        %1644 = vmatprep.subr.mxu0 0.0
        %1645 = vmatpush1.msra.mxu0 0.0
        %1646 = vmatprep.subr.mxu0 0.0
        %1647 = vmatpush1.msra.mxu0 0.0
        %1648 = vmatprep.subr.mxu0 0.0
        %1649 = vmatpush1.msra.mxu0 0.0
        %1650 = vmatprep.subr.mxu0 0.0
        %1651 = vmatpush1.msra.mxu0 0.0
        %1652 = vmatprep.subr.mxu0 0.0
        %1653 = vmatpush1.msra.mxu0 0.0
        %1654 = vmatprep.subr.mxu0 0.0
        %1655 = vmatpush1.msra.mxu0 0.0
        %1656 = vmatprep.subr.mxu0 0.0
        %1657 = vmatpush1.msra.mxu0 0.0
        %1658 = vmatprep.subr.mxu0 0.0
        %1659 = vmatpush1.msra.mxu0 0.0
        %1660 = vmatprep.subr.mxu0 0.0
        %1661 = vmatpush1.msra.mxu0 0.0
        %1662 = vmatprep.subr.mxu0 0.0
        %1663 = vmatpush1.msra.mxu0 0.0
        %1664 = vmatprep.subr.mxu0 0.0
        %1665 = vmatpush1.msra.mxu0 0.0
        %1666 = vmatprep.subr.mxu0 0.0
        %1667 = vmatpush1.msra.mxu0 0.0
        %1668 = vmatprep.subr.mxu0 0.0
        %1669 = vmatpush1.msra.mxu0 0.0
        %1670 = vmatprep.mubr.f32.mxu0 0.0
        %1671 = vmatmul.mubr.f32.gmra.mrb[0].mxu0 %v1008
        %v1672 = vpop.f32.mrb[0].mxu0
        %v1673 = vadd.f32 0.0, %v1672
        %v1674 = vpop.f32.mrb[0].mxu0
        %1675 = vmatprep.mubr.f32.mxu0 0.0
        %1676 = vmatmul.mubr.f32.gmra.mrb[0].mxu0 %v1011
        %v1677 = vpop.f32.mrb[0].mxu0
        %v1678 = vadd.f32 0.0, %v1677
        %v1679 = vpop.f32.mrb[0].mxu0
        %1680 = vmatprep.mubr.f32.mxu0 0.0
        %1681 = vmatmul.mubr.f32.gmra.mrb[0].mxu0 %v1014
        %v1682 = vpop.f32.mrb[0].mxu0
        %v1683 = vadd.f32 0.0, %v1682
        %v1684 = vpop.f32.mrb[0].mxu0
        %1685 = vmatprep.mubr.f32.mxu0 0.0
        %1686 = vmatmul.mubr.f32.gmra.mrb[0].mxu0 %v1017
        %v1687 = vpop.f32.mrb[0].mxu0
        %v1688 = vadd.f32 0.0, %v1687
        %v1689 = vpop.f32.mrb[0].mxu0
        %1690 = vmatprep.mubr.f32.mxu0 0.0
        %1691 = vmatmul.mubr.f32.gmra.mrb[0].mxu0 %v1020
        %v1692 = vpop.f32.mrb[0].mxu0
        %v1693 = vadd.f32 0.0, %v1692
        %v1694 = vpop.f32.mrb[0].mxu0
        %1695 = vmatprep.mubr.f32.mxu0 0.0
        %1696 = vmatmul.mubr.f32.gmra.mrb[0].mxu0 %v1023
        %v1697 = vpop.f32.mrb[0].mxu0
        %v1698 = vadd.f32 0.0, %v1697
        %v1699 = vpop.f32.mrb[0].mxu0
        %1700 = vmatprep.mubr.f32.mxu0 0.0
        %1701 = vmatmul.mubr.f32.gmra.mrb[0].mxu0 %v1026
        %v1702 = vpop.f32.mrb[0].mxu0
        %v1703 = vadd.f32 0.0, %v1702
        %v1704 = vpop.f32.mrb[0].mxu0
        %1705 = vmatprep.mubr.f32.mxu0 0.0
        %1706 = vmatmul.mubr.f32.gmra.mrb[0].mxu0 %v1029
        %v1707 = vpop.f32.mrb[0].mxu0
        %v1708 = vadd.f32 0.0, %v1707
        %v1709 = vpop.f32.mrb[0].mxu0
        %1710 = vmatprep.mubr.f32.mxu0 0.0
        %1711 = vmatmul.mubr.f32.gmra.mrb[0].mxu0 %v1032
        %v1712 = vpop.f32.mrb[0].mxu0
        %v1713 = vadd.f32 0.0, %v1712
        %v1714 = vpop.f32.mrb[0].mxu0
        %1715 = vmatprep.mubr.f32.mxu0 0.0
        %1716 = vmatmul.mubr.f32.gmra.mrb[0].mxu0 %v1035
        %v1717 = vpop.f32.mrb[0].mxu0
        %v1718 = vadd.f32 0.0, %v1717
        %v1719 = vpop.f32.mrb[0].mxu0
        %1720 = vmatprep.mubr.f32.mxu0 0.0
        %1721 = vmatmul.mubr.f32.gmra.mrb[0].mxu0 %v1038
        %v1722 = vpop.f32.mrb[0].mxu0
        %v1723 = vadd.f32 0.0, %v1722
        %v1724 = vpop.f32.mrb[0].mxu0
        %1725 = vmatprep.mubr.f32.mxu0 0.0
        %1726 = vmatmul.mubr.f32.gmra.mrb[0].mxu0 %v1041
        %v1727 = vpop.f32.mrb[0].mxu0
        %v1728 = vadd.f32 0.0, %v1727
        %v1729 = vpop.f32.mrb[0].mxu0
        %1730 = vmatprep.mubr.f32.mxu0 0.0
        %1731 = vmatmul.mubr.f32.gmra.mrb[0].mxu0 %v1044
        %v1732 = vpop.f32.mrb[0].mxu0
        %v1733 = vadd.f32 0.0, %v1732
        %v1734 = vpop.f32.mrb[0].mxu0
        %1735 = vmatprep.mubr.f32.mxu0 0.0
        %1736 = vmatmul.mubr.f32.gmra.mrb[0].mxu0 %v1047
        %v1737 = vpop.f32.mrb[0].mxu0
        %v1738 = vadd.f32 0.0, %v1737
        %v1739 = vpop.f32.mrb[0].mxu0
        %1740 = vmatprep.mubr.f32.mxu0 0.0
        %1741 = vmatmul.mubr.f32.gmra.mrb[0].mxu0 %v1050
        %v1742 = vpop.f32.mrb[0].mxu0
        %v1743 = vadd.f32 0.0, %v1742
        %v1744 = vpop.f32.mrb[0].mxu0
        %1745 = vmatprep.mubr.f32.mxu0 0.0
        %1746 = vmatmul.mubr.f32.gmra.mrb[0].mxu0 %v1053
        %v1747 = vpop.f32.mrb[0].mxu0
        %v1748 = vadd.f32 0.0, %v1747
        %v1749 = vpop.f32.mrb[0].mxu0
        %1750 = vmatprep.mubr.f32.mxu0 0.0
        %1751 = vmatmul.mubr.f32.gmra.mrb[0].mxu0 %v1056
        %v1752 = vpop.f32.mrb[0].mxu0
        %v1753 = vadd.f32 0.0, %v1752
        %v1754 = vpop.f32.mrb[0].mxu0
        %1755 = vmatprep.mubr.f32.mxu0 0.0
        %1756 = vmatmul.mubr.f32.gmra.mrb[0].mxu0 %v1059
        %v1757 = vpop.f32.mrb[0].mxu0
        %v1758 = vadd.f32 0.0, %v1757
        %v1759 = vpop.f32.mrb[0].mxu0
        %1760 = vmatprep.mubr.f32.mxu0 0.0
        %1761 = vmatmul.mubr.f32.gmra.mrb[0].mxu0 %v1062
        %v1762 = vpop.f32.mrb[0].mxu0
        %v1763 = vadd.f32 0.0, %v1762
        %v1764 = vpop.f32.mrb[0].mxu0
        %1765 = vmatprep.mubr.f32.mxu0 0.0
        %1766 = vmatmul.mubr.f32.gmra.mrb[0].mxu0 %v1065
        %v1767 = vpop.f32.mrb[0].mxu0
        %v1768 = vadd.f32 0.0, %v1767
        %v1769 = vpop.f32.mrb[0].mxu0
        %1770 = vmatprep.mubr.f32.mxu0 0.0
        %1771 = vmatmul.mubr.f32.gmra.mrb[0].mxu0 %v1068
        %v1772 = vpop.f32.mrb[0].mxu0
        %v1773 = vadd.f32 0.0, %v1772
        %v1774 = vpop.f32.mrb[0].mxu0
        %1775 = vmatprep.mubr.f32.mxu0 0.0
        %1776 = vmatmul.mubr.f32.gmra.mrb[0].mxu0 %v1071
        %v1777 = vpop.f32.mrb[0].mxu0
        %v1778 = vadd.f32 0.0, %v1777
        %v1779 = vpop.f32.mrb[0].mxu0
        %1780 = vmatprep.mubr.f32.mxu0 0.0
        %1781 = vmatmul.mubr.f32.gmra.mrb[0].mxu0 %v1074
        %v1782 = vpop.f32.mrb[0].mxu0
        %v1783 = vadd.f32 0.0, %v1782
        %v1784 = vpop.f32.mrb[0].mxu0
        %1785 = vmatprep.mubr.f32.mxu0 0.0
        %1786 = vmatmul.mubr.f32.gmra.mrb[0].mxu0 %v1077
        %v1787 = vpop.f32.mrb[0].mxu0
        %v1788 = vadd.f32 0.0, %v1787
        %v1789 = vpop.f32.mrb[0].mxu0
        %1790 = vdwg.mxu0
        %v1791 = vld [vmem:[%s955] sm:$0xff]
        %v1792 = vld [vmem:[%s955 + $0x8] sm:$0xff]
        %v1793 = vld [vmem:[%s955 + $0x10] sm:$0xff]
        %v1794 = vld [vmem:[%s955 + $0x18] sm:$0xff]
        %v1795 = vld [vmem:[%s955 + $0x20] sm:$0xff]
        %v1796 = vld [vmem:[%s955 + $0x28] sm:$0xff]
        %v1797 = vld [vmem:[%s955 + $0x30] sm:$0xff]
        %v1798 = vld [vmem:[%s955 + $0x38] sm:$0xff]
        %v1799 = vld [vmem:[%s955 + $0x40] sm:$0xff]
        %v1800 = vld [vmem:[%s955 + $0x48] sm:$0xff]
        %v1801 = vld [vmem:[%s955 + $0x50] sm:$0xff]
        %v1802 = vld [vmem:[%s955 + $0x58] sm:$0xff]
        %v1803 = vld [vmem:[%s955 + $0x60] sm:$0xff]
        %v1804 = vld [vmem:[%s955 + $0x68] sm:$0xff]
        %v1805 = vld [vmem:[%s955 + $0x70] sm:$0xff]
        %v1806 = vld [vmem:[%s955 + $0x78] sm:$0xff]
        %v1807 = vld [vmem:[%s955 + $0x80] sm:$0xff]
        %v1808 = vld [vmem:[%s955 + $0x88] sm:$0xff]
        %v1809 = vld [vmem:[%s955 + $0x90] sm:$0xff]
        %v1810 = vld [vmem:[%s955 + $0x98] sm:$0xff]
        %v1811 = vld [vmem:[%s955 + $0xa0] sm:$0xff]
        %v1812 = vld [vmem:[%s955 + $0xa8] sm:$0xff]
        %v1813 = vld [vmem:[%s955 + $0xb0] sm:$0xff]
        %v1814 = vld [vmem:[%s955 + $0xb8] sm:$0xff]
        %v1815 = vadd.f32 %v1791, %v1673
        %v1816 = vadd.f32 %v1792, %v1678
        %v1817 = vadd.f32 %v1793, %v1683
        %v1818 = vadd.f32 %v1794, %v1688
        %v1819 = vadd.f32 %v1795, %v1693
        %v1820 = vadd.f32 %v1796, %v1698
        %v1821 = vadd.f32 %v1797, %v1703
        %v1822 = vadd.f32 %v1798, %v1708
        %v1823 = vadd.f32 %v1799, %v1713
        %v1824 = vadd.f32 %v1800, %v1718
        %v1825 = vadd.f32 %v1801, %v1723
        %v1826 = vadd.f32 %v1802, %v1728
        %v1827 = vadd.f32 %v1803, %v1733
        %v1828 = vadd.f32 %v1804, %v1738
        %v1829 = vadd.f32 %v1805, %v1743
        %v1830 = vadd.f32 %v1806, %v1748
        %v1831 = vadd.f32 %v1807, %v1753
        %v1832 = vadd.f32 %v1808, %v1758
        %v1833 = vadd.f32 %v1809, %v1763
        %v1834 = vadd.f32 %v1810, %v1768
        %v1835 = vadd.f32 %v1811, %v1773
        %v1836 = vadd.f32 %v1812, %v1778
        %v1837 = vadd.f32 %v1813, %v1783
        %v1838 = vadd.f32 %v1814, %v1788
        %1839 = vst.msk [vmem:[%s955] sm:$0xff] %vm264, %v1815
        %1840 = vst.msk [vmem:[%s955 + $0x8] sm:$0xff] %vm264, %v1816
        %1841 = vst.msk [vmem:[%s955 + $0x10] sm:$0xff] %vm264, %v1817
        %1842 = vst.msk [vmem:[%s955 + $0x18] sm:$0xff] %vm264, %v1818
        %1843 = vst.msk [vmem:[%s955 + $0x20] sm:$0xff] %vm264, %v1819
        %1844 = vst.msk [vmem:[%s955 + $0x28] sm:$0xff] %vm264, %v1820
        %1845 = vst.msk [vmem:[%s955 + $0x30] sm:$0xff] %vm264, %v1821
        %1846 = vst.msk [vmem:[%s955 + $0x38] sm:$0xff] %vm264, %v1822
        %1847 = vst.msk [vmem:[%s955 + $0x40] sm:$0xff] %vm264, %v1823
        %1848 = vst.msk [vmem:[%s955 + $0x48] sm:$0xff] %vm264, %v1824
        %1849 = vst.msk [vmem:[%s955 + $0x50] sm:$0xff] %vm264, %v1825
        %1850 = vst.msk [vmem:[%s955 + $0x58] sm:$0xff] %vm264, %v1826
        %1851 = vst.msk [vmem:[%s955 + $0x60] sm:$0xff] %vm264, %v1827
        %1852 = vst.msk [vmem:[%s955 + $0x68] sm:$0xff] %vm264, %v1828
        %1853 = vst.msk [vmem:[%s955 + $0x70] sm:$0xff] %vm264, %v1829
        %1854 = vst.msk [vmem:[%s955 + $0x78] sm:$0xff] %vm264, %v1830
        %1855 = vst.msk [vmem:[%s955 + $0x80] sm:$0xff] %vm264, %v1831
        %1856 = vst.msk [vmem:[%s955 + $0x88] sm:$0xff] %vm264, %v1832
        %1857 = vst.msk [vmem:[%s955 + $0x90] sm:$0xff] %vm264, %v1833
        %1858 = vst.msk [vmem:[%s955 + $0x98] sm:$0xff] %vm264, %v1834
        %1859 = vst.msk [vmem:[%s955 + $0xa0] sm:$0xff] %vm264, %v1835
        %1860 = vst.msk [vmem:[%s955 + $0xa8] sm:$0xff] %vm264, %v1836
        %1861 = vst.msk [vmem:[%s955 + $0xb0] sm:$0xff] %vm264, %v1837
        %1862 = vst.msk [vmem:[%s955 + $0xb8] sm:$0xff] %vm264, %v1838
        %s1863 = scalar_lea.vmem %s205, 48 [#allocation4]
        %v1864 = vld [vmem:[%s1863] sm:$0xff]
        %v1865 = vld [vmem:[%s1863 + $0x8] sm:$0xff]
        %v1866 = vld [vmem:[%s1863 + $0x10] sm:$0xff]
        %v1867 = vld [vmem:[%s1863 + $0x18] sm:$0xff]
        %v1868 = vld [vmem:[%s1863 + $0x20] sm:$0xff]
        %v1869 = vld [vmem:[%s1863 + $0x28] sm:$0xff]
        %v1870 = vld [vmem:[%s1863 + $0x30] sm:$0xff]
        %v1871 = vld [vmem:[%s1863 + $0x38] sm:$0xff]
        %v1872 = vld [vmem:[%s1863 + $0x40] sm:$0xff]
        %v1873 = vld [vmem:[%s1863 + $0x48] sm:$0xff]
        %v1874 = vld [vmem:[%s1863 + $0x50] sm:$0xff]
        %v1875 = vld [vmem:[%s1863 + $0x58] sm:$0xff]
        %v1876 = vld [vmem:[%s1863 + $0x60] sm:$0xff]
        %v1877 = vld [vmem:[%s1863 + $0x68] sm:$0xff]
        %v1878 = vld [vmem:[%s1863 + $0x70] sm:$0xff]
        %v1879 = vld [vmem:[%s1863 + $0x78] sm:$0xff]
        %v1880 = vld [vmem:[%s1863 + $0x80] sm:$0xff]
        %v1881 = vld [vmem:[%s1863 + $0x88] sm:$0xff]
        %v1882 = vld [vmem:[%s1863 + $0x90] sm:$0xff]
        %v1883 = vld [vmem:[%s1863 + $0x98] sm:$0xff]
        %v1884 = vld [vmem:[%s1863 + $0xa0] sm:$0xff]
        %v1885 = vld [vmem:[%s1863 + $0xa8] sm:$0xff]
        %v1886 = vld [vmem:[%s1863 + $0xb0] sm:$0xff]
        %v1887 = vld [vmem:[%s1863 + $0xb8] sm:$0xff]
        %s1888 = scalar_lea.vmem [#allocation7], 24
        %v1889 = vld [vmem:[%s1888] sm:$0xf]
        %v1891 = vsel %vm264, %v1864, 0
        %v1894 = vsel %vm264, %v1865, 0
        %v1897 = vsel %vm264, %v1866, 0
        %v1900 = vsel %vm264, %v1867, 0
        %v1903 = vsel %vm264, %v1868, 0
        %v1906 = vsel %vm264, %v1869, 0
        %v1909 = vsel %vm264, %v1870, 0
        %v1912 = vsel %vm264, %v1871, 0
        %v1915 = vsel %vm264, %v1872, 0
        %v1918 = vsel %vm264, %v1873, 0
        %v1921 = vsel %vm264, %v1874, 0
        %v1924 = vsel %vm264, %v1875, 0
        %v1927 = vsel %vm264, %v1876, 0
        %v1930 = vsel %vm264, %v1877, 0
        %v1933 = vsel %vm264, %v1878, 0
        %v1936 = vsel %vm264, %v1879, 0
        %v1939 = vsel %vm264, %v1880, 0
        %v1942 = vsel %vm264, %v1881, 0
        %v1945 = vsel %vm264, %v1882, 0
        %v1948 = vsel %vm264, %v1883, 0
        %v1951 = vsel %vm264, %v1884, 0
        %v1954 = vsel %vm264, %v1885, 0
        %v1957 = vsel %vm264, %v1886, 0
        %v1960 = vsel %vm264, %v1887, 0
        %v1963 = vsel %vm337, %v1889, 0
        %1965 = vmatprep.subr.mxu0 0.0
        %1966 = vmatpush1.msra.mxu0 %v1963
        %1967 = vmatprep.subr.mxu0 0.0
        %1968 = vmatpush1.msra.mxu0 0.0
        %1969 = vmatprep.subr.mxu0 0.0
        %1970 = vmatpush1.msra.mxu0 0.0
        %1971 = vmatprep.subr.mxu0 0.0
        %1972 = vmatpush1.msra.mxu0 0.0
        %1973 = vmatprep.subr.mxu0 0.0
        %1974 = vmatpush1.msra.mxu0 0.0
        %1975 = vmatprep.subr.mxu0 0.0
        %1976 = vmatpush1.msra.mxu0 0.0
        %1977 = vmatprep.subr.mxu0 0.0
        %1978 = vmatpush1.msra.mxu0 0.0
        %1979 = vmatprep.subr.mxu0 0.0
        %1980 = vmatpush1.msra.mxu0 0.0
        %1981 = vmatprep.subr.mxu0 0.0
        %1982 = vmatpush1.msra.mxu0 0.0
        %1983 = vmatprep.subr.mxu0 0.0
        %1984 = vmatpush1.msra.mxu0 0.0
        %1985 = vmatprep.subr.mxu0 0.0
        %1986 = vmatpush1.msra.mxu0 0.0
        %1987 = vmatprep.subr.mxu0 0.0
        %1988 = vmatpush1.msra.mxu0 0.0
        %1989 = vmatprep.subr.mxu0 0.0
        %1990 = vmatpush1.msra.mxu0 0.0
        %1991 = vmatprep.subr.mxu0 0.0
        %1992 = vmatpush1.msra.mxu0 0.0
        %1993 = vmatprep.subr.mxu0 0.0
        %1994 = vmatpush1.msra.mxu0 0.0
        %1995 = vmatprep.subr.mxu0 0.0
        %1996 = vmatpush1.msra.mxu0 0.0
        %1997 = vmatprep.subr.mxu0 0.0
        %1998 = vmatpush1.msra.mxu0 0.0
        %1999 = vmatprep.subr.mxu0 0.0
        %2000 = vmatpush1.msra.mxu0 0.0
        %2001 = vmatprep.subr.mxu0 0.0
        %2002 = vmatpush1.msra.mxu0 0.0
        %2003 = vmatprep.subr.mxu0 0.0
        %2004 = vmatpush1.msra.mxu0 0.0
        %2005 = vmatprep.subr.mxu0 0.0
        %2006 = vmatpush1.msra.mxu0 0.0
        %2007 = vmatprep.subr.mxu0 0.0
        %2008 = vmatpush1.msra.mxu0 0.0
        %2009 = vmatprep.subr.mxu0 0.0
        %2010 = vmatpush1.msra.mxu0 0.0
        %2011 = vmatprep.subr.mxu0 0.0
        %2012 = vmatpush1.msra.mxu0 0.0
        %2013 = vmatprep.subr.mxu0 0.0
        %2014 = vmatpush1.msra.mxu0 0.0
        %2015 = vmatprep.subr.mxu0 0.0
        %2016 = vmatpush1.msra.mxu0 0.0
        %2017 = vmatprep.subr.mxu0 0.0
        %2018 = vmatpush1.msra.mxu0 0.0
        %2019 = vmatprep.subr.mxu0 0.0
        %2020 = vmatpush1.msra.mxu0 0.0
        %2021 = vmatprep.subr.mxu0 0.0
        %2022 = vmatpush1.msra.mxu0 0.0
        %2023 = vmatprep.subr.mxu0 0.0
        %2024 = vmatpush1.msra.mxu0 0.0
        %2025 = vmatprep.subr.mxu0 0.0
        %2026 = vmatpush1.msra.mxu0 0.0
        %2027 = vmatprep.subr.mxu0 0.0
        %2028 = vmatpush1.msra.mxu0 0.0
        %2029 = vmatprep.mubr.f32.mxu0 0.0
        %2030 = vmatmul.mubr.f32.gmra.mrb[0].mxu0 %v1891
        %v2031 = vpop.f32.mrb[0].mxu0
        %v2032 = vadd.f32 0.0, %v2031
        %v2033 = vpop.f32.mrb[0].mxu0
        %2034 = vmatprep.mubr.f32.mxu0 0.0
        %2035 = vmatmul.mubr.f32.gmra.mrb[0].mxu0 %v1894
        %v2036 = vpop.f32.mrb[0].mxu0
        %v2037 = vadd.f32 0.0, %v2036
        %v2038 = vpop.f32.mrb[0].mxu0
        %2039 = vmatprep.mubr.f32.mxu0 0.0
        %2040 = vmatmul.mubr.f32.gmra.mrb[0].mxu0 %v1897
        %v2041 = vpop.f32.mrb[0].mxu0
        %v2042 = vadd.f32 0.0, %v2041
        %v2043 = vpop.f32.mrb[0].mxu0
        %2044 = vmatprep.mubr.f32.mxu0 0.0
        %2045 = vmatmul.mubr.f32.gmra.mrb[0].mxu0 %v1900
        %v2046 = vpop.f32.mrb[0].mxu0
        %v2047 = vadd.f32 0.0, %v2046
        %v2048 = vpop.f32.mrb[0].mxu0
        %2049 = vmatprep.mubr.f32.mxu0 0.0
        %2050 = vmatmul.mubr.f32.gmra.mrb[0].mxu0 %v1903
        %v2051 = vpop.f32.mrb[0].mxu0
        %v2052 = vadd.f32 0.0, %v2051
        %v2053 = vpop.f32.mrb[0].mxu0
        %2054 = vmatprep.mubr.f32.mxu0 0.0
        %2055 = vmatmul.mubr.f32.gmra.mrb[0].mxu0 %v1906
        %v2056 = vpop.f32.mrb[0].mxu0
        %v2057 = vadd.f32 0.0, %v2056
        %v2058 = vpop.f32.mrb[0].mxu0
        %2059 = vmatprep.mubr.f32.mxu0 0.0
        %2060 = vmatmul.mubr.f32.gmra.mrb[0].mxu0 %v1909
        %v2061 = vpop.f32.mrb[0].mxu0
        %v2062 = vadd.f32 0.0, %v2061
        %v2063 = vpop.f32.mrb[0].mxu0
        %2064 = vmatprep.mubr.f32.mxu0 0.0
        %2065 = vmatmul.mubr.f32.gmra.mrb[0].mxu0 %v1912
        %v2066 = vpop.f32.mrb[0].mxu0
        %v2067 = vadd.f32 0.0, %v2066
        %v2068 = vpop.f32.mrb[0].mxu0
        %2069 = vmatprep.mubr.f32.mxu0 0.0
        %2070 = vmatmul.mubr.f32.gmra.mrb[0].mxu0 %v1915
        %v2071 = vpop.f32.mrb[0].mxu0
        %v2072 = vadd.f32 0.0, %v2071
        %v2073 = vpop.f32.mrb[0].mxu0
        %2074 = vmatprep.mubr.f32.mxu0 0.0
        %2075 = vmatmul.mubr.f32.gmra.mrb[0].mxu0 %v1918
        %v2076 = vpop.f32.mrb[0].mxu0
        %v2077 = vadd.f32 0.0, %v2076
        %v2078 = vpop.f32.mrb[0].mxu0
        %2079 = vmatprep.mubr.f32.mxu0 0.0
        %2080 = vmatmul.mubr.f32.gmra.mrb[0].mxu0 %v1921
        %v2081 = vpop.f32.mrb[0].mxu0
        %v2082 = vadd.f32 0.0, %v2081
        %v2083 = vpop.f32.mrb[0].mxu0
        %2084 = vmatprep.mubr.f32.mxu0 0.0
        %2085 = vmatmul.mubr.f32.gmra.mrb[0].mxu0 %v1924
        %v2086 = vpop.f32.mrb[0].mxu0
        %v2087 = vadd.f32 0.0, %v2086
        %v2088 = vpop.f32.mrb[0].mxu0
        %2089 = vmatprep.mubr.f32.mxu0 0.0
        %2090 = vmatmul.mubr.f32.gmra.mrb[0].mxu0 %v1927
        %v2091 = vpop.f32.mrb[0].mxu0
        %v2092 = vadd.f32 0.0, %v2091
        %v2093 = vpop.f32.mrb[0].mxu0
        %2094 = vmatprep.mubr.f32.mxu0 0.0
        %2095 = vmatmul.mubr.f32.gmra.mrb[0].mxu0 %v1930
        %v2096 = vpop.f32.mrb[0].mxu0
        %v2097 = vadd.f32 0.0, %v2096
        %v2098 = vpop.f32.mrb[0].mxu0
        %2099 = vmatprep.mubr.f32.mxu0 0.0
        %2100 = vmatmul.mubr.f32.gmra.mrb[0].mxu0 %v1933
        %v2101 = vpop.f32.mrb[0].mxu0
        %v2102 = vadd.f32 0.0, %v2101
        %v2103 = vpop.f32.mrb[0].mxu0
        %2104 = vmatprep.mubr.f32.mxu0 0.0
        %2105 = vmatmul.mubr.f32.gmra.mrb[0].mxu0 %v1936
        %v2106 = vpop.f32.mrb[0].mxu0
        %v2107 = vadd.f32 0.0, %v2106
        %v2108 = vpop.f32.mrb[0].mxu0
        %2109 = vmatprep.mubr.f32.mxu0 0.0
        %2110 = vmatmul.mubr.f32.gmra.mrb[0].mxu0 %v1939
        %v2111 = vpop.f32.mrb[0].mxu0
        %v2112 = vadd.f32 0.0, %v2111
        %v2113 = vpop.f32.mrb[0].mxu0
        %2114 = vmatprep.mubr.f32.mxu0 0.0
        %2115 = vmatmul.mubr.f32.gmra.mrb[0].mxu0 %v1942
        %v2116 = vpop.f32.mrb[0].mxu0
        %v2117 = vadd.f32 0.0, %v2116
        %v2118 = vpop.f32.mrb[0].mxu0
        %2119 = vmatprep.mubr.f32.mxu0 0.0
        %2120 = vmatmul.mubr.f32.gmra.mrb[0].mxu0 %v1945
        %v2121 = vpop.f32.mrb[0].mxu0
        %v2122 = vadd.f32 0.0, %v2121
        %v2123 = vpop.f32.mrb[0].mxu0
        %2124 = vmatprep.mubr.f32.mxu0 0.0
        %2125 = vmatmul.mubr.f32.gmra.mrb[0].mxu0 %v1948
        %v2126 = vpop.f32.mrb[0].mxu0
        %v2127 = vadd.f32 0.0, %v2126
        %v2128 = vpop.f32.mrb[0].mxu0
        %2129 = vmatprep.mubr.f32.mxu0 0.0
        %2130 = vmatmul.mubr.f32.gmra.mrb[0].mxu0 %v1951
        %v2131 = vpop.f32.mrb[0].mxu0
        %v2132 = vadd.f32 0.0, %v2131
        %v2133 = vpop.f32.mrb[0].mxu0
        %2134 = vmatprep.mubr.f32.mxu0 0.0
        %2135 = vmatmul.mubr.f32.gmra.mrb[0].mxu0 %v1954
        %v2136 = vpop.f32.mrb[0].mxu0
        %v2137 = vadd.f32 0.0, %v2136
        %v2138 = vpop.f32.mrb[0].mxu0
        %2139 = vmatprep.mubr.f32.mxu0 0.0
        %2140 = vmatmul.mubr.f32.gmra.mrb[0].mxu0 %v1957
        %v2141 = vpop.f32.mrb[0].mxu0
        %v2142 = vadd.f32 0.0, %v2141
        %v2143 = vpop.f32.mrb[0].mxu0
        %2144 = vmatprep.mubr.f32.mxu0 0.0
        %2145 = vmatmul.mubr.f32.gmra.mrb[0].mxu0 %v1960
        %v2146 = vpop.f32.mrb[0].mxu0
        %v2147 = vadd.f32 0.0, %v2146
        %v2148 = vpop.f32.mrb[0].mxu0
        %2149 = vdwg.mxu0
        %v2150 = vld [vmem:[#allocation2] sm:$0xff]
        %v2151 = vld [vmem:[#allocation2 + $0x8] sm:$0xff]
        %v2152 = vld [vmem:[#allocation2 + $0x10] sm:$0xff]
        %v2153 = vld [vmem:[#allocation2 + $0x18] sm:$0xff]
        %v2154 = vld [vmem:[#allocation2 + $0x20] sm:$0xff]
        %v2155 = vld [vmem:[#allocation2 + $0x28] sm:$0xff]
        %v2156 = vld [vmem:[#allocation2 + $0x30] sm:$0xff]
        %v2157 = vld [vmem:[#allocation2 + $0x38] sm:$0xff]
        %v2158 = vld [vmem:[#allocation2 + $0x40] sm:$0xff]
        %v2159 = vld [vmem:[#allocation2 + $0x48] sm:$0xff]
        %v2160 = vld [vmem:[#allocation2 + $0x50] sm:$0xff]
        %v2161 = vld [vmem:[#allocation2 + $0x58] sm:$0xff]
        %v2162 = vld [vmem:[#allocation2 + $0x60] sm:$0xff]
        %v2163 = vld [vmem:[#allocation2 + $0x68] sm:$0xff]
        %v2164 = vld [vmem:[#allocation2 + $0x70] sm:$0xff]
        %v2165 = vld [vmem:[#allocation2 + $0x78] sm:$0xff]
        %v2166 = vld [vmem:[#allocation2 + $0x80] sm:$0xff]
        %v2167 = vld [vmem:[#allocation2 + $0x88] sm:$0xff]
        %v2168 = vld [vmem:[#allocation2 + $0x90] sm:$0xff]
        %v2169 = vld [vmem:[#allocation2 + $0x98] sm:$0xff]
        %v2170 = vld [vmem:[#allocation2 + $0xa0] sm:$0xff]
        %v2171 = vld [vmem:[#allocation2 + $0xa8] sm:$0xff]
        %v2172 = vld [vmem:[#allocation2 + $0xb0] sm:$0xff]
        %v2173 = vld [vmem:[#allocation2 + $0xb8] sm:$0xff]
        %v2174 = vadd.f32 %v2150, %v2032
        %v2175 = vadd.f32 %v2151, %v2037
        %v2176 = vadd.f32 %v2152, %v2042
        %v2177 = vadd.f32 %v2153, %v2047
        %v2178 = vadd.f32 %v2154, %v2052
        %v2179 = vadd.f32 %v2155, %v2057
        %v2180 = vadd.f32 %v2156, %v2062
        %v2181 = vadd.f32 %v2157, %v2067
        %v2182 = vadd.f32 %v2158, %v2072
        %v2183 = vadd.f32 %v2159, %v2077
        %v2184 = vadd.f32 %v2160, %v2082
        %v2185 = vadd.f32 %v2161, %v2087
        %v2186 = vadd.f32 %v2162, %v2092
        %v2187 = vadd.f32 %v2163, %v2097
        %v2188 = vadd.f32 %v2164, %v2102
        %v2189 = vadd.f32 %v2165, %v2107
        %v2190 = vadd.f32 %v2166, %v2112
        %v2191 = vadd.f32 %v2167, %v2117
        %v2192 = vadd.f32 %v2168, %v2122
        %v2193 = vadd.f32 %v2169, %v2127
        %v2194 = vadd.f32 %v2170, %v2132
        %v2195 = vadd.f32 %v2171, %v2137
        %v2196 = vadd.f32 %v2172, %v2142
        %v2197 = vadd.f32 %v2173, %v2147
        %2198 = vst.msk [vmem:[#allocation2] sm:$0xff] %vm264, %v2174
        %2199 = vst.msk [vmem:[#allocation2 + $0x8] sm:$0xff] %vm264, %v2175
        %2200 = vst.msk [vmem:[#allocation2 + $0x10] sm:$0xff] %vm264, %v2176
        %2201 = vst.msk [vmem:[#allocation2 + $0x18] sm:$0xff] %vm264, %v2177
        %2202 = vst.msk [vmem:[#allocation2 + $0x20] sm:$0xff] %vm264, %v2178
        %2203 = vst.msk [vmem:[#allocation2 + $0x28] sm:$0xff] %vm264, %v2179
        %2204 = vst.msk [vmem:[#allocation2 + $0x30] sm:$0xff] %vm264, %v2180
        %2205 = vst.msk [vmem:[#allocation2 + $0x38] sm:$0xff] %vm264, %v2181
        %2206 = vst.msk [vmem:[#allocation2 + $0x40] sm:$0xff] %vm264, %v2182
        %2207 = vst.msk [vmem:[#allocation2 + $0x48] sm:$0xff] %vm264, %v2183
        %2208 = vst.msk [vmem:[#allocation2 + $0x50] sm:$0xff] %vm264, %v2184
        %2209 = vst.msk [vmem:[#allocation2 + $0x58] sm:$0xff] %vm264, %v2185
        %2210 = vst.msk [vmem:[#allocation2 + $0x60] sm:$0xff] %vm264, %v2186
        %2211 = vst.msk [vmem:[#allocation2 + $0x68] sm:$0xff] %vm264, %v2187
        %2212 = vst.msk [vmem:[#allocation2 + $0x70] sm:$0xff] %vm264, %v2188
        %2213 = vst.msk [vmem:[#allocation2 + $0x78] sm:$0xff] %vm264, %v2189
        %2214 = vst.msk [vmem:[#allocation2 + $0x80] sm:$0xff] %vm264, %v2190
        %2215 = vst.msk [vmem:[#allocation2 + $0x88] sm:$0xff] %vm264, %v2191
        %2216 = vst.msk [vmem:[#allocation2 + $0x90] sm:$0xff] %vm264, %v2192
        %2217 = vst.msk [vmem:[#allocation2 + $0x98] sm:$0xff] %vm264, %v2193
        %2218 = vst.msk [vmem:[#allocation2 + $0xa0] sm:$0xff] %vm264, %v2194
        %2219 = vst.msk [vmem:[#allocation2 + $0xa8] sm:$0xff] %vm264, %v2195
        %2220 = vst.msk [vmem:[#allocation2 + $0xb0] sm:$0xff] %vm264, %v2196
        %2221 = vst.msk [vmem:[#allocation2 + $0xb8] sm:$0xff] %vm264, %v2197
        %s2222 = scalar_lea.vmem [#allocation7], 28
        %v2223 = vld [vmem:[%s2222] sm:$0xf]
        %v2225 = vsel %vm337, %v2223, 0
        %2227 = vmatprep.subr.mxu0 0.0
        %2228 = vmatpush1.msra.mxu0 %v2225
        %2229 = vmatprep.subr.mxu0 0.0
        %2230 = vmatpush1.msra.mxu0 0.0
        %2231 = vmatprep.subr.mxu0 0.0
        %2232 = vmatpush1.msra.mxu0 0.0
        %2233 = vmatprep.subr.mxu0 0.0
        %2234 = vmatpush1.msra.mxu0 0.0
        %2235 = vmatprep.subr.mxu0 0.0
        %2236 = vmatpush1.msra.mxu0 0.0
        %2237 = vmatprep.subr.mxu0 0.0
        %2238 = vmatpush1.msra.mxu0 0.0
        %2239 = vmatprep.subr.mxu0 0.0
        %2240 = vmatpush1.msra.mxu0 0.0
        %2241 = vmatprep.subr.mxu0 0.0
        %2242 = vmatpush1.msra.mxu0 0.0
        %2243 = vmatprep.subr.mxu0 0.0
        %2244 = vmatpush1.msra.mxu0 0.0
        %2245 = vmatprep.subr.mxu0 0.0
        %2246 = vmatpush1.msra.mxu0 0.0
        %2247 = vmatprep.subr.mxu0 0.0
        %2248 = vmatpush1.msra.mxu0 0.0
        %2249 = vmatprep.subr.mxu0 0.0
        %2250 = vmatpush1.msra.mxu0 0.0
        %2251 = vmatprep.subr.mxu0 0.0
        %2252 = vmatpush1.msra.mxu0 0.0
        %2253 = vmatprep.subr.mxu0 0.0
        %2254 = vmatpush1.msra.mxu0 0.0
        %2255 = vmatprep.subr.mxu0 0.0
        %2256 = vmatpush1.msra.mxu0 0.0
        %2257 = vmatprep.subr.mxu0 0.0
        %2258 = vmatpush1.msra.mxu0 0.0
        %2259 = vmatprep.subr.mxu0 0.0
        %2260 = vmatpush1.msra.mxu0 0.0
        %2261 = vmatprep.subr.mxu0 0.0
        %2262 = vmatpush1.msra.mxu0 0.0
        %2263 = vmatprep.subr.mxu0 0.0
        %2264 = vmatpush1.msra.mxu0 0.0
        %2265 = vmatprep.subr.mxu0 0.0
        %2266 = vmatpush1.msra.mxu0 0.0
        %2267 = vmatprep.subr.mxu0 0.0
        %2268 = vmatpush1.msra.mxu0 0.0
        %2269 = vmatprep.subr.mxu0 0.0
        %2270 = vmatpush1.msra.mxu0 0.0
        %2271 = vmatprep.subr.mxu0 0.0
        %2272 = vmatpush1.msra.mxu0 0.0
        %2273 = vmatprep.subr.mxu0 0.0
        %2274 = vmatpush1.msra.mxu0 0.0
        %2275 = vmatprep.subr.mxu0 0.0
        %2276 = vmatpush1.msra.mxu0 0.0
        %2277 = vmatprep.subr.mxu0 0.0
        %2278 = vmatpush1.msra.mxu0 0.0
        %2279 = vmatprep.subr.mxu0 0.0
        %2280 = vmatpush1.msra.mxu0 0.0
        %2281 = vmatprep.subr.mxu0 0.0
        %2282 = vmatpush1.msra.mxu0 0.0
        %2283 = vmatprep.subr.mxu0 0.0
        %2284 = vmatpush1.msra.mxu0 0.0
        %2285 = vmatprep.subr.mxu0 0.0
        %2286 = vmatpush1.msra.mxu0 0.0
        %2287 = vmatprep.subr.mxu0 0.0
        %2288 = vmatpush1.msra.mxu0 0.0
        %2289 = vmatprep.subr.mxu0 0.0
        %2290 = vmatpush1.msra.mxu0 0.0
        %2291 = vmatprep.mubr.f32.mxu0 0.0
        %2292 = vmatmul.mubr.f32.gmra.mrb[0].mxu0 %v1891
        %v2293 = vpop.f32.mrb[0].mxu0
        %v2294 = vadd.f32 0.0, %v2293
        %v2295 = vpop.f32.mrb[0].mxu0
        %2296 = vmatprep.mubr.f32.mxu0 0.0
        %2297 = vmatmul.mubr.f32.gmra.mrb[0].mxu0 %v1894
        %v2298 = vpop.f32.mrb[0].mxu0
        %v2299 = vadd.f32 0.0, %v2298
        %v2300 = vpop.f32.mrb[0].mxu0
        %2301 = vmatprep.mubr.f32.mxu0 0.0
        %2302 = vmatmul.mubr.f32.gmra.mrb[0].mxu0 %v1897
        %v2303 = vpop.f32.mrb[0].mxu0
        %v2304 = vadd.f32 0.0, %v2303
        %v2305 = vpop.f32.mrb[0].mxu0
        %2306 = vmatprep.mubr.f32.mxu0 0.0
        %2307 = vmatmul.mubr.f32.gmra.mrb[0].mxu0 %v1900
        %v2308 = vpop.f32.mrb[0].mxu0
        %v2309 = vadd.f32 0.0, %v2308
        %v2310 = vpop.f32.mrb[0].mxu0
        %2311 = vmatprep.mubr.f32.mxu0 0.0
        %2312 = vmatmul.mubr.f32.gmra.mrb[0].mxu0 %v1903
        %v2313 = vpop.f32.mrb[0].mxu0
        %v2314 = vadd.f32 0.0, %v2313
        %v2315 = vpop.f32.mrb[0].mxu0
        %2316 = vmatprep.mubr.f32.mxu0 0.0
        %2317 = vmatmul.mubr.f32.gmra.mrb[0].mxu0 %v1906
        %v2318 = vpop.f32.mrb[0].mxu0
        %v2319 = vadd.f32 0.0, %v2318
        %v2320 = vpop.f32.mrb[0].mxu0
        %2321 = vmatprep.mubr.f32.mxu0 0.0
        %2322 = vmatmul.mubr.f32.gmra.mrb[0].mxu0 %v1909
        %v2323 = vpop.f32.mrb[0].mxu0
        %v2324 = vadd.f32 0.0, %v2323
        %v2325 = vpop.f32.mrb[0].mxu0
        %2326 = vmatprep.mubr.f32.mxu0 0.0
        %2327 = vmatmul.mubr.f32.gmra.mrb[0].mxu0 %v1912
        %v2328 = vpop.f32.mrb[0].mxu0
        %v2329 = vadd.f32 0.0, %v2328
        %v2330 = vpop.f32.mrb[0].mxu0
        %2331 = vmatprep.mubr.f32.mxu0 0.0
        %2332 = vmatmul.mubr.f32.gmra.mrb[0].mxu0 %v1915
        %v2333 = vpop.f32.mrb[0].mxu0
        %v2334 = vadd.f32 0.0, %v2333
        %v2335 = vpop.f32.mrb[0].mxu0
        %2336 = vmatprep.mubr.f32.mxu0 0.0
        %2337 = vmatmul.mubr.f32.gmra.mrb[0].mxu0 %v1918
        %v2338 = vpop.f32.mrb[0].mxu0
        %v2339 = vadd.f32 0.0, %v2338
        %v2340 = vpop.f32.mrb[0].mxu0
        %2341 = vmatprep.mubr.f32.mxu0 0.0
        %2342 = vmatmul.mubr.f32.gmra.mrb[0].mxu0 %v1921
        %v2343 = vpop.f32.mrb[0].mxu0
        %v2344 = vadd.f32 0.0, %v2343
        %v2345 = vpop.f32.mrb[0].mxu0
        %2346 = vmatprep.mubr.f32.mxu0 0.0
        %2347 = vmatmul.mubr.f32.gmra.mrb[0].mxu0 %v1924
        %v2348 = vpop.f32.mrb[0].mxu0
        %v2349 = vadd.f32 0.0, %v2348
        %v2350 = vpop.f32.mrb[0].mxu0
        %2351 = vmatprep.mubr.f32.mxu0 0.0
        %2352 = vmatmul.mubr.f32.gmra.mrb[0].mxu0 %v1927
        %v2353 = vpop.f32.mrb[0].mxu0
        %v2354 = vadd.f32 0.0, %v2353
        %v2355 = vpop.f32.mrb[0].mxu0
        %2356 = vmatprep.mubr.f32.mxu0 0.0
        %2357 = vmatmul.mubr.f32.gmra.mrb[0].mxu0 %v1930
        %v2358 = vpop.f32.mrb[0].mxu0
        %v2359 = vadd.f32 0.0, %v2358
        %v2360 = vpop.f32.mrb[0].mxu0
        %2361 = vmatprep.mubr.f32.mxu0 0.0
        %2362 = vmatmul.mubr.f32.gmra.mrb[0].mxu0 %v1933
        %v2363 = vpop.f32.mrb[0].mxu0
        %v2364 = vadd.f32 0.0, %v2363
        %v2365 = vpop.f32.mrb[0].mxu0
        %2366 = vmatprep.mubr.f32.mxu0 0.0
        %2367 = vmatmul.mubr.f32.gmra.mrb[0].mxu0 %v1936
        %v2368 = vpop.f32.mrb[0].mxu0
        %v2369 = vadd.f32 0.0, %v2368
        %v2370 = vpop.f32.mrb[0].mxu0
        %2371 = vmatprep.mubr.f32.mxu0 0.0
        %2372 = vmatmul.mubr.f32.gmra.mrb[0].mxu0 %v1939
        %v2373 = vpop.f32.mrb[0].mxu0
        %v2374 = vadd.f32 0.0, %v2373
        %v2375 = vpop.f32.mrb[0].mxu0
        %2376 = vmatprep.mubr.f32.mxu0 0.0
        %2377 = vmatmul.mubr.f32.gmra.mrb[0].mxu0 %v1942
        %v2378 = vpop.f32.mrb[0].mxu0
        %v2379 = vadd.f32 0.0, %v2378
        %v2380 = vpop.f32.mrb[0].mxu0
        %2381 = vmatprep.mubr.f32.mxu0 0.0
        %2382 = vmatmul.mubr.f32.gmra.mrb[0].mxu0 %v1945
        %v2383 = vpop.f32.mrb[0].mxu0
        %v2384 = vadd.f32 0.0, %v2383
        %v2385 = vpop.f32.mrb[0].mxu0
        %2386 = vmatprep.mubr.f32.mxu0 0.0
        %2387 = vmatmul.mubr.f32.gmra.mrb[0].mxu0 %v1948
        %v2388 = vpop.f32.mrb[0].mxu0
        %v2389 = vadd.f32 0.0, %v2388
        %v2390 = vpop.f32.mrb[0].mxu0
        %2391 = vmatprep.mubr.f32.mxu0 0.0
        %2392 = vmatmul.mubr.f32.gmra.mrb[0].mxu0 %v1951
        %v2393 = vpop.f32.mrb[0].mxu0
        %v2394 = vadd.f32 0.0, %v2393
        %v2395 = vpop.f32.mrb[0].mxu0
        %2396 = vmatprep.mubr.f32.mxu0 0.0
        %2397 = vmatmul.mubr.f32.gmra.mrb[0].mxu0 %v1954
        %v2398 = vpop.f32.mrb[0].mxu0
        %v2399 = vadd.f32 0.0, %v2398
        %v2400 = vpop.f32.mrb[0].mxu0
        %2401 = vmatprep.mubr.f32.mxu0 0.0
        %2402 = vmatmul.mubr.f32.gmra.mrb[0].mxu0 %v1957
        %v2403 = vpop.f32.mrb[0].mxu0
        %v2404 = vadd.f32 0.0, %v2403
        %v2405 = vpop.f32.mrb[0].mxu0
        %2406 = vmatprep.mubr.f32.mxu0 0.0
        %2407 = vmatmul.mubr.f32.gmra.mrb[0].mxu0 %v1960
        %v2408 = vpop.f32.mrb[0].mxu0
        %v2409 = vadd.f32 0.0, %v2408
        %v2410 = vpop.f32.mrb[0].mxu0
        %2411 = vdwg.mxu0
        %v2412 = vld [vmem:[%s740] sm:$0xff]
        %v2413 = vld [vmem:[%s740 + $0x8] sm:$0xff]
        %v2414 = vld [vmem:[%s740 + $0x10] sm:$0xff]
        %v2415 = vld [vmem:[%s740 + $0x18] sm:$0xff]
        %v2416 = vld [vmem:[%s740 + $0x20] sm:$0xff]
        %v2417 = vld [vmem:[%s740 + $0x28] sm:$0xff]
        %v2418 = vld [vmem:[%s740 + $0x30] sm:$0xff]
        %v2419 = vld [vmem:[%s740 + $0x38] sm:$0xff]
        %v2420 = vld [vmem:[%s740 + $0x40] sm:$0xff]
        %v2421 = vld [vmem:[%s740 + $0x48] sm:$0xff]
        %v2422 = vld [vmem:[%s740 + $0x50] sm:$0xff]
        %v2423 = vld [vmem:[%s740 + $0x58] sm:$0xff]
        %v2424 = vld [vmem:[%s740 + $0x60] sm:$0xff]
        %v2425 = vld [vmem:[%s740 + $0x68] sm:$0xff]
        %v2426 = vld [vmem:[%s740 + $0x70] sm:$0xff]
        %v2427 = vld [vmem:[%s740 + $0x78] sm:$0xff]
        %v2428 = vld [vmem:[%s740 + $0x80] sm:$0xff]
        %v2429 = vld [vmem:[%s740 + $0x88] sm:$0xff]
        %v2430 = vld [vmem:[%s740 + $0x90] sm:$0xff]
        %v2431 = vld [vmem:[%s740 + $0x98] sm:$0xff]
        %v2432 = vld [vmem:[%s740 + $0xa0] sm:$0xff]
        %v2433 = vld [vmem:[%s740 + $0xa8] sm:$0xff]
        %v2434 = vld [vmem:[%s740 + $0xb0] sm:$0xff]
        %v2435 = vld [vmem:[%s740 + $0xb8] sm:$0xff]
        %v2436 = vadd.f32 %v2412, %v2294
        %v2437 = vadd.f32 %v2413, %v2299
        %v2438 = vadd.f32 %v2414, %v2304
        %v2439 = vadd.f32 %v2415, %v2309
        %v2440 = vadd.f32 %v2416, %v2314
        %v2441 = vadd.f32 %v2417, %v2319
        %v2442 = vadd.f32 %v2418, %v2324
        %v2443 = vadd.f32 %v2419, %v2329
        %v2444 = vadd.f32 %v2420, %v2334
        %v2445 = vadd.f32 %v2421, %v2339
        %v2446 = vadd.f32 %v2422, %v2344
        %v2447 = vadd.f32 %v2423, %v2349
        %v2448 = vadd.f32 %v2424, %v2354
        %v2449 = vadd.f32 %v2425, %v2359
        %v2450 = vadd.f32 %v2426, %v2364
        %v2451 = vadd.f32 %v2427, %v2369
        %v2452 = vadd.f32 %v2428, %v2374
        %v2453 = vadd.f32 %v2429, %v2379
        %v2454 = vadd.f32 %v2430, %v2384
        %v2455 = vadd.f32 %v2431, %v2389
        %v2456 = vadd.f32 %v2432, %v2394
        %v2457 = vadd.f32 %v2433, %v2399
        %v2458 = vadd.f32 %v2434, %v2404
        %v2459 = vadd.f32 %v2435, %v2409
        %2460 = vst.msk [vmem:[%s740] sm:$0xff] %vm264, %v2436
        %2461 = vst.msk [vmem:[%s740 + $0x8] sm:$0xff] %vm264, %v2437
        %2462 = vst.msk [vmem:[%s740 + $0x10] sm:$0xff] %vm264, %v2438
        %2463 = vst.msk [vmem:[%s740 + $0x18] sm:$0xff] %vm264, %v2439
        %2464 = vst.msk [vmem:[%s740 + $0x20] sm:$0xff] %vm264, %v2440
        %2465 = vst.msk [vmem:[%s740 + $0x28] sm:$0xff] %vm264, %v2441
        %2466 = vst.msk [vmem:[%s740 + $0x30] sm:$0xff] %vm264, %v2442
        %2467 = vst.msk [vmem:[%s740 + $0x38] sm:$0xff] %vm264, %v2443
        %2468 = vst.msk [vmem:[%s740 + $0x40] sm:$0xff] %vm264, %v2444
        %2469 = vst.msk [vmem:[%s740 + $0x48] sm:$0xff] %vm264, %v2445
        %2470 = vst.msk [vmem:[%s740 + $0x50] sm:$0xff] %vm264, %v2446
        %2471 = vst.msk [vmem:[%s740 + $0x58] sm:$0xff] %vm264, %v2447
        %2472 = vst.msk [vmem:[%s740 + $0x60] sm:$0xff] %vm264, %v2448
        %2473 = vst.msk [vmem:[%s740 + $0x68] sm:$0xff] %vm264, %v2449
        %2474 = vst.msk [vmem:[%s740 + $0x70] sm:$0xff] %vm264, %v2450
        %2475 = vst.msk [vmem:[%s740 + $0x78] sm:$0xff] %vm264, %v2451
        %2476 = vst.msk [vmem:[%s740 + $0x80] sm:$0xff] %vm264, %v2452
        %2477 = vst.msk [vmem:[%s740 + $0x88] sm:$0xff] %vm264, %v2453
        %2478 = vst.msk [vmem:[%s740 + $0x90] sm:$0xff] %vm264, %v2454
        %2479 = vst.msk [vmem:[%s740 + $0x98] sm:$0xff] %vm264, %v2455
        %2480 = vst.msk [vmem:[%s740 + $0xa0] sm:$0xff] %vm264, %v2456
        %2481 = vst.msk [vmem:[%s740 + $0xa8] sm:$0xff] %vm264, %v2457
        %2482 = vst.msk [vmem:[%s740 + $0xb0] sm:$0xff] %vm264, %v2458
        %2483 = vst.msk [vmem:[%s740 + $0xb8] sm:$0xff] %vm264, %v2459
        %s2484 = scalar_lea.vmem [#allocation7], 32
        %v2485 = vld [vmem:[%s2484] sm:$0xf]
        %v2487 = vsel %vm337, %v2485, 0
        %2489 = vmatprep.subr.mxu0 0.0
        %2490 = vmatpush1.msra.mxu0 %v2487
        %2491 = vmatprep.subr.mxu0 0.0
        %2492 = vmatpush1.msra.mxu0 0.0
        %2493 = vmatprep.subr.mxu0 0.0
        %2494 = vmatpush1.msra.mxu0 0.0
        %2495 = vmatprep.subr.mxu0 0.0
        %2496 = vmatpush1.msra.mxu0 0.0
        %2497 = vmatprep.subr.mxu0 0.0
        %2498 = vmatpush1.msra.mxu0 0.0
        %2499 = vmatprep.subr.mxu0 0.0
        %2500 = vmatpush1.msra.mxu0 0.0
        %2501 = vmatprep.subr.mxu0 0.0
        %2502 = vmatpush1.msra.mxu0 0.0
        %2503 = vmatprep.subr.mxu0 0.0
        %2504 = vmatpush1.msra.mxu0 0.0
        %2505 = vmatprep.subr.mxu0 0.0
        %2506 = vmatpush1.msra.mxu0 0.0
        %2507 = vmatprep.subr.mxu0 0.0
        %2508 = vmatpush1.msra.mxu0 0.0
        %2509 = vmatprep.subr.mxu0 0.0
        %2510 = vmatpush1.msra.mxu0 0.0
        %2511 = vmatprep.subr.mxu0 0.0
        %2512 = vmatpush1.msra.mxu0 0.0
        %2513 = vmatprep.subr.mxu0 0.0
        %2514 = vmatpush1.msra.mxu0 0.0
        %2515 = vmatprep.subr.mxu0 0.0
        %2516 = vmatpush1.msra.mxu0 0.0
        %2517 = vmatprep.subr.mxu0 0.0
        %2518 = vmatpush1.msra.mxu0 0.0
        %2519 = vmatprep.subr.mxu0 0.0
        %2520 = vmatpush1.msra.mxu0 0.0
        %2521 = vmatprep.subr.mxu0 0.0
        %2522 = vmatpush1.msra.mxu0 0.0
        %2523 = vmatprep.subr.mxu0 0.0
        %2524 = vmatpush1.msra.mxu0 0.0
        %2525 = vmatprep.subr.mxu0 0.0
        %2526 = vmatpush1.msra.mxu0 0.0
        %2527 = vmatprep.subr.mxu0 0.0
        %2528 = vmatpush1.msra.mxu0 0.0
        %2529 = vmatprep.subr.mxu0 0.0
        %2530 = vmatpush1.msra.mxu0 0.0
        %2531 = vmatprep.subr.mxu0 0.0
        %2532 = vmatpush1.msra.mxu0 0.0
        %2533 = vmatprep.subr.mxu0 0.0
        %2534 = vmatpush1.msra.mxu0 0.0
        %2535 = vmatprep.subr.mxu0 0.0
        %2536 = vmatpush1.msra.mxu0 0.0
        %2537 = vmatprep.subr.mxu0 0.0
        %2538 = vmatpush1.msra.mxu0 0.0
        %2539 = vmatprep.subr.mxu0 0.0
        %2540 = vmatpush1.msra.mxu0 0.0
        %2541 = vmatprep.subr.mxu0 0.0
        %2542 = vmatpush1.msra.mxu0 0.0
        %2543 = vmatprep.subr.mxu0 0.0
        %2544 = vmatpush1.msra.mxu0 0.0
        %2545 = vmatprep.subr.mxu0 0.0
        %2546 = vmatpush1.msra.mxu0 0.0
        %2547 = vmatprep.subr.mxu0 0.0
        %2548 = vmatpush1.msra.mxu0 0.0
        %2549 = vmatprep.subr.mxu0 0.0
        %2550 = vmatpush1.msra.mxu0 0.0
        %2551 = vmatprep.subr.mxu0 0.0
        %2552 = vmatpush1.msra.mxu0 0.0
        %2553 = vmatprep.mubr.f32.mxu0 0.0
        %2554 = vmatmul.mubr.f32.gmra.mrb[0].mxu0 %v1891
        %v2555 = vpop.f32.mrb[0].mxu0
        %v2556 = vadd.f32 0.0, %v2555
        %v2557 = vpop.f32.mrb[0].mxu0
        %2558 = vmatprep.mubr.f32.mxu0 0.0
        %2559 = vmatmul.mubr.f32.gmra.mrb[0].mxu0 %v1894
        %v2560 = vpop.f32.mrb[0].mxu0
        %v2561 = vadd.f32 0.0, %v2560
        %v2562 = vpop.f32.mrb[0].mxu0
        %2563 = vmatprep.mubr.f32.mxu0 0.0
        %2564 = vmatmul.mubr.f32.gmra.mrb[0].mxu0 %v1897
        %v2565 = vpop.f32.mrb[0].mxu0
        %v2566 = vadd.f32 0.0, %v2565
        %v2567 = vpop.f32.mrb[0].mxu0
        %2568 = vmatprep.mubr.f32.mxu0 0.0
        %2569 = vmatmul.mubr.f32.gmra.mrb[0].mxu0 %v1900
        %v2570 = vpop.f32.mrb[0].mxu0
        %v2571 = vadd.f32 0.0, %v2570
        %v2572 = vpop.f32.mrb[0].mxu0
        %2573 = vmatprep.mubr.f32.mxu0 0.0
        %2574 = vmatmul.mubr.f32.gmra.mrb[0].mxu0 %v1903
        %v2575 = vpop.f32.mrb[0].mxu0
        %v2576 = vadd.f32 0.0, %v2575
        %v2577 = vpop.f32.mrb[0].mxu0
        %2578 = vmatprep.mubr.f32.mxu0 0.0
        %2579 = vmatmul.mubr.f32.gmra.mrb[0].mxu0 %v1906
        %v2580 = vpop.f32.mrb[0].mxu0
        %v2581 = vadd.f32 0.0, %v2580
        %v2582 = vpop.f32.mrb[0].mxu0
        %2583 = vmatprep.mubr.f32.mxu0 0.0
        %2584 = vmatmul.mubr.f32.gmra.mrb[0].mxu0 %v1909
        %v2585 = vpop.f32.mrb[0].mxu0
        %v2586 = vadd.f32 0.0, %v2585
        %v2587 = vpop.f32.mrb[0].mxu0
        %2588 = vmatprep.mubr.f32.mxu0 0.0
        %2589 = vmatmul.mubr.f32.gmra.mrb[0].mxu0 %v1912
        %v2590 = vpop.f32.mrb[0].mxu0
        %v2591 = vadd.f32 0.0, %v2590
        %v2592 = vpop.f32.mrb[0].mxu0
        %2593 = vmatprep.mubr.f32.mxu0 0.0
        %2594 = vmatmul.mubr.f32.gmra.mrb[0].mxu0 %v1915
        %v2595 = vpop.f32.mrb[0].mxu0
        %v2596 = vadd.f32 0.0, %v2595
        %v2597 = vpop.f32.mrb[0].mxu0
        %2598 = vmatprep.mubr.f32.mxu0 0.0
        %2599 = vmatmul.mubr.f32.gmra.mrb[0].mxu0 %v1918
        %v2600 = vpop.f32.mrb[0].mxu0
        %v2601 = vadd.f32 0.0, %v2600
        %v2602 = vpop.f32.mrb[0].mxu0
        %2603 = vmatprep.mubr.f32.mxu0 0.0
        %2604 = vmatmul.mubr.f32.gmra.mrb[0].mxu0 %v1921
        %v2605 = vpop.f32.mrb[0].mxu0
        %v2606 = vadd.f32 0.0, %v2605
        %v2607 = vpop.f32.mrb[0].mxu0
        %2608 = vmatprep.mubr.f32.mxu0 0.0
        %2609 = vmatmul.mubr.f32.gmra.mrb[0].mxu0 %v1924
        %v2610 = vpop.f32.mrb[0].mxu0
        %v2611 = vadd.f32 0.0, %v2610
        %v2612 = vpop.f32.mrb[0].mxu0
        %2613 = vmatprep.mubr.f32.mxu0 0.0
        %2614 = vmatmul.mubr.f32.gmra.mrb[0].mxu0 %v1927
        %v2615 = vpop.f32.mrb[0].mxu0
        %v2616 = vadd.f32 0.0, %v2615
        %v2617 = vpop.f32.mrb[0].mxu0
        %2618 = vmatprep.mubr.f32.mxu0 0.0
        %2619 = vmatmul.mubr.f32.gmra.mrb[0].mxu0 %v1930
        %v2620 = vpop.f32.mrb[0].mxu0
        %v2621 = vadd.f32 0.0, %v2620
        %v2622 = vpop.f32.mrb[0].mxu0
        %2623 = vmatprep.mubr.f32.mxu0 0.0
        %2624 = vmatmul.mubr.f32.gmra.mrb[0].mxu0 %v1933
        %v2625 = vpop.f32.mrb[0].mxu0
        %v2626 = vadd.f32 0.0, %v2625
        %v2627 = vpop.f32.mrb[0].mxu0
        %2628 = vmatprep.mubr.f32.mxu0 0.0
        %2629 = vmatmul.mubr.f32.gmra.mrb[0].mxu0 %v1936
        %v2630 = vpop.f32.mrb[0].mxu0
        %v2631 = vadd.f32 0.0, %v2630
        %v2632 = vpop.f32.mrb[0].mxu0
        %2633 = vmatprep.mubr.f32.mxu0 0.0
        %2634 = vmatmul.mubr.f32.gmra.mrb[0].mxu0 %v1939
        %v2635 = vpop.f32.mrb[0].mxu0
        %v2636 = vadd.f32 0.0, %v2635
        %v2637 = vpop.f32.mrb[0].mxu0
        %2638 = vmatprep.mubr.f32.mxu0 0.0
        %2639 = vmatmul.mubr.f32.gmra.mrb[0].mxu0 %v1942
        %v2640 = vpop.f32.mrb[0].mxu0
        %v2641 = vadd.f32 0.0, %v2640
        %v2642 = vpop.f32.mrb[0].mxu0
        %2643 = vmatprep.mubr.f32.mxu0 0.0
        %2644 = vmatmul.mubr.f32.gmra.mrb[0].mxu0 %v1945
        %v2645 = vpop.f32.mrb[0].mxu0
        %v2646 = vadd.f32 0.0, %v2645
        %v2647 = vpop.f32.mrb[0].mxu0
        %2648 = vmatprep.mubr.f32.mxu0 0.0
        %2649 = vmatmul.mubr.f32.gmra.mrb[0].mxu0 %v1948
        %v2650 = vpop.f32.mrb[0].mxu0
        %v2651 = vadd.f32 0.0, %v2650
        %v2652 = vpop.f32.mrb[0].mxu0
        %2653 = vmatprep.mubr.f32.mxu0 0.0
        %2654 = vmatmul.mubr.f32.gmra.mrb[0].mxu0 %v1951
        %v2655 = vpop.f32.mrb[0].mxu0
        %v2656 = vadd.f32 0.0, %v2655
        %v2657 = vpop.f32.mrb[0].mxu0
        %2658 = vmatprep.mubr.f32.mxu0 0.0
        %2659 = vmatmul.mubr.f32.gmra.mrb[0].mxu0 %v1954
        %v2660 = vpop.f32.mrb[0].mxu0
        %v2661 = vadd.f32 0.0, %v2660
        %v2662 = vpop.f32.mrb[0].mxu0
        %2663 = vmatprep.mubr.f32.mxu0 0.0
        %2664 = vmatmul.mubr.f32.gmra.mrb[0].mxu0 %v1957
        %v2665 = vpop.f32.mrb[0].mxu0
        %v2666 = vadd.f32 0.0, %v2665
        %v2667 = vpop.f32.mrb[0].mxu0
        %2668 = vmatprep.mubr.f32.mxu0 0.0
        %2669 = vmatmul.mubr.f32.gmra.mrb[0].mxu0 %v1960
        %v2670 = vpop.f32.mrb[0].mxu0
        %v2671 = vadd.f32 0.0, %v2670
        %v2672 = vpop.f32.mrb[0].mxu0
        %2673 = vdwg.mxu0
        %v2674 = vld [vmem:[%s955] sm:$0xff]
        %v2675 = vld [vmem:[%s955 + $0x8] sm:$0xff]
        %v2676 = vld [vmem:[%s955 + $0x10] sm:$0xff]
        %v2677 = vld [vmem:[%s955 + $0x18] sm:$0xff]
        %v2678 = vld [vmem:[%s955 + $0x20] sm:$0xff]
        %v2679 = vld [vmem:[%s955 + $0x28] sm:$0xff]
        %v2680 = vld [vmem:[%s955 + $0x30] sm:$0xff]
        %v2681 = vld [vmem:[%s955 + $0x38] sm:$0xff]
        %v2682 = vld [vmem:[%s955 + $0x40] sm:$0xff]
        %v2683 = vld [vmem:[%s955 + $0x48] sm:$0xff]
        %v2684 = vld [vmem:[%s955 + $0x50] sm:$0xff]
        %v2685 = vld [vmem:[%s955 + $0x58] sm:$0xff]
        %v2686 = vld [vmem:[%s955 + $0x60] sm:$0xff]
        %v2687 = vld [vmem:[%s955 + $0x68] sm:$0xff]
        %v2688 = vld [vmem:[%s955 + $0x70] sm:$0xff]
        %v2689 = vld [vmem:[%s955 + $0x78] sm:$0xff]
        %v2690 = vld [vmem:[%s955 + $0x80] sm:$0xff]
        %v2691 = vld [vmem:[%s955 + $0x88] sm:$0xff]
        %v2692 = vld [vmem:[%s955 + $0x90] sm:$0xff]
        %v2693 = vld [vmem:[%s955 + $0x98] sm:$0xff]
        %v2694 = vld [vmem:[%s955 + $0xa0] sm:$0xff]
        %v2695 = vld [vmem:[%s955 + $0xa8] sm:$0xff]
        %v2696 = vld [vmem:[%s955 + $0xb0] sm:$0xff]
        %v2697 = vld [vmem:[%s955 + $0xb8] sm:$0xff]
        %v2698 = vadd.f32 %v2674, %v2556
        %v2699 = vadd.f32 %v2675, %v2561
        %v2700 = vadd.f32 %v2676, %v2566
        %v2701 = vadd.f32 %v2677, %v2571
        %v2702 = vadd.f32 %v2678, %v2576
        %v2703 = vadd.f32 %v2679, %v2581
        %v2704 = vadd.f32 %v2680, %v2586
        %v2705 = vadd.f32 %v2681, %v2591
        %v2706 = vadd.f32 %v2682, %v2596
        %v2707 = vadd.f32 %v2683, %v2601
        %v2708 = vadd.f32 %v2684, %v2606
        %v2709 = vadd.f32 %v2685, %v2611
        %v2710 = vadd.f32 %v2686, %v2616
        %v2711 = vadd.f32 %v2687, %v2621
        %v2712 = vadd.f32 %v2688, %v2626
        %v2713 = vadd.f32 %v2689, %v2631
        %v2714 = vadd.f32 %v2690, %v2636
        %v2715 = vadd.f32 %v2691, %v2641
        %v2716 = vadd.f32 %v2692, %v2646
        %v2717 = vadd.f32 %v2693, %v2651
        %v2718 = vadd.f32 %v2694, %v2656
        %v2719 = vadd.f32 %v2695, %v2661
        %v2720 = vadd.f32 %v2696, %v2666
        %v2721 = vadd.f32 %v2697, %v2671
        %2722 = vst.msk [vmem:[%s955] sm:$0xff] %vm264, %v2698
        %2723 = vst.msk [vmem:[%s955 + $0x8] sm:$0xff] %vm264, %v2699
        %2724 = vst.msk [vmem:[%s955 + $0x10] sm:$0xff] %vm264, %v2700
        %2725 = vst.msk [vmem:[%s955 + $0x18] sm:$0xff] %vm264, %v2701
        %2726 = vst.msk [vmem:[%s955 + $0x20] sm:$0xff] %vm264, %v2702
        %2727 = vst.msk [vmem:[%s955 + $0x28] sm:$0xff] %vm264, %v2703
        %2728 = vst.msk [vmem:[%s955 + $0x30] sm:$0xff] %vm264, %v2704
        %2729 = vst.msk [vmem:[%s955 + $0x38] sm:$0xff] %vm264, %v2705
        %2730 = vst.msk [vmem:[%s955 + $0x40] sm:$0xff] %vm264, %v2706
        %2731 = vst.msk [vmem:[%s955 + $0x48] sm:$0xff] %vm264, %v2707
        %2732 = vst.msk [vmem:[%s955 + $0x50] sm:$0xff] %vm264, %v2708
        %2733 = vst.msk [vmem:[%s955 + $0x58] sm:$0xff] %vm264, %v2709
        %2734 = vst.msk [vmem:[%s955 + $0x60] sm:$0xff] %vm264, %v2710
        %2735 = vst.msk [vmem:[%s955 + $0x68] sm:$0xff] %vm264, %v2711
        %2736 = vst.msk [vmem:[%s955 + $0x70] sm:$0xff] %vm264, %v2712
        %2737 = vst.msk [vmem:[%s955 + $0x78] sm:$0xff] %vm264, %v2713
        %2738 = vst.msk [vmem:[%s955 + $0x80] sm:$0xff] %vm264, %v2714
        %2739 = vst.msk [vmem:[%s955 + $0x88] sm:$0xff] %vm264, %v2715
        %2740 = vst.msk [vmem:[%s955 + $0x90] sm:$0xff] %vm264, %v2716
        %2741 = vst.msk [vmem:[%s955 + $0x98] sm:$0xff] %vm264, %v2717
        %2742 = vst.msk [vmem:[%s955 + $0xa0] sm:$0xff] %vm264, %v2718
        %2743 = vst.msk [vmem:[%s955 + $0xa8] sm:$0xff] %vm264, %v2719
        %2744 = vst.msk [vmem:[%s955 + $0xb0] sm:$0xff] %vm264, %v2720
        %2745 = vst.msk [vmem:[%s955 + $0xb8] sm:$0xff] %vm264, %v2721
        %v2746 = vld [vmem:[#allocation2] sm:$0xff]
        %v2747 = vld [vmem:[#allocation2 + $0x8] sm:$0xff]
        %v2748 = vld [vmem:[#allocation2 + $0x18] sm:$0xff]
        %v2749 = vld [vmem:[#allocation2 + $0x20] sm:$0xff]
        %v2750 = vld [vmem:[#allocation2 + $0x30] sm:$0xff]
        %v2751 = vld [vmem:[#allocation2 + $0x38] sm:$0xff]
        %v2752 = vld [vmem:[#allocation2 + $0x48] sm:$0xff]
        %v2753 = vld [vmem:[#allocation2 + $0x50] sm:$0xff]
        %v2754 = vld [vmem:[#allocation2 + $0x60] sm:$0xff]
        %v2755 = vld [vmem:[#allocation2 + $0x68] sm:$0xff]
        %v2756 = vld [vmem:[#allocation2 + $0x78] sm:$0xff]
        %v2757 = vld [vmem:[#allocation2 + $0x80] sm:$0xff]
        %v2758 = vld [vmem:[#allocation2 + $0x90] sm:$0xff]
        %v2759 = vld [vmem:[#allocation2 + $0x98] sm:$0xff]
        %v2760 = vld [vmem:[#allocation2 + $0xa8] sm:$0xff]
        %v2761 = vld [vmem:[#allocation2 + $0xb0] sm:$0xff]
        %2762 = vst.msk [vmem:[#allocation3] sm:$0xff] %vm264, %v2746
        %2763 = vst.msk [vmem:[#allocation3 + $0x8] sm:$0xff] %vm264, %v2747
        %2764 = vst.msk [vmem:[#allocation3 + $0x10] sm:$0xff] %vm264, %v2748
        %2765 = vst.msk [vmem:[#allocation3 + $0x18] sm:$0xff] %vm264, %v2749
        %2766 = vst.msk [vmem:[#allocation3 + $0x20] sm:$0xff] %vm264, %v2750
        %2767 = vst.msk [vmem:[#allocation3 + $0x28] sm:$0xff] %vm264, %v2751
        %2768 = vst.msk [vmem:[#allocation3 + $0x30] sm:$0xff] %vm264, %v2752
        %2769 = vst.msk [vmem:[#allocation3 + $0x38] sm:$0xff] %vm264, %v2753
        %2770 = vst.msk [vmem:[#allocation3 + $0x40] sm:$0xff] %vm264, %v2754
        %2771 = vst.msk [vmem:[#allocation3 + $0x48] sm:$0xff] %vm264, %v2755
        %2772 = vst.msk [vmem:[#allocation3 + $0x50] sm:$0xff] %vm264, %v2756
        %2773 = vst.msk [vmem:[#allocation3 + $0x58] sm:$0xff] %vm264, %v2757
        %2774 = vst.msk [vmem:[#allocation3 + $0x60] sm:$0xff] %vm264, %v2758
        %2775 = vst.msk [vmem:[#allocation3 + $0x68] sm:$0xff] %vm264, %v2759
        %2776 = vst.msk [vmem:[#allocation3 + $0x70] sm:$0xff] %vm264, %v2760
        %2777 = vst.msk [vmem:[#allocation3 + $0x78] sm:$0xff] %vm264, %v2761
        %v2778 = vld [vmem:[%s740 + $0x1] sm:$0xff]
        %v2779 = vld [vmem:[%s740 + $0x9] sm:$0xff]
        %v2780 = vld [vmem:[%s740 + $0x19] sm:$0xff]
        %v2781 = vld [vmem:[%s740 + $0x21] sm:$0xff]
        %v2782 = vld [vmem:[%s740 + $0x31] sm:$0xff]
        %v2783 = vld [vmem:[%s740 + $0x39] sm:$0xff]
        %v2784 = vld [vmem:[%s740 + $0x49] sm:$0xff]
        %v2785 = vld [vmem:[%s740 + $0x51] sm:$0xff]
        %v2786 = vld [vmem:[%s740 + $0x61] sm:$0xff]
        %v2787 = vld [vmem:[%s740 + $0x69] sm:$0xff]
        %v2788 = vld [vmem:[%s740 + $0x79] sm:$0xff]
        %v2789 = vld [vmem:[%s740 + $0x81] sm:$0xff]
        %v2790 = vld [vmem:[%s740 + $0x91] sm:$0xff]
        %v2791 = vld [vmem:[%s740 + $0x99] sm:$0xff]
        %v2792 = vld [vmem:[%s740 + $0xa9] sm:$0xff]
        %v2793 = vld [vmem:[%s740 + $0xb1] sm:$0xff]
        %v2794 = vld [vmem:[#allocation3] sm:$0xff]
        %v2795 = vld [vmem:[#allocation3 + $0x8] sm:$0xff]
        %v2796 = vld [vmem:[#allocation3 + $0x10] sm:$0xff]
        %v2797 = vld [vmem:[#allocation3 + $0x18] sm:$0xff]
        %v2798 = vld [vmem:[#allocation3 + $0x20] sm:$0xff]
        %v2799 = vld [vmem:[#allocation3 + $0x28] sm:$0xff]
        %v2800 = vld [vmem:[#allocation3 + $0x30] sm:$0xff]
        %v2801 = vld [vmem:[#allocation3 + $0x38] sm:$0xff]
        %v2802 = vld [vmem:[#allocation3 + $0x40] sm:$0xff]
        %v2803 = vld [vmem:[#allocation3 + $0x48] sm:$0xff]
        %v2804 = vld [vmem:[#allocation3 + $0x50] sm:$0xff]
        %v2805 = vld [vmem:[#allocation3 + $0x58] sm:$0xff]
        %v2806 = vld [vmem:[#allocation3 + $0x60] sm:$0xff]
        %v2807 = vld [vmem:[#allocation3 + $0x68] sm:$0xff]
        %v2808 = vld [vmem:[#allocation3 + $0x70] sm:$0xff]
        %v2809 = vld [vmem:[#allocation3 + $0x78] sm:$0xff]
        %v2810 = vadd.f32 %v2794, %v2778
        %v2811 = vadd.f32 %v2795, %v2779
        %v2812 = vadd.f32 %v2796, %v2780
        %v2813 = vadd.f32 %v2797, %v2781
        %v2814 = vadd.f32 %v2798, %v2782
        %v2815 = vadd.f32 %v2799, %v2783
        %v2816 = vadd.f32 %v2800, %v2784
        %v2817 = vadd.f32 %v2801, %v2785
        %v2818 = vadd.f32 %v2802, %v2786
        %v2819 = vadd.f32 %v2803, %v2787
        %v2820 = vadd.f32 %v2804, %v2788
        %v2821 = vadd.f32 %v2805, %v2789
        %v2822 = vadd.f32 %v2806, %v2790
        %v2823 = vadd.f32 %v2807, %v2791
        %v2824 = vadd.f32 %v2808, %v2792
        %v2825 = vadd.f32 %v2809, %v2793
        %2826 = vst.msk [vmem:[#allocation3] sm:$0xff] %vm264, %v2810
        %2827 = vst.msk [vmem:[#allocation3 + $0x8] sm:$0xff] %vm264, %v2811
        %2828 = vst.msk [vmem:[#allocation3 + $0x10] sm:$0xff] %vm264, %v2812
        %2829 = vst.msk [vmem:[#allocation3 + $0x18] sm:$0xff] %vm264, %v2813
        %2830 = vst.msk [vmem:[#allocation3 + $0x20] sm:$0xff] %vm264, %v2814
        %2831 = vst.msk [vmem:[#allocation3 + $0x28] sm:$0xff] %vm264, %v2815
        %2832 = vst.msk [vmem:[#allocation3 + $0x30] sm:$0xff] %vm264, %v2816
        %2833 = vst.msk [vmem:[#allocation3 + $0x38] sm:$0xff] %vm264, %v2817
        %2834 = vst.msk [vmem:[#allocation3 + $0x40] sm:$0xff] %vm264, %v2818
        %2835 = vst.msk [vmem:[#allocation3 + $0x48] sm:$0xff] %vm264, %v2819
        %2836 = vst.msk [vmem:[#allocation3 + $0x50] sm:$0xff] %vm264, %v2820
        %2837 = vst.msk [vmem:[#allocation3 + $0x58] sm:$0xff] %vm264, %v2821
        %2838 = vst.msk [vmem:[#allocation3 + $0x60] sm:$0xff] %vm264, %v2822
        %2839 = vst.msk [vmem:[#allocation3 + $0x68] sm:$0xff] %vm264, %v2823
        %2840 = vst.msk [vmem:[#allocation3 + $0x70] sm:$0xff] %vm264, %v2824
        %2841 = vst.msk [vmem:[#allocation3 + $0x78] sm:$0xff] %vm264, %v2825
        %v2842 = vld [vmem:[%s955 + $0x2] sm:$0xff]
        %v2843 = vld [vmem:[%s955 + $0xa] sm:$0xff]
        %v2844 = vld [vmem:[%s955 + $0x1a] sm:$0xff]
        %v2845 = vld [vmem:[%s955 + $0x22] sm:$0xff]
        %v2846 = vld [vmem:[%s955 + $0x32] sm:$0xff]
        %v2847 = vld [vmem:[%s955 + $0x3a] sm:$0xff]
        %v2848 = vld [vmem:[%s955 + $0x4a] sm:$0xff]
        %v2849 = vld [vmem:[%s955 + $0x52] sm:$0xff]
        %v2850 = vld [vmem:[%s955 + $0x62] sm:$0xff]
        %v2851 = vld [vmem:[%s955 + $0x6a] sm:$0xff]
        %v2852 = vld [vmem:[%s955 + $0x7a] sm:$0xff]
        %v2853 = vld [vmem:[%s955 + $0x82] sm:$0xff]
        %v2854 = vld [vmem:[%s955 + $0x92] sm:$0xff]
        %v2855 = vld [vmem:[%s955 + $0x9a] sm:$0xff]
        %v2856 = vld [vmem:[%s955 + $0xaa] sm:$0xff]
        %v2857 = vld [vmem:[%s955 + $0xb2] sm:$0xff]
        %v2858 = vld [vmem:[#allocation3] sm:$0xff]
        %v2859 = vld [vmem:[#allocation3 + $0x8] sm:$0xff]
        %v2860 = vld [vmem:[#allocation3 + $0x10] sm:$0xff]
        %v2861 = vld [vmem:[#allocation3 + $0x18] sm:$0xff]
        %v2862 = vld [vmem:[#allocation3 + $0x20] sm:$0xff]
        %v2863 = vld [vmem:[#allocation3 + $0x28] sm:$0xff]
        %v2864 = vld [vmem:[#allocation3 + $0x30] sm:$0xff]
        %v2865 = vld [vmem:[#allocation3 + $0x38] sm:$0xff]
        %v2866 = vld [vmem:[#allocation3 + $0x40] sm:$0xff]
        %v2867 = vld [vmem:[#allocation3 + $0x48] sm:$0xff]
        %v2868 = vld [vmem:[#allocation3 + $0x50] sm:$0xff]
        %v2869 = vld [vmem:[#allocation3 + $0x58] sm:$0xff]
        %v2870 = vld [vmem:[#allocation3 + $0x60] sm:$0xff]
        %v2871 = vld [vmem:[#allocation3 + $0x68] sm:$0xff]
        %v2872 = vld [vmem:[#allocation3 + $0x70] sm:$0xff]
        %v2873 = vld [vmem:[#allocation3 + $0x78] sm:$0xff]
        %v2874 = vadd.f32 %v2858, %v2842
        %v2875 = vadd.f32 %v2859, %v2843
        %v2876 = vadd.f32 %v2860, %v2844
        %v2877 = vadd.f32 %v2861, %v2845
        %v2878 = vadd.f32 %v2862, %v2846
        %v2879 = vadd.f32 %v2863, %v2847
        %v2880 = vadd.f32 %v2864, %v2848
        %v2881 = vadd.f32 %v2865, %v2849
        %v2882 = vadd.f32 %v2866, %v2850
        %v2883 = vadd.f32 %v2867, %v2851
        %v2884 = vadd.f32 %v2868, %v2852
        %v2885 = vadd.f32 %v2869, %v2853
        %v2886 = vadd.f32 %v2870, %v2854
        %v2887 = vadd.f32 %v2871, %v2855
        %v2888 = vadd.f32 %v2872, %v2856
        %v2889 = vadd.f32 %v2873, %v2857
        %2890 = vst.msk [vmem:[#allocation3] sm:$0xff] %vm264, %v2874
        %2891 = vst.msk [vmem:[#allocation3 + $0x8] sm:$0xff] %vm264, %v2875
        %2892 = vst.msk [vmem:[#allocation3 + $0x10] sm:$0xff] %vm264, %v2876
        %2893 = vst.msk [vmem:[#allocation3 + $0x18] sm:$0xff] %vm264, %v2877
        %2894 = vst.msk [vmem:[#allocation3 + $0x20] sm:$0xff] %vm264, %v2878
        %2895 = vst.msk [vmem:[#allocation3 + $0x28] sm:$0xff] %vm264, %v2879
        %2896 = vst.msk [vmem:[#allocation3 + $0x30] sm:$0xff] %vm264, %v2880
        %2897 = vst.msk [vmem:[#allocation3 + $0x38] sm:$0xff] %vm264, %v2881
        %2898 = vst.msk [vmem:[#allocation3 + $0x40] sm:$0xff] %vm264, %v2882
        %2899 = vst.msk [vmem:[#allocation3 + $0x48] sm:$0xff] %vm264, %v2883
        %2900 = vst.msk [vmem:[#allocation3 + $0x50] sm:$0xff] %vm264, %v2884
        %2901 = vst.msk [vmem:[#allocation3 + $0x58] sm:$0xff] %vm264, %v2885
        %2902 = vst.msk [vmem:[#allocation3 + $0x60] sm:$0xff] %vm264, %v2886
        %2903 = vst.msk [vmem:[#allocation3 + $0x68] sm:$0xff] %vm264, %v2887
        %2904 = vst.msk [vmem:[#allocation3 + $0x70] sm:$0xff] %vm264, %v2888
        %2905 = vst.msk [vmem:[#allocation3 + $0x78] sm:$0xff] %vm264, %v2889
        %v2906 = vld [vmem:[#allocation3] sm:$0xff]
        %v2907 = vld [vmem:[#allocation3 + $0x8] sm:$0xff]
        %v2908 = vld [vmem:[#allocation3 + $0x10] sm:$0xff]
        %v2909 = vld [vmem:[#allocation3 + $0x18] sm:$0xff]
        %v2910 = vld [vmem:[#allocation3 + $0x20] sm:$0xff]
        %v2911 = vld [vmem:[#allocation3 + $0x28] sm:$0xff]
        %v2912 = vld [vmem:[#allocation3 + $0x30] sm:$0xff]
        %v2913 = vld [vmem:[#allocation3 + $0x38] sm:$0xff]
        %v2914 = vld [vmem:[#allocation3 + $0x40] sm:$0xff]
        %v2915 = vld [vmem:[#allocation3 + $0x48] sm:$0xff]
        %v2916 = vld [vmem:[#allocation3 + $0x50] sm:$0xff]
        %v2917 = vld [vmem:[#allocation3 + $0x58] sm:$0xff]
        %v2918 = vld [vmem:[#allocation3 + $0x60] sm:$0xff]
        %v2919 = vld [vmem:[#allocation3 + $0x68] sm:$0xff]
        %v2920 = vld [vmem:[#allocation3 + $0x70] sm:$0xff]
        %v2921 = vld [vmem:[#allocation3 + $0x78] sm:$0xff]
        %v2922 = vld [vmem:[#allocation9] sm:$0x1]
        %v2924 = vlaneseq
        %v2925 = vshrl.u32 %v2924, 7
        %v2926 = vsub.s32 0, %v2925
        %v2927 = vrot.slane %v2922, %v2926
        %v2929 = vadd.f32 %v2906, %v2927
        %v2930 = vadd.f32 %v2907, %v2927
        %v2931 = vadd.f32 %v2908, %v2927
        %v2932 = vadd.f32 %v2909, %v2927
        %v2933 = vadd.f32 %v2910, %v2927
        %v2934 = vadd.f32 %v2911, %v2927
        %v2935 = vadd.f32 %v2912, %v2927
        %v2936 = vadd.f32 %v2913, %v2927
        %v2937 = vadd.f32 %v2914, %v2927
        %v2938 = vadd.f32 %v2915, %v2927
        %v2939 = vadd.f32 %v2916, %v2927
        %v2940 = vadd.f32 %v2917, %v2927
        %v2941 = vadd.f32 %v2918, %v2927
        %v2942 = vadd.f32 %v2919, %v2927
        %v2943 = vadd.f32 %v2920, %v2927
        %v2944 = vadd.f32 %v2921, %v2927
        %v2945 = vmax.f32 %v2929, 0.0
        %v2946 = vmax.f32 %v2930, 0.0
        %v2947 = vmax.f32 %v2931, 0.0
        %v2948 = vmax.f32 %v2932, 0.0
        %v2949 = vmax.f32 %v2933, 0.0
        %v2950 = vmax.f32 %v2934, 0.0
        %v2951 = vmax.f32 %v2935, 0.0
        %v2952 = vmax.f32 %v2936, 0.0
        %v2953 = vmax.f32 %v2937, 0.0
        %v2954 = vmax.f32 %v2938, 0.0
        %v2955 = vmax.f32 %v2939, 0.0
        %v2956 = vmax.f32 %v2940, 0.0
        %v2957 = vmax.f32 %v2941, 0.0
        %v2958 = vmax.f32 %v2942, 0.0
        %v2959 = vmax.f32 %v2943, 0.0
        %v2960 = vmax.f32 %v2944, 0.0
        %v2961 = vld [vmem:[%s980 + $0x1] sm:$0xff]
        %v2962 = vld [vmem:[%s980 + $0x9] sm:$0xff]
        %v2963 = vld [vmem:[%s980 + $0x19] sm:$0xff]
        %v2964 = vld [vmem:[%s980 + $0x21] sm:$0xff]
        %v2965 = vld [vmem:[%s980 + $0x31] sm:$0xff]
        %v2966 = vld [vmem:[%s980 + $0x39] sm:$0xff]
        %v2967 = vld [vmem:[%s980 + $0x49] sm:$0xff]
        %v2968 = vld [vmem:[%s980 + $0x51] sm:$0xff]
        %v2969 = vld [vmem:[%s980 + $0x61] sm:$0xff]
        %v2970 = vld [vmem:[%s980 + $0x69] sm:$0xff]
        %v2971 = vld [vmem:[%s980 + $0x79] sm:$0xff]
        %v2972 = vld [vmem:[%s980 + $0x81] sm:$0xff]
        %v2973 = vld [vmem:[%s980 + $0x91] sm:$0xff]
        %v2974 = vld [vmem:[%s980 + $0x99] sm:$0xff]
        %v2975 = vld [vmem:[%s980 + $0xa9] sm:$0xff]
        %v2976 = vld [vmem:[%s980 + $0xb1] sm:$0xff]
        %v2977 = vadd.f32 %v2961, %v2945
        %v2978 = vadd.f32 %v2962, %v2946
        %v2979 = vadd.f32 %v2963, %v2947
        %v2980 = vadd.f32 %v2964, %v2948
        %v2981 = vadd.f32 %v2965, %v2949
        %v2982 = vadd.f32 %v2966, %v2950
        %v2983 = vadd.f32 %v2967, %v2951
        %v2984 = vadd.f32 %v2968, %v2952
        %v2985 = vadd.f32 %v2969, %v2953
        %v2986 = vadd.f32 %v2970, %v2954
        %v2987 = vadd.f32 %v2971, %v2955
        %v2988 = vadd.f32 %v2972, %v2956
        %v2989 = vadd.f32 %v2973, %v2957
        %v2990 = vadd.f32 %v2974, %v2958
        %v2991 = vadd.f32 %v2975, %v2959
        %v2992 = vadd.f32 %v2976, %v2960
        %2993 = vst.msk [vmem:[%s235] sm:$0xff] %vm264, %v2977
        %2994 = vst.msk [vmem:[%s235 + $0x8] sm:$0xff] %vm264, %v2978
        %2995 = vst.msk [vmem:[%s235 + $0x10] sm:$0xff] %vm264, %v2979
        %2996 = vst.msk [vmem:[%s235 + $0x18] sm:$0xff] %vm264, %v2980
        %2997 = vst.msk [vmem:[%s235 + $0x20] sm:$0xff] %vm264, %v2981
        %2998 = vst.msk [vmem:[%s235 + $0x28] sm:$0xff] %vm264, %v2982
        %2999 = vst.msk [vmem:[%s235 + $0x30] sm:$0xff] %vm264, %v2983
        %3000 = vst.msk [vmem:[%s235 + $0x38] sm:$0xff] %vm264, %v2984
        %3001 = vst.msk [vmem:[%s235 + $0x40] sm:$0xff] %vm264, %v2985
        %3002 = vst.msk [vmem:[%s235 + $0x48] sm:$0xff] %vm264, %v2986
        %3003 = vst.msk [vmem:[%s235 + $0x50] sm:$0xff] %vm264, %v2987
        %3004 = vst.msk [vmem:[%s235 + $0x58] sm:$0xff] %vm264, %v2988
        %3005 = vst.msk [vmem:[%s235 + $0x60] sm:$0xff] %vm264, %v2989
        %3006 = vst.msk [vmem:[%s235 + $0x68] sm:$0xff] %vm264, %v2990
        %3007 = vst.msk [vmem:[%s235 + $0x70] sm:$0xff] %vm264, %v2991
        %3008 = vst.msk [vmem:[%s235 + $0x78] sm:$0xff] %vm264, %v2992
        %s3009 = sand.u32 %s115, 1
        %s3010 = scalar_lea.sflag [#allocation6], %s3009
        %s3011 = sand.u32 %s115, 1
        %s3012 = smul.addr %s3011, 128
        %s3013 = scalar_lea.vmem [#allocation10], %s3012
        // Predicated region
        $region45: #{resblock_forward.1} parent=31 // pred_check
          %p3014 = pneg %p125
        $region46: #{resblock_forward.1} parent=31 // pred_check_branch
          %3016 = sbr.rel (%p3014) target = $region48
        $region47: #{resblock_forward.1} parent=31 // pred_region
          %s3017 = smul.u32 8, %s26
          %s3019 = ssub.s32 2048, 2048
          %3020 = vsyncadd %s3010, %s3019
          %s3021 = smul.addr %s3017, 2
          %s3022 = smul.addr %s25, 32
          %s3023 = sadd.s32 %s3021, %s3022
          %s3024 = smul.addr %s3023, 128
          %s3025 = scalar_lea.hbm %s3, %s3024
          %s3026 = sshll.u32 %s3013, 4
          %s3027 = int_to_ptr.vmem [resolvable:$true] %s3026
          %3032 = dma.vmem_to_hbm [thread:$0]  %s3027, 2048, %s3025, %s3010, 128, 128, 8
        $region48: #{resblock_forward.1} parent=31 // pred_fallthru
          _
      $region32: #{resblock_forward.1} parent=5 // pred_fallthru
        _
      %p3033 = scmp.le.s32.totalorder 2, %s16
      // Predicated region
      $region49: #{resblock_forward.1} parent=5 // pred_check
        %p3034 = pneg %p3033
      $region50: #{resblock_forward.1} parent=5 // pred_check_branch
        %3036 = sbr.rel (%p3034) target = $region52
      $region51: #{resblock_forward.1} parent=5 // pred_region
        %s3037 = ssub.s32 %s16, 2
        // Predicated region
        $region53: #{resblock_forward.1} parent=51 // pred_check
          %p3038 = pneg %p131
        $region54: #{resblock_forward.1} parent=51 // pred_check_branch
          %3040 = sbr.rel (%p3038) target = $region56
        $region55: #{resblock_forward.1} parent=51 // pred_region
          %s3041 = sand.u32 %s116, 1
          %s3042 = scalar_lea.sflag [#allocation6], %s3041
          %s3043 = sand.u32 %s116, 1
          %s3044 = smul.addr %s3043, 128
          %s3045 = scalar_lea.vmem [#allocation10], %s3044
          %3046 = dma.done %s3042, 2048
        $region56: #{resblock_forward.1} parent=51 // pred_fallthru
          _
      $region52: #{resblock_forward.1} parent=5 // pred_fallthru
        _
    $region6: #{resblock_forward.1} parent=1 // loop_footer
      %s20 = sadd.s32 1, %s16
    $region7: #{resblock_forward.1} parent=1 // loop_footer_branch
      %15 = sbr.rel target = $region3
    $region8: #{resblock_forward.1} parent=1 // loop_exit
      _
    %3047 = vsyncpa [#allocation5], 1
    %s3048 = scalar_lea.sflag [#allocation5], 1
    %3049 = vsyncpa %s3048, 1
    %3050 = vsyncpa [#allocation8], 1
    %3051 = vsyncpa [#allocation6], 1
    %s3052 = scalar_lea.sflag [#allocation6], 1
    %3053 = vsyncpa %s3052, 1

</llo_original>
